<compile_context>
chip_gen: v7x
topology: tpu7x:2x2x1
jax: 0.10.0
libtpu: 0.0.40
codegen_flags: <defaults>
</compile_context>

<pallas_src>
import numpy as np
import jax
import jax.numpy as jnp
from jax.experimental import pallas as pl
from jax.experimental.pallas import tpu as pltpu


# ----------------------------------------------------------------------------
# pure-JAX reference (mirrors the PyTorch math, used for a correctness check)
# ----------------------------------------------------------------------------
def _sigmoid(x):
    return 1.0 / (1.0 + jnp.exp(-x))


def _lstm_direction(x, w_ih_t, w_hh_t, b, reverse):
    """One direction of nn.LSTM(batch_first=True). Gate order: i, f, g, o."""
    B, S, H = x.shape
    H2 = w_hh_t.shape[0]
    h = jnp.zeros((B, H2), jnp.float32)
    c = jnp.zeros((B, H2), jnp.float32)
    hs = [None] * S
    time_order = range(S - 1, -1, -1) if reverse else range(S)
    for t in time_order:
        x_t = x[:, t, :]
        gates = (jnp.dot(x_t, w_ih_t, preferred_element_type=jnp.float32)
                 + jnp.dot(h, w_hh_t, preferred_element_type=jnp.float32)
                 + b)
        i_g = _sigmoid(gates[:, 0 * H2:1 * H2])
        f_g = _sigmoid(gates[:, 1 * H2:2 * H2])
        g_g = jnp.tanh(gates[:, 2 * H2:3 * H2])
        o_g = _sigmoid(gates[:, 3 * H2:4 * H2])
        c = f_g * c + i_g * g_g
        h = o_g * jnp.tanh(c)
        hs[t] = h
    return jnp.stack(hs, axis=1)


def _lstm_attn_math(x, mask, w_ih_f, w_hh_f, b_f, w_ih_b, w_hh_b, b_b,
                    w_fc_t, b_fc, ctx):
    """LstmAttn.forward (eval mode) on plain jnp values."""
    B, S, H = x.shape
    out_f = _lstm_direction(x, w_ih_f, w_hh_f, b_f, reverse=False)
    out_b = _lstm_direction(x, w_ih_b, w_hh_b, b_b, reverse=True)
    outputs = jnp.concatenate([out_f, out_b], axis=-1)           # (B, S, H)

    act = jnp.tanh(
        jnp.dot(outputs.reshape(B * S, H), w_fc_t,
                preferred_element_type=jnp.float32) + b_fc
    ).reshape(B, S, H)

    scores = jnp.sum(act * ctx.reshape(1, 1, H), axis=-1)        # (B, S)
    masked = jnp.where(mask, scores, jnp.float32(-1e-32))        # faithful to src
    m = jnp.max(masked, axis=1, keepdims=True)
    e = jnp.exp(masked - m)
    p = e / jnp.sum(e, axis=1, keepdims=True)

    hidden = jnp.sum(outputs * p[:, :, None], axis=1)            # (B, H)
    return outputs, hidden


# ----------------------------------------------------------------------------
# fused-parameter preparation (done once in the wrapper, outside the kernel)
# ----------------------------------------------------------------------------
def _gate_major_embed(w, half, H):
    """Scatter the 4 gate blocks of a (R, 4*H2) matrix into a (R, 4*H)
    gate-major layout [i_f i_b | f_f f_b | g_f g_b | o_f o_b]; `half` selects
    the forward (0) or backward (1) half-columns; the other half stays zero."""
    R = w.shape[0]
    H2 = H // 2
    out = jnp.zeros((R, 4 * H), jnp.float32)
    for k in range(4):
        out = out.at[:, k * H + half * H2: k * H + (half + 1) * H2].set(
            w[:, k * H2:(k + 1) * H2])
    return out


def prepare_fused_params(params, H):
    (w_ih_f, w_hh_f, b_f, w_ih_b, w_hh_b, b_b, w_fc_t, b_fc, ctx) = params
    H2 = H // 2
    wf_gm = _gate_major_embed(w_ih_f, 0, H)          # (H, 4H)  fwd input proj
    wb_gm = _gate_major_embed(w_ih_b, 1, H)          # (H, 4H)  bwd input proj
    bf_gm = _gate_major_embed(b_f, 0, H)             # (1, 4H)
    bb_gm = _gate_major_embed(b_b, 1, H)             # (1, 4H)
    # block-diagonal recurrent weight: rows [0:H2] <- h_fwd, rows [H2:H] <- h_bwd
    # (keeps a single 4H=128-lane matmul per step at tiny H; at production H,
    #  where 4*H2 is already a multiple of 128, use two per-direction matmuls
    #  instead of this half-zero matrix).
    wblk = jnp.zeros((H, 4 * H), jnp.float32)
    wblk = wblk.at[0:H2, :].set(_gate_major_embed(w_hh_f, 0, H))
    wblk = wblk.at[H2:H, :].set(_gate_major_embed(w_hh_b, 1, H))
    return (wf_gm, bf_gm, wb_gm, bb_gm, wblk, w_fc_t, b_fc, ctx)


# ----------------------------------------------------------------------------
# Pallas kernel (one batch tile of Bt documents per grid step)
# ----------------------------------------------------------------------------
def _make_kernel(Bt, S, H):
    H2 = H // 2
    G4 = 4 * H

    def kernel(x_ref, mask_ref, wf_ref, bf_ref, wb_ref, bb_ref, wblk_ref,
               wfc_ref, bfc_ref, ctx_ref, out_ref, hid_ref):
        x2 = x_ref[...].reshape(Bt * S, H)          # (Bt*S, H) segment [CLS] embeds

        # ---- hoisted input projection, both directions, biases folded ----
        xf = (jnp.dot(x2, wf_ref[...], preferred_element_type=jnp.float32)
              + bf_ref[...]).reshape(Bt, S, G4)
        xb = (jnp.dot(x2, wb_ref[...], preferred_element_type=jnp.float32)
              + bb_ref[...]).reshape(Bt, S, G4)
        wblk = wblk_ref[...]                        # (H, 4H) block-diag recurrent

        def sigmoid(v):                             # EUP tanh; no per-step divide
            return 0.5 * (jnp.tanh(0.5 * v) + 1.0)

        h = jnp.zeros((Bt, H), jnp.float32)         # [h_fwd | h_bwd]
        c = jnp.zeros((Bt, H), jnp.float32)         # [c_fwd | c_bwd]
        hs = []

        # fused fwd+bwd recurrence, batched over the Bt documents of this tile.
        # S is small & static so it stays unrolled; per-step h stays in vregs
        # (no stores on the serial critical path).
        # TODO(synk): for larger S switch to lax.fori_loop(..., unroll=2..4)
        # with a VMEM scratch for per-step h to bound vreg live ranges.
        for s in range(S):
            tb = S - 1 - s                                   # backward time idx
            gates = (xf[:, s, :] + xb[:, tb, :]
                     + jnp.dot(h, wblk, preferred_element_type=jnp.float32))
            i_g = sigmoid(gates[:, 0 * H:1 * H])
            f_g = sigmoid(gates[:, 1 * H:2 * H])
            g_g = jnp.tanh(gates[:, 2 * H:3 * H])
            o_g = sigmoid(gates[:, 3 * H:4 * H])
            c = f_g * c + i_g * g_g
            h = o_g * jnp.tanh(c)
            hs.append(h)                                     # loop-carried vregs

        # ---- assemble BiLSTM outputs after the loop (off the critical path) --
        # lanes [0:H2] take the forward half in time order; lanes [H2:H] take
        # the backward half, which sits in hs[] in reversed time order.
        lane_is_fwd = jax.lax.broadcasted_iota(jnp.int32, (Bt, H), 1) < H2
        outputs = jnp.stack(
            [jnp.where(lane_is_fwd, hs[t], hs[S - 1 - t]) for t in range(S)],
            axis=1)                                          # (Bt, S, H)

        # ---- attention over segments (dropout = identity in eval) ----
        act = jnp.tanh(
            jnp.dot(outputs.reshape(Bt * S, H), wfc_ref[...],
                    preferred_element_type=jnp.float32) + bfc_ref[...]
        ).reshape(Bt, S, H)

        ctx = jnp.broadcast_to(ctx_ref[...].reshape(1, 1, H), (Bt, 1, H))
        # MXU reduction; scores laid out lane-oriented as (Bt, 1, S)
        scores = jnp.einsum('bkh,bsh->bks', ctx, act,
                            preferred_element_type=jnp.float32)
        mask = mask_ref[...] != 0                            # (Bt, 1, S)
        # NOTE: masked_fill value is -1e-32, faithful to the PyTorch source
        # (almost certainly an upstream bug for -1e32: padded segments are not
        # actually suppressed; the pure-JAX reference does the same).
        masked = jnp.where(mask, scores, jnp.float32(-1e-32))
        m = jnp.max(masked, axis=-1, keepdims=True)
        e = jnp.exp(masked - m)
        denom = jnp.sum(e, axis=-1, keepdims=True)
        p = e * pl.reciprocal(denom, approx=True)            # (Bt, 1, S)

        # MXU reduction over segments: (Bt,1,S) x (Bt,S,H) -> (Bt,1,H)
        hidden = jnp.einsum('bks,bsh->bkh', p, outputs,
                            preferred_element_type=jnp.float32)

        # ---- single full-block stores ----
        out_ref[...] = outputs
        hid_ref[...] = hidden

    return kernel


def hierbert_forward(encoder_outputs, attention_mask, params, batch_tile=None):
    """HierBert.forward (encoder_outputs path): returns (outputs, hidden)."""
    B, S, H = encoder_outputs.shape
    if batch_tile is None:
        # <= 2 grid steps: one per v7x TensorCore; on single-TC v5e/v6e the
        # per-grid-step pipeline overhead becomes negligible.
        batch_tile = max(1, (B + 1) // 2)
    grid_b = (B + batch_tile - 1) // batch_tile
    Bp = grid_b * batch_tile

    x = encoder_outputs.astype(jnp.float32)
    mask = attention_mask.astype(jnp.int32).reshape(B, 1, S)
    if Bp > B:                                    # pad batch to a tile multiple
        x = jnp.pad(x, ((0, Bp - B), (0, 0), (0, 0)))
        mask = jnp.pad(mask, ((0, Bp - B), (0, 0), (0, 0)), constant_values=1)

    fused = prepare_fused_params(params, H)

    def const_spec(shape):
        # weights stay resident across grid steps
        # (production H: add pipeline_mode=pl.Buffered(1) and cast to bf16)
        return pl.BlockSpec(shape, lambda b, _n=len(shape): (0,) * _n)

    in_specs = [
        pl.BlockSpec((batch_tile, S, H), lambda b: (b, 0, 0)),   # encoder_outputs
        pl.BlockSpec((batch_tile, 1, S), lambda b: (b, 0, 0)),   # segment mask
    ] + [const_spec(w.shape) for w in fused]

    out_specs = (
        pl.BlockSpec((batch_tile, S, H), lambda b: (b, 0, 0)),   # outputs
        pl.BlockSpec((batch_tile, 1, H), lambda b: (b, 0, 0)),   # hidden
    )
    out_shape = (jax.ShapeDtypeStruct((Bp, S, H), jnp.float32),
                 jax.ShapeDtypeStruct((Bp, 1, H), jnp.float32))

    outs, hid = pl.pallas_call(
        _make_kernel(batch_tile, S, H),
        grid=(grid_b,),
        in_specs=in_specs,
        out_specs=out_specs,
        out_shape=out_shape,
        compiler_params=pltpu.CompilerParams(
            dimension_semantics=("parallel",),     # batch tiles across TCs (v7x)
            vmem_limit_bytes=32 * 1024 * 1024),
    )(x, mask, *fused)

    outputs = outs[:B]
    hidden = hid[:B, 0, :]
    return outputs, hidden


# ----------------------------------------------------------------------------
# deterministic parameter construction (shapes follow LstmAttn.__init__)
# ----------------------------------------------------------------------------
def make_params(key, hidden_size):
    H = hidden_size
    H2 = H // 2
    ks = jax.random.split(key, 11)
    u = lambda k, shape, lo=-0.1, hi=0.1: jax.random.uniform(
        k, shape, jnp.float32, lo, hi)

    # nn.LSTM(H, H//2, bidirectional) weights, stored pre-transposed
    w_ih_f = u(ks[0], (H, 4 * H2))          # weight_ih_l0.T
    w_hh_f = u(ks[1], (H2, 4 * H2))         # weight_hh_l0.T
    b_f = (u(ks[2], (1, 4 * H2)) + u(ks[3], (1, 4 * H2)))   # bias_ih + bias_hh
    w_ih_b = u(ks[4], (H, 4 * H2))          # weight_ih_l0_reverse.T
    w_hh_b = u(ks[5], (H2, 4 * H2))         # weight_hh_l0_reverse.T
    b_b = (u(ks[6], (1, 4 * H2)) + u(ks[7], (1, 4 * H2)))
    # nn.Linear(H, H)
    w_fc_t = u(ks[8], (H, H))               # attn_fc.weight.T
    b_fc = u(ks[9], (1, H))                 # attn_fc.bias
    # context = nn.Parameter(torch.rand(H))  -> uniform [0, 1)
    ctx = jax.random.uniform(ks[10], (1, H), jnp.float32, 0.0, 1.0)

    return (w_ih_f, w_hh_f, b_f, w_ih_b, w_hh_b, b_b, w_fc_t, b_fc, ctx)


# ----------------------------------------------------------------------------
if __name__ == "__main__":
    key = jax.random.PRNGKey(0)
    B, S, H = 4, 8, 32          # batch, max_num_segments, hidden_size

    k_x, k_p = jax.random.split(key)
    # encoder_outputs: segment-level [CLS] embeddings produced by the (external)
    # BERT encoder — synthesized here.
    encoder_outputs = jax.random.normal(k_x, (B, S, H), jnp.float32)
    # segment-level attention mask (True for real segments, False for padding)
    seg_lengths = jnp.array([8, 5, 3, 6], dtype=jnp.int32)
    attention_mask = jnp.arange(S)[None, :] < seg_lengths[:, None]   # (B, S) bool

    params = make_params(k_p, H)

    outputs, hidden = hierbert_forward(encoder_outputs, attention_mask, params)
    jax.block_until_ready((outputs, hidden))

    # pure-JAX reference (same math, outside Pallas) for a sanity check
    ref_outputs, ref_hidden = _lstm_attn_math(
        encoder_outputs, attention_mask, *params)
    assert outputs.shape == (B, S, H) and hidden.shape == (B, H)
    assert np.allclose(np.asarray(outputs), np.asarray(ref_outputs),
                       atol=2e-3, rtol=2e-3)
    assert np.allclose(np.asarray(hidden), np.asarray(ref_hidden),
                       atol=2e-3, rtol=2e-3)

    print("KERNEL_OK")
</pallas_src>

<mosaic_0001>
module attributes {stable_mosaic.version = 11 : i64} {
  func.func @kernel(%arg0: i32, %arg1: memref<2x8x32xf32, #tpu.memory_space<vmem>>, %arg2: memref<2x1x8xi32, #tpu.memory_space<vmem>>, %arg3: memref<32x128xf32, #tpu.memory_space<vmem>>, %arg4: memref<1x128xf32, #tpu.memory_space<vmem>>, %arg5: memref<32x128xf32, #tpu.memory_space<vmem>>, %arg6: memref<1x128xf32, #tpu.memory_space<vmem>>, %arg7: memref<32x128xf32, #tpu.memory_space<vmem>>, %arg8: memref<32x32xf32, #tpu.memory_space<vmem>>, %arg9: memref<1x32xf32, #tpu.memory_space<vmem>>, %arg10: memref<1x32xf32, #tpu.memory_space<vmem>>, %arg11: memref<2x8x32xf32, #tpu.memory_space<vmem>>, %arg12: memref<2x1x32xf32, #tpu.memory_space<vmem>>) attributes {dimension_semantics = [#tpu.dimension_semantics<parallel>], iteration_bounds = array<i64: 2>, scalar_prefetch = 0 : i64, scratch_operands = 0 : i64, tpu.core_type = #tpu.core_type<tc>, window_params = [{transform_indices = @transform_0, window_bounds = array<i64: 2, 8, 32>}, {transform_indices = @transform_1, window_bounds = array<i64: 2, 1, 8>}, {pipeline_mode = #tpu.pipeline_mode<synchronous>, transform_indices = @transform_2, window_bounds = array<i64: 32, 128>}, {pipeline_mode = #tpu.pipeline_mode<synchronous>, transform_indices = @transform_3, window_bounds = array<i64: 1, 128>}, {pipeline_mode = #tpu.pipeline_mode<synchronous>, transform_indices = @transform_4, window_bounds = array<i64: 32, 128>}, {pipeline_mode = #tpu.pipeline_mode<synchronous>, transform_indices = @transform_5, window_bounds = array<i64: 1, 128>}, {pipeline_mode = #tpu.pipeline_mode<synchronous>, transform_indices = @transform_6, window_bounds = array<i64: 32, 128>}, {pipeline_mode = #tpu.pipeline_mode<synchronous>, transform_indices = @transform_7, window_bounds = array<i64: 32, 32>}, {pipeline_mode = #tpu.pipeline_mode<synchronous>, transform_indices = @transform_8, window_bounds = array<i64: 1, 32>}, {pipeline_mode = #tpu.pipeline_mode<synchronous>, transform_indices = @transform_9, window_bounds = array<i64: 1, 32>}, {transform_indices = @transform_10, window_bounds = array<i64: 2, 8, 32>}, {transform_indices = @transform_11, window_bounds = array<i64: 2, 1, 32>}]} {
    %c0 = arith.constant 0 : index
    %c0_0 = arith.constant 0 : index
    %c0_1 = arith.constant 0 : index
    %0 = vector.load %arg1[%c0, %c0_0, %c0_1] : memref<2x8x32xf32, #tpu.memory_space<vmem>>, vector<2x8x32xf32>
    %1 = vector.shape_cast %0 : vector<2x8x32xf32> to vector<16x32xf32>
    %c0_2 = arith.constant 0 : index
    %c0_3 = arith.constant 0 : index
    %2 = vector.load %arg3[%c0_2, %c0_3] : memref<32x128xf32, #tpu.memory_space<vmem>>, vector<32x128xf32>
    %cst = arith.constant dense<0.000000e+00> : vector<16x128xf32>
    %3 = tpu.matmul %1, %2, %cst {dimension_numbers = #tpu.dot_dimension_numbers<[1], [0], [0], [1], [0, 0, 1, 1], [], []>} : vector<16x32xf32>, vector<32x128xf32>, vector<16x128xf32> -> vector<16x128xf32>
    %c0_4 = arith.constant 0 : index
    %c0_5 = arith.constant 0 : index
    %4 = vector.load %arg4[%c0_4, %c0_5] : memref<1x128xf32, #tpu.memory_space<vmem>>, vector<1x128xf32>
    %5 = vector.broadcast %4 : vector<1x128xf32> to vector<16x128xf32>
    %6 = arith.addf %3, %5 : vector<16x128xf32>
    %7 = vector.shape_cast %6 : vector<16x128xf32> to vector<2x8x128xf32>
    %c0_6 = arith.constant 0 : index
    %c0_7 = arith.constant 0 : index
    %8 = vector.load %arg5[%c0_6, %c0_7] : memref<32x128xf32, #tpu.memory_space<vmem>>, vector<32x128xf32>
    %cst_8 = arith.constant dense<0.000000e+00> : vector<16x128xf32>
    %9 = tpu.matmul %1, %8, %cst_8 {dimension_numbers = #tpu.dot_dimension_numbers<[1], [0], [0], [1], [0, 0, 1, 1], [], []>} : vector<16x32xf32>, vector<32x128xf32>, vector<16x128xf32> -> vector<16x128xf32>
    %c0_9 = arith.constant 0 : index
    %c0_10 = arith.constant 0 : index
    %10 = vector.load %arg6[%c0_9, %c0_10] : memref<1x128xf32, #tpu.memory_space<vmem>>, vector<1x128xf32>
    %11 = vector.broadcast %10 : vector<1x128xf32> to vector<16x128xf32>
    %12 = arith.addf %9, %11 : vector<16x128xf32>
    %13 = vector.shape_cast %12 : vector<16x128xf32> to vector<2x8x128xf32>
    %c0_11 = arith.constant 0 : index
    %c0_12 = arith.constant 0 : index
    %14 = vector.load %arg7[%c0_11, %c0_12] : memref<32x128xf32, #tpu.memory_space<vmem>>, vector<32x128xf32>
    %cst_13 = arith.constant 0.000000e+00 : f32
    %15 = vector.broadcast %cst_13 : f32 to vector<2x32xf32>
    %cst_14 = arith.constant 0.000000e+00 : f32
    %16 = vector.broadcast %cst_14 : f32 to vector<2x32xf32>
    %17 = vector.extract_strided_slice %7 {offsets = [0, 0, 0], sizes = [2, 1, 128], strides = [1, 1, 1]} : vector<2x8x128xf32> to vector<2x1x128xf32>
    %18 = vector.shape_cast %17 : vector<2x1x128xf32> to vector<2x128xf32>
    %19 = vector.extract_strided_slice %13 {offsets = [0, 7, 0], sizes = [2, 1, 128], strides = [1, 1, 1]} : vector<2x8x128xf32> to vector<2x1x128xf32>
    %20 = vector.shape_cast %19 : vector<2x1x128xf32> to vector<2x128xf32>
    %21 = arith.addf %18, %20 : vector<2x128xf32>
    %cst_15 = arith.constant dense<0.000000e+00> : vector<2x128xf32>
    %22 = tpu.matmul %15, %14, %cst_15 {dimension_numbers = #tpu.dot_dimension_numbers<[1], [0], [0], [1], [0, 0, 1, 1], [], []>} : vector<2x32xf32>, vector<32x128xf32>, vector<2x128xf32> -> vector<2x128xf32>
    %23 = arith.addf %21, %22 : vector<2x128xf32>
    %24 = vector.extract_strided_slice %23 {offsets = [0, 0], sizes = [2, 32], strides = [1, 1]} : vector<2x128xf32> to vector<2x32xf32>
    %cst_16 = arith.constant 5.000000e-01 : f32
    %25 = vector.broadcast %cst_16 : f32 to vector<2x32xf32>
    %26 = arith.mulf %25, %24 : vector<2x32xf32>
    %27 = math.tanh %26 : vector<2x32xf32>
    %cst_17 = arith.constant 1.000000e+00 : f32
    %28 = vector.broadcast %cst_17 : f32 to vector<2x32xf32>
    %29 = arith.addf %27, %28 : vector<2x32xf32>
    %cst_18 = arith.constant 5.000000e-01 : f32
    %30 = vector.broadcast %cst_18 : f32 to vector<2x32xf32>
    %31 = arith.mulf %30, %29 : vector<2x32xf32>
    %32 = vector.extract_strided_slice %23 {offsets = [0, 32], sizes = [2, 32], strides = [1, 1]} : vector<2x128xf32> to vector<2x32xf32>
    %cst_19 = arith.constant 5.000000e-01 : f32
    %33 = vector.broadcast %cst_19 : f32 to vector<2x32xf32>
    %34 = arith.mulf %33, %32 : vector<2x32xf32>
    %35 = math.tanh %34 : vector<2x32xf32>
    %cst_20 = arith.constant 1.000000e+00 : f32
    %36 = vector.broadcast %cst_20 : f32 to vector<2x32xf32>
    %37 = arith.addf %35, %36 : vector<2x32xf32>
    %cst_21 = arith.constant 5.000000e-01 : f32
    %38 = vector.broadcast %cst_21 : f32 to vector<2x32xf32>
    %39 = arith.mulf %38, %37 : vector<2x32xf32>
    %40 = vector.extract_strided_slice %23 {offsets = [0, 64], sizes = [2, 32], strides = [1, 1]} : vector<2x128xf32> to vector<2x32xf32>
    %41 = math.tanh %40 : vector<2x32xf32>
    %42 = vector.extract_strided_slice %23 {offsets = [0, 96], sizes = [2, 32], strides = [1, 1]} : vector<2x128xf32> to vector<2x32xf32>
    %cst_22 = arith.constant 5.000000e-01 : f32
    %43 = vector.broadcast %cst_22 : f32 to vector<2x32xf32>
    %44 = arith.mulf %43, %42 : vector<2x32xf32>
    %45 = math.tanh %44 : vector<2x32xf32>
    %cst_23 = arith.constant 1.000000e+00 : f32
    %46 = vector.broadcast %cst_23 : f32 to vector<2x32xf32>
    %47 = arith.addf %45, %46 : vector<2x32xf32>
    %cst_24 = arith.constant 5.000000e-01 : f32
    %48 = vector.broadcast %cst_24 : f32 to vector<2x32xf32>
    %49 = arith.mulf %48, %47 : vector<2x32xf32>
    %50 = arith.mulf %39, %16 : vector<2x32xf32>
    %51 = arith.mulf %31, %41 : vector<2x32xf32>
    %52 = arith.addf %50, %51 : vector<2x32xf32>
    %53 = math.tanh %52 : vector<2x32xf32>
    %54 = arith.mulf %49, %53 : vector<2x32xf32>
    %55 = vector.extract_strided_slice %7 {offsets = [0, 1, 0], sizes = [2, 1, 128], strides = [1, 1, 1]} : vector<2x8x128xf32> to vector<2x1x128xf32>
    %56 = vector.shape_cast %55 : vector<2x1x128xf32> to vector<2x128xf32>
    %57 = vector.extract_strided_slice %13 {offsets = [0, 6, 0], sizes = [2, 1, 128], strides = [1, 1, 1]} : vector<2x8x128xf32> to vector<2x1x128xf32>
    %58 = vector.shape_cast %57 : vector<2x1x128xf32> to vector<2x128xf32>
    %59 = arith.addf %56, %58 : vector<2x128xf32>
    %cst_25 = arith.constant dense<0.000000e+00> : vector<2x128xf32>
    %60 = tpu.matmul %54, %14, %cst_25 {dimension_numbers = #tpu.dot_dimension_numbers<[1], [0], [0], [1], [0, 0, 1, 1], [], []>} : vector<2x32xf32>, vector<32x128xf32>, vector<2x128xf32> -> vector<2x128xf32>
    %61 = arith.addf %59, %60 : vector<2x128xf32>
    %62 = vector.extract_strided_slice %61 {offsets = [0, 0], sizes = [2, 32], strides = [1, 1]} : vector<2x128xf32> to vector<2x32xf32>
    %cst_26 = arith.constant 5.000000e-01 : f32
    %63 = vector.broadcast %cst_26 : f32 to vector<2x32xf32>
    %64 = arith.mulf %63, %62 : vector<2x32xf32>
    %65 = math.tanh %64 : vector<2x32xf32>
    %cst_27 = arith.constant 1.000000e+00 : f32
    %66 = vector.broadcast %cst_27 : f32 to vector<2x32xf32>
    %67 = arith.addf %65, %66 : vector<2x32xf32>
    %cst_28 = arith.constant 5.000000e-01 : f32
    %68 = vector.broadcast %cst_28 : f32 to vector<2x32xf32>
    %69 = arith.mulf %68, %67 : vector<2x32xf32>
    %70 = vector.extract_strided_slice %61 {offsets = [0, 32], sizes = [2, 32], strides = [1, 1]} : vector<2x128xf32> to vector<2x32xf32>
    %cst_29 = arith.constant 5.000000e-01 : f32
    %71 = vector.broadcast %cst_29 : f32 to vector<2x32xf32>
    %72 = arith.mulf %71, %70 : vector<2x32xf32>
    %73 = math.tanh %72 : vector<2x32xf32>
    %cst_30 = arith.constant 1.000000e+00 : f32
    %74 = vector.broadcast %cst_30 : f32 to vector<2x32xf32>
    %75 = arith.addf %73, %74 : vector<2x32xf32>
    %cst_31 = arith.constant 5.000000e-01 : f32
    %76 = vector.broadcast %cst_31 : f32 to vector<2x32xf32>
    %77 = arith.mulf %76, %75 : vector<2x32xf32>
    %78 = vector.extract_strided_slice %61 {offsets = [0, 64], sizes = [2, 32], strides = [1, 1]} : vector<2x128xf32> to vector<2x32xf32>
    %79 = math.tanh %78 : vector<2x32xf32>
    %80 = vector.extract_strided_slice %61 {offsets = [0, 96], sizes = [2, 32], strides = [1, 1]} : vector<2x128xf32> to vector<2x32xf32>
    %cst_32 = arith.constant 5.000000e-01 : f32
    %81 = vector.broadcast %cst_32 : f32 to vector<2x32xf32>
    %82 = arith.mulf %81, %80 : vector<2x32xf32>
    %83 = math.tanh %82 : vector<2x32xf32>
    %cst_33 = arith.constant 1.000000e+00 : f32
    %84 = vector.broadcast %cst_33 : f32 to vector<2x32xf32>
    %85 = arith.addf %83, %84 : vector<2x32xf32>
    %cst_34 = arith.constant 5.000000e-01 : f32
    %86 = vector.broadcast %cst_34 : f32 to vector<2x32xf32>
    %87 = arith.mulf %86, %85 : vector<2x32xf32>
    %88 = arith.mulf %77, %52 : vector<2x32xf32>
    %89 = arith.mulf %69, %79 : vector<2x32xf32>
    %90 = arith.addf %88, %89 : vector<2x32xf32>
    %91 = math.tanh %90 : vector<2x32xf32>
    %92 = arith.mulf %87, %91 : vector<2x32xf32>
    %93 = vector.extract_strided_slice %7 {offsets = [0, 2, 0], sizes = [2, 1, 128], strides = [1, 1, 1]} : vector<2x8x128xf32> to vector<2x1x128xf32>
    %94 = vector.shape_cast %93 : vector<2x1x128xf32> to vector<2x128xf32>
    %95 = vector.extract_strided_slice %13 {offsets = [0, 5, 0], sizes = [2, 1, 128], strides = [1, 1, 1]} : vector<2x8x128xf32> to vector<2x1x128xf32>
    %96 = vector.shape_cast %95 : vector<2x1x128xf32> to vector<2x128xf32>
    %97 = arith.addf %94, %96 : vector<2x128xf32>
    %cst_35 = arith.constant dense<0.000000e+00> : vector<2x128xf32>
    %98 = tpu.matmul %92, %14, %cst_35 {dimension_numbers = #tpu.dot_dimension_numbers<[1], [0], [0], [1], [0, 0, 1, 1], [], []>} : vector<2x32xf32>, vector<32x128xf32>, vector<2x128xf32> -> vector<2x128xf32>
    %99 = arith.addf %97, %98 : vector<2x128xf32>
    %100 = vector.extract_strided_slice %99 {offsets = [0, 0], sizes = [2, 32], strides = [1, 1]} : vector<2x128xf32> to vector<2x32xf32>
    %cst_36 = arith.constant 5.000000e-01 : f32
    %101 = vector.broadcast %cst_36 : f32 to vector<2x32xf32>
    %102 = arith.mulf %101, %100 : vector<2x32xf32>
    %103 = math.tanh %102 : vector<2x32xf32>
    %cst_37 = arith.constant 1.000000e+00 : f32
    %104 = vector.broadcast %cst_37 : f32 to vector<2x32xf32>
    %105 = arith.addf %103, %104 : vector<2x32xf32>
    %cst_38 = arith.constant 5.000000e-01 : f32
    %106 = vector.broadcast %cst_38 : f32 to vector<2x32xf32>
    %107 = arith.mulf %106, %105 : vector<2x32xf32>
    %108 = vector.extract_strided_slice %99 {offsets = [0, 32], sizes = [2, 32], strides = [1, 1]} : vector<2x128xf32> to vector<2x32xf32>
    %cst_39 = arith.constant 5.000000e-01 : f32
    %109 = vector.broadcast %cst_39 : f32 to vector<2x32xf32>
    %110 = arith.mulf %109, %108 : vector<2x32xf32>
    %111 = math.tanh %110 : vector<2x32xf32>
    %cst_40 = arith.constant 1.000000e+00 : f32
    %112 = vector.broadcast %cst_40 : f32 to vector<2x32xf32>
    %113 = arith.addf %111, %112 : vector<2x32xf32>
    %cst_41 = arith.constant 5.000000e-01 : f32
    %114 = vector.broadcast %cst_41 : f32 to vector<2x32xf32>
    %115 = arith.mulf %114, %113 : vector<2x32xf32>
    %116 = vector.extract_strided_slice %99 {offsets = [0, 64], sizes = [2, 32], strides = [1, 1]} : vector<2x128xf32> to vector<2x32xf32>
    %117 = math.tanh %116 : vector<2x32xf32>
    %118 = vector.extract_strided_slice %99 {offsets = [0, 96], sizes = [2, 32], strides = [1, 1]} : vector<2x128xf32> to vector<2x32xf32>
    %cst_42 = arith.constant 5.000000e-01 : f32
    %119 = vector.broadcast %cst_42 : f32 to vector<2x32xf32>
    %120 = arith.mulf %119, %118 : vector<2x32xf32>
    %121 = math.tanh %120 : vector<2x32xf32>
    %cst_43 = arith.constant 1.000000e+00 : f32
    %122 = vector.broadcast %cst_43 : f32 to vector<2x32xf32>
    %123 = arith.addf %121, %122 : vector<2x32xf32>
    %cst_44 = arith.constant 5.000000e-01 : f32
    %124 = vector.broadcast %cst_44 : f32 to vector<2x32xf32>
    %125 = arith.mulf %124, %123 : vector<2x32xf32>
    %126 = arith.mulf %115, %90 : vector<2x32xf32>
    %127 = arith.mulf %107, %117 : vector<2x32xf32>
    %128 = arith.addf %126, %127 : vector<2x32xf32>
    %129 = math.tanh %128 : vector<2x32xf32>
    %130 = arith.mulf %125, %129 : vector<2x32xf32>
    %131 = vector.extract_strided_slice %7 {offsets = [0, 3, 0], sizes = [2, 1, 128], strides = [1, 1, 1]} : vector<2x8x128xf32> to vector<2x1x128xf32>
    %132 = vector.shape_cast %131 : vector<2x1x128xf32> to vector<2x128xf32>
    %133 = vector.extract_strided_slice %13 {offsets = [0, 4, 0], sizes = [2, 1, 128], strides = [1, 1, 1]} : vector<2x8x128xf32> to vector<2x1x128xf32>
    %134 = vector.shape_cast %133 : vector<2x1x128xf32> to vector<2x128xf32>
    %135 = arith.addf %132, %134 : vector<2x128xf32>
    %cst_45 = arith.constant dense<0.000000e+00> : vector<2x128xf32>
    %136 = tpu.matmul %130, %14, %cst_45 {dimension_numbers = #tpu.dot_dimension_numbers<[1], [0], [0], [1], [0, 0, 1, 1], [], []>} : vector<2x32xf32>, vector<32x128xf32>, vector<2x128xf32> -> vector<2x128xf32>
    %137 = arith.addf %135, %136 : vector<2x128xf32>
    %138 = vector.extract_strided_slice %137 {offsets = [0, 0], sizes = [2, 32], strides = [1, 1]} : vector<2x128xf32> to vector<2x32xf32>
    %cst_46 = arith.constant 5.000000e-01 : f32
    %139 = vector.broadcast %cst_46 : f32 to vector<2x32xf32>
    %140 = arith.mulf %139, %138 : vector<2x32xf32>
    %141 = math.tanh %140 : vector<2x32xf32>
    %cst_47 = arith.constant 1.000000e+00 : f32
    %142 = vector.broadcast %cst_47 : f32 to vector<2x32xf32>
    %143 = arith.addf %141, %142 : vector<2x32xf32>
    %cst_48 = arith.constant 5.000000e-01 : f32
    %144 = vector.broadcast %cst_48 : f32 to vector<2x32xf32>
    %145 = arith.mulf %144, %143 : vector<2x32xf32>
    %146 = vector.extract_strided_slice %137 {offsets = [0, 32], sizes = [2, 32], strides = [1, 1]} : vector<2x128xf32> to vector<2x32xf32>
    %cst_49 = arith.constant 5.000000e-01 : f32
    %147 = vector.broadcast %cst_49 : f32 to vector<2x32xf32>
    %148 = arith.mulf %147, %146 : vector<2x32xf32>
    %149 = math.tanh %148 : vector<2x32xf32>
    %cst_50 = arith.constant 1.000000e+00 : f32
    %150 = vector.broadcast %cst_50 : f32 to vector<2x32xf32>
    %151 = arith.addf %149, %150 : vector<2x32xf32>
    %cst_51 = arith.constant 5.000000e-01 : f32
    %152 = vector.broadcast %cst_51 : f32 to vector<2x32xf32>
    %153 = arith.mulf %152, %151 : vector<2x32xf32>
    %154 = vector.extract_strided_slice %137 {offsets = [0, 64], sizes = [2, 32], strides = [1, 1]} : vector<2x128xf32> to vector<2x32xf32>
    %155 = math.tanh %154 : vector<2x32xf32>
    %156 = vector.extract_strided_slice %137 {offsets = [0, 96], sizes = [2, 32], strides = [1, 1]} : vector<2x128xf32> to vector<2x32xf32>
    %cst_52 = arith.constant 5.000000e-01 : f32
    %157 = vector.broadcast %cst_52 : f32 to vector<2x32xf32>
    %158 = arith.mulf %157, %156 : vector<2x32xf32>
    %159 = math.tanh %158 : vector<2x32xf32>
    %cst_53 = arith.constant 1.000000e+00 : f32
    %160 = vector.broadcast %cst_53 : f32 to vector<2x32xf32>
    %161 = arith.addf %159, %160 : vector<2x32xf32>
    %cst_54 = arith.constant 5.000000e-01 : f32
    %162 = vector.broadcast %cst_54 : f32 to vector<2x32xf32>
    %163 = arith.mulf %162, %161 : vector<2x32xf32>
    %164 = arith.mulf %153, %128 : vector<2x32xf32>
    %165 = arith.mulf %145, %155 : vector<2x32xf32>
    %166 = arith.addf %164, %165 : vector<2x32xf32>
    %167 = math.tanh %166 : vector<2x32xf32>
    %168 = arith.mulf %163, %167 : vector<2x32xf32>
    %169 = vector.extract_strided_slice %7 {offsets = [0, 4, 0], sizes = [2, 1, 128], strides = [1, 1, 1]} : vector<2x8x128xf32> to vector<2x1x128xf32>
    %170 = vector.shape_cast %169 : vector<2x1x128xf32> to vector<2x128xf32>
    %171 = vector.extract_strided_slice %13 {offsets = [0, 3, 0], sizes = [2, 1, 128], strides = [1, 1, 1]} : vector<2x8x128xf32> to vector<2x1x128xf32>
    %172 = vector.shape_cast %171 : vector<2x1x128xf32> to vector<2x128xf32>
    %173 = arith.addf %170, %172 : vector<2x128xf32>
    %cst_55 = arith.constant dense<0.000000e+00> : vector<2x128xf32>
    %174 = tpu.matmul %168, %14, %cst_55 {dimension_numbers = #tpu.dot_dimension_numbers<[1], [0], [0], [1], [0, 0, 1, 1], [], []>} : vector<2x32xf32>, vector<32x128xf32>, vector<2x128xf32> -> vector<2x128xf32>
    %175 = arith.addf %173, %174 : vector<2x128xf32>
    %176 = vector.extract_strided_slice %175 {offsets = [0, 0], sizes = [2, 32], strides = [1, 1]} : vector<2x128xf32> to vector<2x32xf32>
    %cst_56 = arith.constant 5.000000e-01 : f32
    %177 = vector.broadcast %cst_56 : f32 to vector<2x32xf32>
    %178 = arith.mulf %177, %176 : vector<2x32xf32>
    %179 = math.tanh %178 : vector<2x32xf32>
    %cst_57 = arith.constant 1.000000e+00 : f32
    %180 = vector.broadcast %cst_57 : f32 to vector<2x32xf32>
    %181 = arith.addf %179, %180 : vector<2x32xf32>
    %cst_58 = arith.constant 5.000000e-01 : f32
    %182 = vector.broadcast %cst_58 : f32 to vector<2x32xf32>
    %183 = arith.mulf %182, %181 : vector<2x32xf32>
    %184 = vector.extract_strided_slice %175 {offsets = [0, 32], sizes = [2, 32], strides = [1, 1]} : vector<2x128xf32> to vector<2x32xf32>
    %cst_59 = arith.constant 5.000000e-01 : f32
    %185 = vector.broadcast %cst_59 : f32 to vector<2x32xf32>
    %186 = arith.mulf %185, %184 : vector<2x32xf32>
    %187 = math.tanh %186 : vector<2x32xf32>
    %cst_60 = arith.constant 1.000000e+00 : f32
    %188 = vector.broadcast %cst_60 : f32 to vector<2x32xf32>
    %189 = arith.addf %187, %188 : vector<2x32xf32>
    %cst_61 = arith.constant 5.000000e-01 : f32
    %190 = vector.broadcast %cst_61 : f32 to vector<2x32xf32>
    %191 = arith.mulf %190, %189 : vector<2x32xf32>
    %192 = vector.extract_strided_slice %175 {offsets = [0, 64], sizes = [2, 32], strides = [1, 1]} : vector<2x128xf32> to vector<2x32xf32>
    %193 = math.tanh %192 : vector<2x32xf32>
    %194 = vector.extract_strided_slice %175 {offsets = [0, 96], sizes = [2, 32], strides = [1, 1]} : vector<2x128xf32> to vector<2x32xf32>
    %cst_62 = arith.constant 5.000000e-01 : f32
    %195 = vector.broadcast %cst_62 : f32 to vector<2x32xf32>
    %196 = arith.mulf %195, %194 : vector<2x32xf32>
    %197 = math.tanh %196 : vector<2x32xf32>
    %cst_63 = arith.constant 1.000000e+00 : f32
    %198 = vector.broadcast %cst_63 : f32 to vector<2x32xf32>
    %199 = arith.addf %197, %198 : vector<2x32xf32>
    %cst_64 = arith.constant 5.000000e-01 : f32
    %200 = vector.broadcast %cst_64 : f32 to vector<2x32xf32>
    %201 = arith.mulf %200, %199 : vector<2x32xf32>
    %202 = arith.mulf %191, %166 : vector<2x32xf32>
    %203 = arith.mulf %183, %193 : vector<2x32xf32>
    %204 = arith.addf %202, %203 : vector<2x32xf32>
    %205 = math.tanh %204 : vector<2x32xf32>
    %206 = arith.mulf %201, %205 : vector<2x32xf32>
    %207 = vector.extract_strided_slice %7 {offsets = [0, 5, 0], sizes = [2, 1, 128], strides = [1, 1, 1]} : vector<2x8x128xf32> to vector<2x1x128xf32>
    %208 = vector.shape_cast %207 : vector<2x1x128xf32> to vector<2x128xf32>
    %209 = vector.extract_strided_slice %13 {offsets = [0, 2, 0], sizes = [2, 1, 128], strides = [1, 1, 1]} : vector<2x8x128xf32> to vector<2x1x128xf32>
    %210 = vector.shape_cast %209 : vector<2x1x128xf32> to vector<2x128xf32>
    %211 = arith.addf %208, %210 : vector<2x128xf32>
    %cst_65 = arith.constant dense<0.000000e+00> : vector<2x128xf32>
    %212 = tpu.matmul %206, %14, %cst_65 {dimension_numbers = #tpu.dot_dimension_numbers<[1], [0], [0], [1], [0, 0, 1, 1], [], []>} : vector<2x32xf32>, vector<32x128xf32>, vector<2x128xf32> -> vector<2x128xf32>
    %213 = arith.addf %211, %212 : vector<2x128xf32>
    %214 = vector.extract_strided_slice %213 {offsets = [0, 0], sizes = [2, 32], strides = [1, 1]} : vector<2x128xf32> to vector<2x32xf32>
    %cst_66 = arith.constant 5.000000e-01 : f32
    %215 = vector.broadcast %cst_66 : f32 to vector<2x32xf32>
    %216 = arith.mulf %215, %214 : vector<2x32xf32>
    %217 = math.tanh %216 : vector<2x32xf32>
    %cst_67 = arith.constant 1.000000e+00 : f32
    %218 = vector.broadcast %cst_67 : f32 to vector<2x32xf32>
    %219 = arith.addf %217, %218 : vector<2x32xf32>
    %cst_68 = arith.constant 5.000000e-01 : f32
    %220 = vector.broadcast %cst_68 : f32 to vector<2x32xf32>
    %221 = arith.mulf %220, %219 : vector<2x32xf32>
    %222 = vector.extract_strided_slice %213 {offsets = [0, 32], sizes = [2, 32], strides = [1, 1]} : vector<2x128xf32> to vector<2x32xf32>
    %cst_69 = arith.constant 5.000000e-01 : f32
    %223 = vector.broadcast %cst_69 : f32 to vector<2x32xf32>
    %224 = arith.mulf %223, %222 : vector<2x32xf32>
    %225 = math.tanh %224 : vector<2x32xf32>
    %cst_70 = arith.constant 1.000000e+00 : f32
    %226 = vector.broadcast %cst_70 : f32 to vector<2x32xf32>
    %227 = arith.addf %225, %226 : vector<2x32xf32>
    %cst_71 = arith.constant 5.000000e-01 : f32
    %228 = vector.broadcast %cst_71 : f32 to vector<2x32xf32>
    %229 = arith.mulf %228, %227 : vector<2x32xf32>
    %230 = vector.extract_strided_slice %213 {offsets = [0, 64], sizes = [2, 32], strides = [1, 1]} : vector<2x128xf32> to vector<2x32xf32>
    %231 = math.tanh %230 : vector<2x32xf32>
    %232 = vector.extract_strided_slice %213 {offsets = [0, 96], sizes = [2, 32], strides = [1, 1]} : vector<2x128xf32> to vector<2x32xf32>
    %cst_72 = arith.constant 5.000000e-01 : f32
    %233 = vector.broadcast %cst_72 : f32 to vector<2x32xf32>
    %234 = arith.mulf %233, %232 : vector<2x32xf32>
    %235 = math.tanh %234 : vector<2x32xf32>
    %cst_73 = arith.constant 1.000000e+00 : f32
    %236 = vector.broadcast %cst_73 : f32 to vector<2x32xf32>
    %237 = arith.addf %235, %236 : vector<2x32xf32>
    %cst_74 = arith.constant 5.000000e-01 : f32
    %238 = vector.broadcast %cst_74 : f32 to vector<2x32xf32>
    %239 = arith.mulf %238, %237 : vector<2x32xf32>
    %240 = arith.mulf %229, %204 : vector<2x32xf32>
    %241 = arith.mulf %221, %231 : vector<2x32xf32>
    %242 = arith.addf %240, %241 : vector<2x32xf32>
    %243 = math.tanh %242 : vector<2x32xf32>
    %244 = arith.mulf %239, %243 : vector<2x32xf32>
    %245 = vector.extract_strided_slice %7 {offsets = [0, 6, 0], sizes = [2, 1, 128], strides = [1, 1, 1]} : vector<2x8x128xf32> to vector<2x1x128xf32>
    %246 = vector.shape_cast %245 : vector<2x1x128xf32> to vector<2x128xf32>
    %247 = vector.extract_strided_slice %13 {offsets = [0, 1, 0], sizes = [2, 1, 128], strides = [1, 1, 1]} : vector<2x8x128xf32> to vector<2x1x128xf32>
    %248 = vector.shape_cast %247 : vector<2x1x128xf32> to vector<2x128xf32>
    %249 = arith.addf %246, %248 : vector<2x128xf32>
    %cst_75 = arith.constant dense<0.000000e+00> : vector<2x128xf32>
    %250 = tpu.matmul %244, %14, %cst_75 {dimension_numbers = #tpu.dot_dimension_numbers<[1], [0], [0], [1], [0, 0, 1, 1], [], []>} : vector<2x32xf32>, vector<32x128xf32>, vector<2x128xf32> -> vector<2x128xf32>
    %251 = arith.addf %249, %250 : vector<2x128xf32>
    %252 = vector.extract_strided_slice %251 {offsets = [0, 0], sizes = [2, 32], strides = [1, 1]} : vector<2x128xf32> to vector<2x32xf32>
    %cst_76 = arith.constant 5.000000e-01 : f32
    %253 = vector.broadcast %cst_76 : f32 to vector<2x32xf32>
    %254 = arith.mulf %253, %252 : vector<2x32xf32>
    %255 = math.tanh %254 : vector<2x32xf32>
    %cst_77 = arith.constant 1.000000e+00 : f32
    %256 = vector.broadcast %cst_77 : f32 to vector<2x32xf32>
    %257 = arith.addf %255, %256 : vector<2x32xf32>
    %cst_78 = arith.constant 5.000000e-01 : f32
    %258 = vector.broadcast %cst_78 : f32 to vector<2x32xf32>
    %259 = arith.mulf %258, %257 : vector<2x32xf32>
    %260 = vector.extract_strided_slice %251 {offsets = [0, 32], sizes = [2, 32], strides = [1, 1]} : vector<2x128xf32> to vector<2x32xf32>
    %cst_79 = arith.constant 5.000000e-01 : f32
    %261 = vector.broadcast %cst_79 : f32 to vector<2x32xf32>
    %262 = arith.mulf %261, %260 : vector<2x32xf32>
    %263 = math.tanh %262 : vector<2x32xf32>
    %cst_80 = arith.constant 1.000000e+00 : f32
    %264 = vector.broadcast %cst_80 : f32 to vector<2x32xf32>
    %265 = arith.addf %263, %264 : vector<2x32xf32>
    %cst_81 = arith.constant 5.000000e-01 : f32
    %266 = vector.broadcast %cst_81 : f32 to vector<2x32xf32>
    %267 = arith.mulf %266, %265 : vector<2x32xf32>
    %268 = vector.extract_strided_slice %251 {offsets = [0, 64], sizes = [2, 32], strides = [1, 1]} : vector<2x128xf32> to vector<2x32xf32>
    %269 = math.tanh %268 : vector<2x32xf32>
    %270 = vector.extract_strided_slice %251 {offsets = [0, 96], sizes = [2, 32], strides = [1, 1]} : vector<2x128xf32> to vector<2x32xf32>
    %cst_82 = arith.constant 5.000000e-01 : f32
    %271 = vector.broadcast %cst_82 : f32 to vector<2x32xf32>
    %272 = arith.mulf %271, %270 : vector<2x32xf32>
    %273 = math.tanh %272 : vector<2x32xf32>
    %cst_83 = arith.constant 1.000000e+00 : f32
    %274 = vector.broadcast %cst_83 : f32 to vector<2x32xf32>
    %275 = arith.addf %273, %274 : vector<2x32xf32>
    %cst_84 = arith.constant 5.000000e-01 : f32
    %276 = vector.broadcast %cst_84 : f32 to vector<2x32xf32>
    %277 = arith.mulf %276, %275 : vector<2x32xf32>
    %278 = arith.mulf %267, %242 : vector<2x32xf32>
    %279 = arith.mulf %259, %269 : vector<2x32xf32>
    %280 = arith.addf %278, %279 : vector<2x32xf32>
    %281 = math.tanh %280 : vector<2x32xf32>
    %282 = arith.mulf %277, %281 : vector<2x32xf32>
    %283 = vector.extract_strided_slice %7 {offsets = [0, 7, 0], sizes = [2, 1, 128], strides = [1, 1, 1]} : vector<2x8x128xf32> to vector<2x1x128xf32>
    %284 = vector.shape_cast %283 : vector<2x1x128xf32> to vector<2x128xf32>
    %285 = vector.extract_strided_slice %13 {offsets = [0, 0, 0], sizes = [2, 1, 128], strides = [1, 1, 1]} : vector<2x8x128xf32> to vector<2x1x128xf32>
    %286 = vector.shape_cast %285 : vector<2x1x128xf32> to vector<2x128xf32>
    %287 = arith.addf %284, %286 : vector<2x128xf32>
    %cst_85 = arith.constant dense<0.000000e+00> : vector<2x128xf32>
    %288 = tpu.matmul %282, %14, %cst_85 {dimension_numbers = #tpu.dot_dimension_numbers<[1], [0], [0], [1], [0, 0, 1, 1], [], []>} : vector<2x32xf32>, vector<32x128xf32>, vector<2x128xf32> -> vector<2x128xf32>
    %289 = arith.addf %287, %288 : vector<2x128xf32>
    %290 = vector.extract_strided_slice %289 {offsets = [0, 0], sizes = [2, 32], strides = [1, 1]} : vector<2x128xf32> to vector<2x32xf32>
    %cst_86 = arith.constant 5.000000e-01 : f32
    %291 = vector.broadcast %cst_86 : f32 to vector<2x32xf32>
    %292 = arith.mulf %291, %290 : vector<2x32xf32>
    %293 = math.tanh %292 : vector<2x32xf32>
    %cst_87 = arith.constant 1.000000e+00 : f32
    %294 = vector.broadcast %cst_87 : f32 to vector<2x32xf32>
    %295 = arith.addf %293, %294 : vector<2x32xf32>
    %cst_88 = arith.constant 5.000000e-01 : f32
    %296 = vector.broadcast %cst_88 : f32 to vector<2x32xf32>
    %297 = arith.mulf %296, %295 : vector<2x32xf32>
    %298 = vector.extract_strided_slice %289 {offsets = [0, 32], sizes = [2, 32], strides = [1, 1]} : vector<2x128xf32> to vector<2x32xf32>
    %cst_89 = arith.constant 5.000000e-01 : f32
    %299 = vector.broadcast %cst_89 : f32 to vector<2x32xf32>
    %300 = arith.mulf %299, %298 : vector<2x32xf32>
    %301 = math.tanh %300 : vector<2x32xf32>
    %cst_90 = arith.constant 1.000000e+00 : f32
    %302 = vector.broadcast %cst_90 : f32 to vector<2x32xf32>
    %303 = arith.addf %301, %302 : vector<2x32xf32>
    %cst_91 = arith.constant 5.000000e-01 : f32
    %304 = vector.broadcast %cst_91 : f32 to vector<2x32xf32>
    %305 = arith.mulf %304, %303 : vector<2x32xf32>
    %306 = vector.extract_strided_slice %289 {offsets = [0, 64], sizes = [2, 32], strides = [1, 1]} : vector<2x128xf32> to vector<2x32xf32>
    %307 = math.tanh %306 : vector<2x32xf32>
    %308 = vector.extract_strided_slice %289 {offsets = [0, 96], sizes = [2, 32], strides = [1, 1]} : vector<2x128xf32> to vector<2x32xf32>
    %cst_92 = arith.constant 5.000000e-01 : f32
    %309 = vector.broadcast %cst_92 : f32 to vector<2x32xf32>
    %310 = arith.mulf %309, %308 : vector<2x32xf32>
    %311 = math.tanh %310 : vector<2x32xf32>
    %cst_93 = arith.constant 1.000000e+00 : f32
    %312 = vector.broadcast %cst_93 : f32 to vector<2x32xf32>
    %313 = arith.addf %311, %312 : vector<2x32xf32>
    %cst_94 = arith.constant 5.000000e-01 : f32
    %314 = vector.broadcast %cst_94 : f32 to vector<2x32xf32>
    %315 = arith.mulf %314, %313 : vector<2x32xf32>
    %316 = arith.mulf %305, %280 : vector<2x32xf32>
    %317 = arith.mulf %297, %307 : vector<2x32xf32>
    %318 = arith.addf %316, %317 : vector<2x32xf32>
    %319 = math.tanh %318 : vector<2x32xf32>
    %320 = arith.mulf %315, %319 : vector<2x32xf32>
    %321 = tpu.iota {dimensions = array<i32: 1>} : vector<2x32xi32>
    %c16_i32 = arith.constant 16 : i32
    %322 = vector.broadcast %c16_i32 : i32 to vector<2x32xi32>
    %323 = arith.cmpi slt, %321, %322 : vector<2x32xi32>
    %324 = arith.select %323, %54, %320 : vector<2x32xi1>, vector<2x32xf32>
    %325 = arith.select %323, %92, %282 : vector<2x32xi1>, vector<2x32xf32>
    %326 = arith.select %323, %130, %244 : vector<2x32xi1>, vector<2x32xf32>
    %327 = arith.select %323, %168, %206 : vector<2x32xi1>, vector<2x32xf32>
    %328 = arith.select %323, %206, %168 : vector<2x32xi1>, vector<2x32xf32>
    %329 = arith.select %323, %244, %130 : vector<2x32xi1>, vector<2x32xf32>
    %330 = arith.select %323, %282, %92 : vector<2x32xi1>, vector<2x32xf32>
    %331 = arith.select %323, %320, %54 : vector<2x32xi1>, vector<2x32xf32>
    %332 = vector.shape_cast %324 : vector<2x32xf32> to vector<2x1x32xf32>
    %333 = vector.shape_cast %325 : vector<2x32xf32> to vector<2x1x32xf32>
    %334 = vector.shape_cast %326 : vector<2x32xf32> to vector<2x1x32xf32>
    %335 = vector.shape_cast %327 : vector<2x32xf32> to vector<2x1x32xf32>
    %336 = vector.shape_cast %328 : vector<2x32xf32> to vector<2x1x32xf32>
    %337 = vector.shape_cast %329 : vector<2x32xf32> to vector<2x1x32xf32>
    %338 = vector.shape_cast %330 : vector<2x32xf32> to vector<2x1x32xf32>
    %339 = vector.shape_cast %331 : vector<2x32xf32> to vector<2x1x32xf32>
    %340 = tpu.concatenate %332, %333, %334, %335, %336, %337, %338, %339 in 1 : vector<2x1x32xf32>, vector<2x1x32xf32>, vector<2x1x32xf32>, vector<2x1x32xf32>, vector<2x1x32xf32>, vector<2x1x32xf32>, vector<2x1x32xf32>, vector<2x1x32xf32> -> vector<2x8x32xf32>
    %341 = vector.shape_cast %340 : vector<2x8x32xf32> to vector<16x32xf32>
    %c0_95 = arith.constant 0 : index
    %c0_96 = arith.constant 0 : index
    %342 = vector.load %arg8[%c0_95, %c0_96] : memref<32x32xf32, #tpu.memory_space<vmem>>, vector<32x32xf32>
    %cst_97 = arith.constant dense<0.000000e+00> : vector<16x32xf32>
    %343 = tpu.matmul %341, %342, %cst_97 {dimension_numbers = #tpu.dot_dimension_numbers<[1], [0], [0], [1], [0, 0, 1, 1], [], []>} : vector<16x32xf32>, vector<32x32xf32>, vector<16x32xf32> -> vector<16x32xf32>
    %c0_98 = arith.constant 0 : index
    %c0_99 = arith.constant 0 : index
    %344 = vector.load %arg9[%c0_98, %c0_99] : memref<1x32xf32, #tpu.memory_space<vmem>>, vector<1x32xf32>
    %345 = vector.broadcast %344 : vector<1x32xf32> to vector<16x32xf32>
    %346 = arith.addf %343, %345 : vector<16x32xf32>
    %347 = math.tanh %346 : vector<16x32xf32>
    %348 = vector.shape_cast %347 : vector<16x32xf32> to vector<2x8x32xf32>
    %c0_100 = arith.constant 0 : index
    %c0_101 = arith.constant 0 : index
    %349 = vector.load %arg10[%c0_100, %c0_101] : memref<1x32xf32, #tpu.memory_space<vmem>>, vector<1x32xf32>
    %350 = vector.shape_cast %349 : vector<1x32xf32> to vector<1x1x32xf32>
    %351 = vector.shape_cast %350 : vector<1x1x32xf32> to vector<1x1x32xf32>
    %352 = vector.broadcast %351 : vector<1x1x32xf32> to vector<2x1x32xf32>
    "tpu.trace_start"() <{level = 10 : i32, message = "bkh,bsh->bks"}> : () -> ()
    %cst_102 = arith.constant dense<0.000000e+00> : vector<2x1x8xf32>
    %353 = tpu.matmul %352, %348, %cst_102 {dimension_numbers = #tpu.dot_dimension_numbers<[2], [2], [1], [1], [0, 0, 0, 1, 1, 1], [0], [0]>} : vector<2x1x32xf32>, vector<2x8x32xf32>, vector<2x1x8xf32> -> vector<2x1x8xf32>
    "tpu.trace_stop"() : () -> ()
    %c0_103 = arith.constant 0 : index
    %c0_104 = arith.constant 0 : index
    %c0_105 = arith.constant 0 : index
    %354 = vector.load %arg2[%c0_103, %c0_104, %c0_105] : memref<2x1x8xi32, #tpu.memory_space<vmem>>, vector<2x1x8xi32>
    %c0_i32 = arith.constant 0 : i32
    %355 = vector.broadcast %c0_i32 : i32 to vector<2x1x8xi32>
    %356 = arith.cmpi ne, %354, %355 : vector<2x1x8xi32>
    %cst_106 = arith.constant -1.000000e-32 : f32
    %357 = vector.broadcast %cst_106 : f32 to vector<2x1x8xf32>
    %358 = arith.select %356, %353, %357 : vector<2x1x8xi1>, vector<2x1x8xf32>
    %cst_107 = arith.constant dense<0xFF800000> : vector<2x1xf32>
    %359 = vector.multi_reduction <maximumf>, %358, %cst_107 [2] : vector<2x1x8xf32> to vector<2x1xf32>
    %360 = vector.shape_cast %359 : vector<2x1xf32> to vector<2x1x1xf32>
    %361 = vector.broadcast %360 : vector<2x1x1xf32> to vector<2x1x8xf32>
    %362 = arith.subf %358, %361 : vector<2x1x8xf32>
    %363 = math.exp %362 : vector<2x1x8xf32>
    %cst_108 = arith.constant dense<0.000000e+00> : vector<2x1xf32>
    %364 = vector.multi_reduction <add>, %363, %cst_108 [2] : vector<2x1x8xf32> to vector<2x1xf32>
    %365 = vector.shape_cast %364 : vector<2x1xf32> to vector<2x1x1xf32>
    %366 = tpu.reciprocal %365 {approx = true} : vector<2x1x1xf32> -> vector<2x1x1xf32>
    %367 = vector.broadcast %366 : vector<2x1x1xf32> to vector<2x1x8xf32>
    %368 = arith.mulf %363, %367 : vector<2x1x8xf32>
    "tpu.trace_start"() <{level = 10 : i32, message = "bks,bsh->bkh"}> : () -> ()
    %cst_109 = arith.constant dense<0.000000e+00> : vector<2x1x32xf32>
    %369 = tpu.matmul %368, %340, %cst_109 {dimension_numbers = #tpu.dot_dimension_numbers<[2], [1], [1], [2], [0, 0, 0, 1, 1, 2], [0], [0]>} : vector<2x1x8xf32>, vector<2x8x32xf32>, vector<2x1x32xf32> -> vector<2x1x32xf32>
    "tpu.trace_stop"() : () -> ()
    %c0_110 = arith.constant 0 : index
    %c0_111 = arith.constant 0 : index
    %c0_112 = arith.constant 0 : index
    %370 = vector.load %arg11[%c0_110, %c0_111, %c0_112] : memref<2x8x32xf32, #tpu.memory_space<vmem>>, vector<2x8x32xf32>
    tpu.vector_store %arg11[%c0_110, %c0_111, %c0_112], %340 {strides = array<i32>} : memref<2x8x32xf32, #tpu.memory_space<vmem>>, vector<2x8x32xf32>,
    %c0_113 = arith.constant 0 : index
    %c0_114 = arith.constant 0 : index
    %c0_115 = arith.constant 0 : index
    %371 = vector.load %arg12[%c0_113, %c0_114, %c0_115] : memref<2x1x32xf32, #tpu.memory_space<vmem>>, vector<2x1x32xf32>
    tpu.vector_store %arg12[%c0_113, %c0_114, %c0_115], %369 {strides = array<i32>} : memref<2x1x32xf32, #tpu.memory_space<vmem>>, vector<2x1x32xf32>,
    return
  }
  func.func @transform_0(%arg0: i32) -> (i32, i32, i32) {
    %c0_i32 = arith.constant 0 : i32
    %c0_i32_0 = arith.constant 0 : i32
    %c0_i32_1 = arith.constant 0 : i32
    return %arg0, %c0_i32, %c0_i32_0 : i32, i32, i32
  }
  func.func @transform_1(%arg0: i32) -> (i32, i32, i32) {
    %c0_i32 = arith.constant 0 : i32
    %c0_i32_0 = arith.constant 0 : i32
    %c0_i32_1 = arith.constant 0 : i32
    return %arg0, %c0_i32, %c0_i32_0 : i32, i32, i32
  }
  func.func @transform_2(%arg0: i32) -> (i32, i32) {
    %c0_i32 = arith.constant 0 : i32
    %c0_i32_0 = arith.constant 0 : i32
    %c0_i32_1 = arith.constant 0 : i32
    return %c0_i32, %c0_i32_0 : i32, i32
  }
  func.func @transform_3(%arg0: i32) -> (i32, i32) {
    %c0_i32 = arith.constant 0 : i32
    %c0_i32_0 = arith.constant 0 : i32
    %c0_i32_1 = arith.constant 0 : i32
    return %c0_i32, %c0_i32_0 : i32, i32
  }
  func.func @transform_4(%arg0: i32) -> (i32, i32) {
    %c0_i32 = arith.constant 0 : i32
    %c0_i32_0 = arith.constant 0 : i32
    %c0_i32_1 = arith.constant 0 : i32
    return %c0_i32, %c0_i32_0 : i32, i32
  }
  func.func @transform_5(%arg0: i32) -> (i32, i32) {
    %c0_i32 = arith.constant 0 : i32
    %c0_i32_0 = arith.constant 0 : i32
    %c0_i32_1 = arith.constant 0 : i32
    return %c0_i32, %c0_i32_0 : i32, i32
  }
  func.func @transform_6(%arg0: i32) -> (i32, i32) {
    %c0_i32 = arith.constant 0 : i32
    %c0_i32_0 = arith.constant 0 : i32
    %c0_i32_1 = arith.constant 0 : i32
    return %c0_i32, %c0_i32_0 : i32, i32
  }
  func.func @transform_7(%arg0: i32) -> (i32, i32) {
    %c0_i32 = arith.constant 0 : i32
    %c0_i32_0 = arith.constant 0 : i32
    %c0_i32_1 = arith.constant 0 : i32
    return %c0_i32, %c0_i32_0 : i32, i32
  }
  func.func @transform_8(%arg0: i32) -> (i32, i32) {
    %c0_i32 = arith.constant 0 : i32
    %c0_i32_0 = arith.constant 0 : i32
    %c0_i32_1 = arith.constant 0 : i32
    return %c0_i32, %c0_i32_0 : i32, i32
  }
  func.func @transform_9(%arg0: i32) -> (i32, i32) {
    %c0_i32 = arith.constant 0 : i32
    %c0_i32_0 = arith.constant 0 : i32
    %c0_i32_1 = arith.constant 0 : i32
    return %c0_i32, %c0_i32_0 : i32, i32
  }
  func.func @transform_10(%arg0: i32) -> (i32, i32, i32) {
    %c0_i32 = arith.constant 0 : i32
    %c0_i32_0 = arith.constant 0 : i32
    %c0_i32_1 = arith.constant 0 : i32
    return %arg0, %c0_i32, %c0_i32_0 : i32, i32, i32
  }
  func.func @transform_11(%arg0: i32) -> (i32, i32, i32) {
    %c0_i32 = arith.constant 0 : i32
    %c0_i32_0 = arith.constant 0 : i32
    %c0_i32_1 = arith.constant 0 : i32
    return %arg0, %c0_i32, %c0_i32_0 : i32, i32, i32
  }
}

</mosaic_0001>

<llo_original>
// kernel: tpu_custom_call.1
$region0: #{tpu_custom_call.1}
  #allocation0 [shape = 'u32[]', space=smem, size = 0x4, offset = 0x4, fixed_abs, tag = 'smem constant byte address 0x4 - core index']
  #allocation1 [shape = 'u32[144,128]{1,0:T(1,128)}', space=vmem, size = 0x12000, scoped, tag = 'internal scratch']
  %s0 = inlined_call_operand.hbm [shape: f32[4,8,32], index: 0, kind: input, shape index: {}]
  %s1 = inlined_call_operand.hbm [shape: s32[4,1,8], index: 1, kind: input, shape index: {}]
  %s2 = inlined_call_operand.hbm [shape: f32[32,128], index: 2, kind: input, shape index: {}]
  %s3 = inlined_call_operand.vmem [shape: f32[1,128], index: 3, kind: input, shape index: {}]
  %s4 = inlined_call_operand.hbm [shape: f32[32,128], index: 4, kind: input, shape index: {}]
  %s5 = inlined_call_operand.vmem [shape: f32[1,128], index: 5, kind: input, shape index: {}]
  %s6 = inlined_call_operand.hbm [shape: f32[32,128], index: 6, kind: input, shape index: {}]
  %s7 = inlined_call_operand.hbm [shape: f32[32,32], index: 7, kind: input, shape index: {}]
  %s8 = inlined_call_operand.vmem [shape: f32[1,32], index: 8, kind: input, shape index: {}]
  %s9 = inlined_call_operand.vmem [shape: f32[1,32], index: 9, kind: input, shape index: {}]
  %s10 = inlined_call_operand.hbm [shape: f32[4,8,32], index: 10, kind: output, shape index: {0}]
  %s11 = inlined_call_operand.hbm [shape: f32[4,1,32], index: 11, kind: output, shape index: {1}]
  %12 = xla_tuple %s10, %s11
  %s13 = sld [smem:[#allocation0]]
  $region105: #{tpu_custom_call.1} parent=0
    _
  %s15 = ssub.s32 1, %s13
  %s16 = scalar_select 0, %s15, %s13
  $region1: #{tpu_custom_call.1} parent=0
    #allocation2 [shape = 'u8[16384]{0}', space=vmem, size = 0x4000, scoped, tag = 'input window, operand 0']
    #allocation3 [shape = 's32[2]{0}', space=sflag, size = 0x8, scoped, tag = 'scoped memory for tpu_custom_call.1']
    #allocation4 [shape = 's32[2]{0}', space=sflag, size = 0x8, scoped, tag = 'scoped memory for tpu_custom_call.1']
    #allocation5 [shape = 'u8[2048]{0}', space=vmem, size = 0x800, scoped, tag = 'input window, operand 1']
    #allocation6 [shape = 's32[2]{0}', space=sflag, size = 0x8, scoped, tag = 'scoped memory for tpu_custom_call.1']
    #allocation7 [shape = 'u8[16384]{0}', space=vmem, size = 0x4000, scoped, tag = 'input window, operand 2, single buffered']
    #allocation8 [shape = 'u8[16384]{0}', space=vmem, size = 0x4000, scoped, tag = 'input window, operand 4, single buffered']
    #allocation9 [shape = 's32[1]{0}', space=sflag, size = 0x4, scoped, tag = 'scoped memory for tpu_custom_call.1']
    #allocation10 [shape = 'u8[16384]{0}', space=vmem, size = 0x4000, scoped, tag = 'input window, operand 6, single buffered']
    #allocation11 [shape = 'u8[16384]{0}', space=vmem, size = 0x4000, scoped, tag = 'input window, operand 7, single buffered']
    #allocation12 [shape = 's32[1]{0}', space=sflag, size = 0x4, scoped, tag = 'scoped memory for tpu_custom_call.1']
    #allocation13 [shape = 'u8[16384]{0}', space=vmem, size = 0x4000, scoped, tag = 'output window, operand 0']
    #allocation14 [shape = 'u8[2048]{0}', space=vmem, size = 0x800, scoped, tag = 'output window, operand 1']
    #allocation15 [shape = 's32[2]{0}', space=sflag, size = 0x8, scoped, tag = 'scoped memory for tpu_custom_call.1']
    %17 = vsyncpa [#allocation3], 0
    %s18 = scalar_lea.sflag [#allocation3], 1
    %19 = vsyncpa %s18, 0
    %20 = vsyncpa [#allocation6], 0
    %s21 = scalar_lea.sflag [#allocation6], 1
    %22 = vsyncpa %s21, 0
    %23 = vsyncpa [#allocation9], 0
    %24 = vsyncpa [#allocation12], 0
    %25 = vsyncpa [#allocation4], 0
    %s26 = scalar_lea.sflag [#allocation4], 1
    %27 = vsyncpa %s26, 0
    %28 = vsyncpa [#allocation15], 0
    %s29 = scalar_lea.sflag [#allocation15], 1
    %30 = vsyncpa %s29, 0
    loop: start=0, step=1, limit=4
    $region2: #{tpu_custom_call.1} parent=1 // loop_pre_header
      _
    $region3: #{tpu_custom_call.1} parent=1 // loop_header
      %s32 = sphi 0, %s36
      %p33 = scmp.ge.s32.totalorder %s32, 4
      %s42 = sphi 0, %s44
      %s45 = sphi 0, %s42
      %s46 = sphi 0, %s45
      %s62 = sphi 0, %s46
      %s68 = sphi 0, %s70
      %s71 = sphi 0, %s68
      %s72 = sphi 0, %s71
      %s88 = sphi 0, %s72
      %s92 = sphi 0, %s92
      %s94 = sphi 0, %s92
      %s95 = sphi 0, %s94
      %s109 = sphi 0, %s95
      %s113 = sphi 0, %s113
      %s115 = sphi 0, %s113
      %s116 = sphi 0, %s115
      %s130 = sphi 0, %s116
      %s134 = sphi 0, %s134
      %s136 = sphi 0, %s134
      %s137 = sphi 0, %s136
      %s151 = sphi 0, %s137
      %s155 = sphi 0, %s155
      %s157 = sphi 0, %s155
      %s158 = sphi 0, %s157
      %s172 = sphi 0, %s158
      %s176 = sphi 0, %s176
      %s178 = sphi 0, %s176
      %s179 = sphi 0, %s178
      %s193 = sphi 0, %s179
      %s197 = sphi 0, %s197
      %s199 = sphi 0, %s197
      %s200 = sphi 0, %s199
      %s214 = sphi 0, %s200
      %s218 = sphi 0, %s218
      %s220 = sphi 0, %s218
      %s221 = sphi 0, %s220
      %s235 = sphi 0, %s221
      %s239 = sphi 0, %s239
      %s241 = sphi 0, %s239
      %s242 = sphi 0, %s241
      %s256 = sphi 0, %s242
      %s262 = sphi 0, %s264
      %s265 = sphi 0, %s262
      %s266 = sphi 0, %s265
      %s282 = sphi 0, %s266
      %s288 = sphi 0, %s290
      %s291 = sphi 0, %s288
      %s292 = sphi 0, %s291
      %s308 = sphi 0, %s292
    $region4: #{tpu_custom_call.1} parent=1 // loop_header_branch
      %35 = sbr.rel (%p33) target = $region8
    $region5: #{tpu_custom_call.1} parent=1 // loop_body
      %s37 = ssub.s32 %s32, 1
      %s38 = ssub.s32 %s32, 2
      %s39 = sadd.s32 %s32, 1
      %s40 = ssub.s32 %s32, %s39
      %p41 = scmp.eq.s32.totalorder %s40, 0
      %s43 = sadd.s32 %s42, 1
      %s44 = scalar_select %p41, %s42, %s43
      %p47 = pneg %p41
      %p48 = scmp.eq.s32.totalorder %s32, 1
      %p49 = por %p47, %p48
      %p50 = scmp.ne.s32.totalorder %s42, %s45
      %p51 = scmp.eq.s32.totalorder %s32, 0
      %p52 = por %p50, %p51
      %p53 = scmp.ne.s32.totalorder %s42, %s45
      %p54 = scmp.eq.s32.totalorder %s37, 1
      %p55 = por %p53, %p54
      %p56 = scmp.ne.s32.totalorder %s45, %s46
      %p57 = scmp.eq.s32.totalorder %s37, 0
      %p58 = por %p56, %p57
      %p59 = scmp.ne.s32.totalorder %s45, %s46
      %p60 = scmp.eq.s32.totalorder %s38, 1
      %p61 = por %p59, %p60
      %p63 = scmp.ne.s32.totalorder %s46, %s62
      %p64 = scmp.eq.s32.totalorder %s38, 0
      %p65 = por %p63, %p64
      %s66 = ssub.s32 %s32, %s39
      %p67 = scmp.eq.s32.totalorder %s66, 0
      %s69 = sadd.s32 %s68, 1
      %s70 = scalar_select %p67, %s68, %s69
      %p73 = pneg %p67
      %p74 = scmp.eq.s32.totalorder %s32, 1
      %p75 = por %p73, %p74
      %p76 = scmp.ne.s32.totalorder %s68, %s71
      %p77 = scmp.eq.s32.totalorder %s32, 0
      %p78 = por %p76, %p77
      %p79 = scmp.ne.s32.totalorder %s68, %s71
      %p80 = scmp.eq.s32.totalorder %s37, 1
      %p81 = por %p79, %p80
      %p82 = scmp.ne.s32.totalorder %s71, %s72
      %p83 = scmp.eq.s32.totalorder %s37, 0
      %p84 = por %p82, %p83
      %p85 = scmp.ne.s32.totalorder %s71, %s72
      %p86 = scmp.eq.s32.totalorder %s38, 1
      %p87 = por %p85, %p86
      %p89 = scmp.ne.s32.totalorder %s72, %s88
      %p90 = scmp.eq.s32.totalorder %s38, 0
      %p91 = por %p89, %p90
      %s93 = sadd.s32 %s92, 1
      %p96 = scmp.eq.s32.totalorder %s32, 1
      %p97 = scmp.ne.s32.totalorder %s92, %s94
      %p98 = scmp.eq.s32.totalorder %s32, 0
      %p99 = por %p97, %p98
      %p100 = scmp.ne.s32.totalorder %s92, %s94
      %p101 = scmp.eq.s32.totalorder %s37, 1
      %p102 = por %p100, %p101
      %p103 = scmp.ne.s32.totalorder %s94, %s95
      %p104 = scmp.eq.s32.totalorder %s37, 0
      %p105 = por %p103, %p104
      %p106 = scmp.ne.s32.totalorder %s94, %s95
      %p107 = scmp.eq.s32.totalorder %s38, 1
      %p108 = por %p106, %p107
      %p110 = scmp.ne.s32.totalorder %s95, %s109
      %p111 = scmp.eq.s32.totalorder %s38, 0
      %p112 = por %p110, %p111
      %s114 = sadd.s32 %s113, 1
      %p117 = scmp.eq.s32.totalorder %s32, 1
      %p118 = scmp.ne.s32.totalorder %s113, %s115
      %p119 = scmp.eq.s32.totalorder %s32, 0
      %p120 = por %p118, %p119
      %p121 = scmp.ne.s32.totalorder %s113, %s115
      %p122 = scmp.eq.s32.totalorder %s37, 1
      %p123 = por %p121, %p122
      %p124 = scmp.ne.s32.totalorder %s115, %s116
      %p125 = scmp.eq.s32.totalorder %s37, 0
      %p126 = por %p124, %p125
      %p127 = scmp.ne.s32.totalorder %s115, %s116
      %p128 = scmp.eq.s32.totalorder %s38, 1
      %p129 = por %p127, %p128
      %p131 = scmp.ne.s32.totalorder %s116, %s130
      %p132 = scmp.eq.s32.totalorder %s38, 0
      %p133 = por %p131, %p132
      %s135 = sadd.s32 %s134, 1
      %p138 = scmp.eq.s32.totalorder %s32, 1
      %p139 = scmp.ne.s32.totalorder %s134, %s136
      %p140 = scmp.eq.s32.totalorder %s32, 0
      %p141 = por %p139, %p140
      %p142 = scmp.ne.s32.totalorder %s134, %s136
      %p143 = scmp.eq.s32.totalorder %s37, 1
      %p144 = por %p142, %p143
      %p145 = scmp.ne.s32.totalorder %s136, %s137
      %p146 = scmp.eq.s32.totalorder %s37, 0
      %p147 = por %p145, %p146
      %p148 = scmp.ne.s32.totalorder %s136, %s137
      %p149 = scmp.eq.s32.totalorder %s38, 1
      %p150 = por %p148, %p149
      %p152 = scmp.ne.s32.totalorder %s137, %s151
      %p153 = scmp.eq.s32.totalorder %s38, 0
      %p154 = por %p152, %p153
      %s156 = sadd.s32 %s155, 1
      %p159 = scmp.eq.s32.totalorder %s32, 1
      %p160 = scmp.ne.s32.totalorder %s155, %s157
      %p161 = scmp.eq.s32.totalorder %s32, 0
      %p162 = por %p160, %p161
      %p163 = scmp.ne.s32.totalorder %s155, %s157
      %p164 = scmp.eq.s32.totalorder %s37, 1
      %p165 = por %p163, %p164
      %p166 = scmp.ne.s32.totalorder %s157, %s158
      %p167 = scmp.eq.s32.totalorder %s37, 0
      %p168 = por %p166, %p167
      %p169 = scmp.ne.s32.totalorder %s157, %s158
      %p170 = scmp.eq.s32.totalorder %s38, 1
      %p171 = por %p169, %p170
      %p173 = scmp.ne.s32.totalorder %s158, %s172
      %p174 = scmp.eq.s32.totalorder %s38, 0
      %p175 = por %p173, %p174
      %s177 = sadd.s32 %s176, 1
      %p180 = scmp.eq.s32.totalorder %s32, 1
      %p181 = scmp.ne.s32.totalorder %s176, %s178
      %p182 = scmp.eq.s32.totalorder %s32, 0
      %p183 = por %p181, %p182
      %p184 = scmp.ne.s32.totalorder %s176, %s178
      %p185 = scmp.eq.s32.totalorder %s37, 1
      %p186 = por %p184, %p185
      %p187 = scmp.ne.s32.totalorder %s178, %s179
      %p188 = scmp.eq.s32.totalorder %s37, 0
      %p189 = por %p187, %p188
      %p190 = scmp.ne.s32.totalorder %s178, %s179
      %p191 = scmp.eq.s32.totalorder %s38, 1
      %p192 = por %p190, %p191
      %p194 = scmp.ne.s32.totalorder %s179, %s193
      %p195 = scmp.eq.s32.totalorder %s38, 0
      %p196 = por %p194, %p195
      %s198 = sadd.s32 %s197, 1
      %p201 = scmp.eq.s32.totalorder %s32, 1
      %p202 = scmp.ne.s32.totalorder %s197, %s199
      %p203 = scmp.eq.s32.totalorder %s32, 0
      %p204 = por %p202, %p203
      %p205 = scmp.ne.s32.totalorder %s197, %s199
      %p206 = scmp.eq.s32.totalorder %s37, 1
      %p207 = por %p205, %p206
      %p208 = scmp.ne.s32.totalorder %s199, %s200
      %p209 = scmp.eq.s32.totalorder %s37, 0
      %p210 = por %p208, %p209
      %p211 = scmp.ne.s32.totalorder %s199, %s200
      %p212 = scmp.eq.s32.totalorder %s38, 1
      %p213 = por %p211, %p212
      %p215 = scmp.ne.s32.totalorder %s200, %s214
      %p216 = scmp.eq.s32.totalorder %s38, 0
      %p217 = por %p215, %p216
      %s219 = sadd.s32 %s218, 1
      %p222 = scmp.eq.s32.totalorder %s32, 1
      %p223 = scmp.ne.s32.totalorder %s218, %s220
      %p224 = scmp.eq.s32.totalorder %s32, 0
      %p225 = por %p223, %p224
      %p226 = scmp.ne.s32.totalorder %s218, %s220
      %p227 = scmp.eq.s32.totalorder %s37, 1
      %p228 = por %p226, %p227
      %p229 = scmp.ne.s32.totalorder %s220, %s221
      %p230 = scmp.eq.s32.totalorder %s37, 0
      %p231 = por %p229, %p230
      %p232 = scmp.ne.s32.totalorder %s220, %s221
      %p233 = scmp.eq.s32.totalorder %s38, 1
      %p234 = por %p232, %p233
      %p236 = scmp.ne.s32.totalorder %s221, %s235
      %p237 = scmp.eq.s32.totalorder %s38, 0
      %p238 = por %p236, %p237
      %s240 = sadd.s32 %s239, 1
      %p243 = scmp.eq.s32.totalorder %s32, 1
      %p244 = scmp.ne.s32.totalorder %s239, %s241
      %p245 = scmp.eq.s32.totalorder %s32, 0
      %p246 = por %p244, %p245
      %p247 = scmp.ne.s32.totalorder %s239, %s241
      %p248 = scmp.eq.s32.totalorder %s37, 1
      %p249 = por %p247, %p248
      %p250 = scmp.ne.s32.totalorder %s241, %s242
      %p251 = scmp.eq.s32.totalorder %s37, 0
      %p252 = por %p250, %p251
      %p253 = scmp.ne.s32.totalorder %s241, %s242
      %p254 = scmp.eq.s32.totalorder %s38, 1
      %p255 = por %p253, %p254
      %p257 = scmp.ne.s32.totalorder %s242, %s256
      %p258 = scmp.eq.s32.totalorder %s38, 0
      %p259 = por %p257, %p258
      %s260 = ssub.s32 %s32, %s39
      %p261 = scmp.eq.s32.totalorder %s260, 0
      %s263 = sadd.s32 %s262, 1
      %s264 = scalar_select %p261, %s262, %s263
      %p267 = pneg %p261
      %p268 = scmp.eq.s32.totalorder %s32, 1
      %p269 = por %p267, %p268
      %p270 = scmp.ne.s32.totalorder %s262, %s265
      %p271 = scmp.eq.s32.totalorder %s32, 0
      %p272 = por %p270, %p271
      %p273 = scmp.ne.s32.totalorder %s262, %s265
      %p274 = scmp.eq.s32.totalorder %s37, 1
      %p275 = por %p273, %p274
      %p276 = scmp.ne.s32.totalorder %s265, %s266
      %p277 = scmp.eq.s32.totalorder %s37, 0
      %p278 = por %p276, %p277
      %p279 = scmp.ne.s32.totalorder %s265, %s266
      %p280 = scmp.eq.s32.totalorder %s38, 1
      %p281 = por %p279, %p280
      %p283 = scmp.ne.s32.totalorder %s266, %s282
      %p284 = scmp.eq.s32.totalorder %s38, 0
      %p285 = por %p283, %p284
      %s286 = ssub.s32 %s32, %s39
      %p287 = scmp.eq.s32.totalorder %s286, 0
      %s289 = sadd.s32 %s288, 1
      %s290 = scalar_select %p287, %s288, %s289
      %p293 = pneg %p287
      %p294 = scmp.eq.s32.totalorder %s32, 1
      %p295 = por %p293, %p294
      %p296 = scmp.ne.s32.totalorder %s288, %s291
      %p297 = scmp.eq.s32.totalorder %s32, 0
      %p298 = por %p296, %p297
      %p299 = scmp.ne.s32.totalorder %s288, %s291
      %p300 = scmp.eq.s32.totalorder %s37, 1
      %p301 = por %p299, %p300
      %p302 = scmp.ne.s32.totalorder %s291, %s292
      %p303 = scmp.eq.s32.totalorder %s37, 0
      %p304 = por %p302, %p303
      %p305 = scmp.ne.s32.totalorder %s291, %s292
      %p306 = scmp.eq.s32.totalorder %s38, 1
      %p307 = por %p305, %p306
      %p309 = scmp.ne.s32.totalorder %s292, %s308
      %p310 = scmp.eq.s32.totalorder %s38, 0
      %p311 = por %p309, %p310
      %p312 = scmp.le.s32.totalorder 1, %s32
      %p313 = scmp.lt.s32.totalorder %s32, 3
      %p314 = pnand %p312, %p313
      %p315 = pneg %p314
      // Predicated region
      $region9: #{tpu_custom_call.1} parent=5 // pred_check
        _
      $region10: #{tpu_custom_call.1} parent=5 // pred_check_branch
        %317 = sbr.rel (%p314) target = $region12
      $region11: #{tpu_custom_call.1} parent=5 // pred_region
        %s318 = ssub.s32 %s32, 1
        // Predicated region
        $region13: #{tpu_custom_call.1} parent=11 // pred_check
          %p319 = pneg %p105
        $region14: #{tpu_custom_call.1} parent=11 // pred_check_branch
          %321 = sbr.rel (%p319) target = $region16
        $region15: #{tpu_custom_call.1} parent=11 // pred_region
          %s323 = ssub.s32 512, 512
          %324 = vsyncadd [#allocation6], %s323
          %s325 = sshll.u32 [#allocation7], 4
          %s326 = int_to_ptr.vmem [resolvable:$true] %s325
          %331 = dma.hbm_to_vmem [thread:$0]  %s2, 512, %s326, [#allocation6], 128, 128, 8
        $region16: #{tpu_custom_call.1} parent=11 // pred_fallthru
          _
        // Predicated region
        $region17: #{tpu_custom_call.1} parent=11 // pred_check
          %p332 = pneg %p126
        $region18: #{tpu_custom_call.1} parent=11 // pred_check_branch
          %334 = sbr.rel (%p332) target = $region20
        $region19: #{tpu_custom_call.1} parent=11 // pred_region
          _
        $region20: #{tpu_custom_call.1} parent=11 // pred_fallthru
          _
        // Predicated region
        $region21: #{tpu_custom_call.1} parent=11 // pred_check
          %p335 = pneg %p147
        $region22: #{tpu_custom_call.1} parent=11 // pred_check_branch
          %337 = sbr.rel (%p335) target = $region24
        $region23: #{tpu_custom_call.1} parent=11 // pred_region
          %s339 = ssub.s32 512, 512
          %340 = vsyncadd [#allocation9], %s339
          %s341 = sshll.u32 [#allocation8], 4
          %s342 = int_to_ptr.vmem [resolvable:$true] %s341
          %347 = dma.hbm_to_vmem [thread:$0]  %s4, 512, %s342, [#allocation9], 128, 128, 8
        $region24: #{tpu_custom_call.1} parent=11 // pred_fallthru
          _
        // Predicated region
        $region25: #{tpu_custom_call.1} parent=11 // pred_check
          %p348 = pneg %p168
        $region26: #{tpu_custom_call.1} parent=11 // pred_check_branch
          %350 = sbr.rel (%p348) target = $region28
        $region27: #{tpu_custom_call.1} parent=11 // pred_region
          _
        $region28: #{tpu_custom_call.1} parent=11 // pred_fallthru
          _
        // Predicated region
        $region29: #{tpu_custom_call.1} parent=11 // pred_check
          %p351 = pneg %p189
        $region30: #{tpu_custom_call.1} parent=11 // pred_check_branch
          %353 = sbr.rel (%p351) target = $region32
        $region31: #{tpu_custom_call.1} parent=11 // pred_region
          %s355 = ssub.s32 512, 512
          %356 = vsyncadd [#allocation9], %s355
          %s357 = sshll.u32 [#allocation10], 4
          %s358 = int_to_ptr.vmem [resolvable:$true] %s357
          %363 = dma.hbm_to_vmem [thread:$0]  %s6, 512, %s358, [#allocation9], 128, 128, 8
        $region32: #{tpu_custom_call.1} parent=11 // pred_fallthru
          _
        // Predicated region
        $region33: #{tpu_custom_call.1} parent=11 // pred_check
          %p364 = pneg %p210
        $region34: #{tpu_custom_call.1} parent=11 // pred_check_branch
          %366 = sbr.rel (%p364) target = $region36
        $region35: #{tpu_custom_call.1} parent=11 // pred_region
          %s368 = ssub.s32 512, 512
          %369 = vsyncadd [#allocation12], %s368
          %s370 = sshll.u32 [#allocation11], 4
          %s371 = int_to_ptr.vmem [resolvable:$true] %s370
          %376 = dma.hbm_to_vmem [thread:$0]  %s7, 512, %s371, [#allocation12], 128, 128, 8
        $region36: #{tpu_custom_call.1} parent=11 // pred_fallthru
          _
        // Predicated region
        $region37: #{tpu_custom_call.1} parent=11 // pred_check
          %p377 = pneg %p231
        $region38: #{tpu_custom_call.1} parent=11 // pred_check_branch
          %379 = sbr.rel (%p377) target = $region40
        $region39: #{tpu_custom_call.1} parent=11 // pred_region
          _
        $region40: #{tpu_custom_call.1} parent=11 // pred_fallthru
          _
        // Predicated region
        $region41: #{tpu_custom_call.1} parent=11 // pred_check
          %p380 = pneg %p252
        $region42: #{tpu_custom_call.1} parent=11 // pred_check_branch
          %382 = sbr.rel (%p380) target = $region44
        $region43: #{tpu_custom_call.1} parent=11 // pred_region
          _
        $region44: #{tpu_custom_call.1} parent=11 // pred_fallthru
          _
      $region12: #{tpu_custom_call.1} parent=5 // pred_fallthru
        _
      %p383 = scmp.lt.s32.totalorder %s32, 2
      // Predicated region
      $region45: #{tpu_custom_call.1} parent=5 // pred_check
        %p384 = pneg %p383
      $region46: #{tpu_custom_call.1} parent=5 // pred_check_branch
        %386 = sbr.rel (%p384) target = $region48
      $region47: #{tpu_custom_call.1} parent=5 // pred_region
        // Predicated region
        $region49: #{tpu_custom_call.1} parent=47 // pred_check
          %p387 = pneg %p52
        $region50: #{tpu_custom_call.1} parent=47 // pred_check_branch
          %389 = sbr.rel (%p387) target = $region52
        $region51: #{tpu_custom_call.1} parent=47 // pred_region
          %s390 = sand.u32 %s42, 1
          %s391 = scalar_lea.sflag [#allocation3], %s390
          %s392 = sand.u32 %s42, 1
          %s393 = smul.addr %s392, 16
          %s394 = scalar_lea.vmem [#allocation2], %s393
          %s395 = smul.u32 2, %s32
          %s397 = ssub.s32 256, 256
          %398 = vsyncadd %s391, %s397
          %s399 = smul.addr %s395, 128
          %s400 = scalar_lea.hbm %s0, %s399
          %s401 = sshll.u32 %s394, 4
          %s402 = int_to_ptr.vmem [resolvable:$true] %s401
          %407 = dma.hbm_to_vmem [thread:$0]  %s400, 256, %s402, %s391, 128, 128, 8
        $region52: #{tpu_custom_call.1} parent=47 // pred_fallthru
          _
        // Predicated region
        $region53: #{tpu_custom_call.1} parent=47 // pred_check
          %p408 = pneg %p78
        $region54: #{tpu_custom_call.1} parent=47 // pred_check_branch
          %410 = sbr.rel (%p408) target = $region56
        $region55: #{tpu_custom_call.1} parent=47 // pred_region
          %s411 = sand.u32 %s32, 1
          %s412 = scalar_lea.sflag [#allocation6], %s411
          %s413 = sand.u32 %s68, 1
          %s414 = smul.addr %s413, 2
          %s415 = scalar_lea.vmem [#allocation5], %s414
          %s416 = smul.u32 2, %s32
          %s418 = ssub.s32 32, 32
          %419 = vsyncadd %s412, %s418
          %s420 = smul.addr %s416, 16
          %s421 = scalar_lea.hbm %s1, %s420
          %s422 = sshll.u32 %s415, 4
          %s423 = int_to_ptr.vmem [resolvable:$true] %s422
          %428 = dma.hbm_to_vmem [thread:$0]  %s421, 32, %s423, %s412, 16, 16, 1
        $region56: #{tpu_custom_call.1} parent=47 // pred_fallthru
          _
      $region48: #{tpu_custom_call.1} parent=5 // pred_fallthru
        _
      %p429 = scmp.le.s32.totalorder 1, %s32
      %p430 = scmp.lt.s32.totalorder %s32, 3
      %p431 = pnand %p429, %p430
      %p432 = pneg %p431
      // Predicated region
      $region57: #{tpu_custom_call.1} parent=5 // pred_check
        _
      $region58: #{tpu_custom_call.1} parent=5 // pred_check_branch
        %434 = sbr.rel (%p431) target = $region60
      $region59: #{tpu_custom_call.1} parent=5 // pred_region
        %s435 = ssub.s32 %s32, 1
        %s436 = sand.u32 %s45, 1
        %s437 = scalar_lea.sflag [#allocation3], %s436
        %s438 = sand.u32 %s45, 1
        %s439 = smul.addr %s438, 16
        %s440 = scalar_lea.vmem [#allocation2], %s439
        // Predicated region
        $region61: #{tpu_custom_call.1} parent=59 // pred_check
          %p441 = pneg %p58
        $region62: #{tpu_custom_call.1} parent=59 // pred_check_branch
          %443 = sbr.rel (%p441) target = $region64
        $region63: #{tpu_custom_call.1} parent=59 // pred_region
          %444 = dma.done %s437, 256
        $region64: #{tpu_custom_call.1} parent=59 // pred_fallthru
          _
        %s445 = sand.u32 %s37, 1
        %s446 = scalar_lea.sflag [#allocation6], %s445
        %s447 = sand.u32 %s71, 1
        %s448 = smul.addr %s447, 2
        %s449 = scalar_lea.vmem [#allocation5], %s448
        // Predicated region
        $region65: #{tpu_custom_call.1} parent=59 // pred_check
          %p450 = pneg %p84
        $region66: #{tpu_custom_call.1} parent=59 // pred_check_branch
          %452 = sbr.rel (%p450) target = $region68
        $region67: #{tpu_custom_call.1} parent=59 // pred_region
          %453 = dma.done %s446, 32
        $region68: #{tpu_custom_call.1} parent=59 // pred_fallthru
          _
        // Predicated region
        $region69: #{tpu_custom_call.1} parent=59 // pred_check
          %p454 = pneg %p105
        $region70: #{tpu_custom_call.1} parent=59 // pred_check_branch
          %456 = sbr.rel (%p454) target = $region72
        $region71: #{tpu_custom_call.1} parent=59 // pred_region
          %457 = dma.done [#allocation6], 512
        $region72: #{tpu_custom_call.1} parent=59 // pred_fallthru
          _
        // Predicated region
        $region73: #{tpu_custom_call.1} parent=59 // pred_check
          %p458 = pneg %p147
        $region74: #{tpu_custom_call.1} parent=59 // pred_check_branch
          %460 = sbr.rel (%p458) target = $region76
        $region75: #{tpu_custom_call.1} parent=59 // pred_region
          %461 = dma.done [#allocation9], 512
        $region76: #{tpu_custom_call.1} parent=59 // pred_fallthru
          _
        // Predicated region
        $region77: #{tpu_custom_call.1} parent=59 // pred_check
          %p462 = pneg %p189
        $region78: #{tpu_custom_call.1} parent=59 // pred_check_branch
          %464 = sbr.rel (%p462) target = $region80
        $region79: #{tpu_custom_call.1} parent=59 // pred_region
          %465 = dma.done [#allocation9], 512
        $region80: #{tpu_custom_call.1} parent=59 // pred_fallthru
          _
        // Predicated region
        $region81: #{tpu_custom_call.1} parent=59 // pred_check
          %p466 = pneg %p210
        $region82: #{tpu_custom_call.1} parent=59 // pred_check_branch
          %468 = sbr.rel (%p466) target = $region84
        $region83: #{tpu_custom_call.1} parent=59 // pred_region
          %469 = dma.done [#allocation12], 512
        $region84: #{tpu_custom_call.1} parent=59 // pred_fallthru
          _
        %s470 = sand.u32 %s45, 1
        %s471 = scalar_lea.sflag [#allocation3], %s470
        %s472 = sand.u32 %s45, 1
        %s473 = smul.addr %s472, 16
        %s474 = scalar_lea.vmem [#allocation2], %s473
        %p475 = pneg %p58
        %p476 = pneg %p55
        %s477 = sand.u32 %s37, 1
        %s478 = scalar_lea.sflag [#allocation6], %s477
        %s479 = sand.u32 %s71, 1
        %s480 = smul.addr %s479, 2
        %s481 = scalar_lea.vmem [#allocation5], %s480
        %p482 = pneg %p84
        %p483 = pneg %p81
        %p484 = pneg %p105
        %p485 = pneg %p102
        %p486 = pneg %p126
        %p487 = pneg %p123
        %p488 = pneg %p147
        %p489 = pneg %p144
        %p490 = pneg %p168
        %p491 = pneg %p165
        %p492 = pneg %p189
        %p493 = pneg %p186
        %p494 = pneg %p210
        %p495 = pneg %p207
        %p496 = pneg %p231
        %p497 = pneg %p228
        %p498 = pneg %p252
        %p499 = pneg %p249
        %p500 = pneg %p278
        %p501 = pneg %p275
        %s502 = sand.u32 %s265, 1
        %s503 = scalar_lea.sflag [#allocation4], %s502
        %s504 = sand.u32 %s265, 1
        %s505 = smul.addr %s504, 16
        %s506 = scalar_lea.vmem [#allocation13], %s505
        %p507 = pneg %p304
        %p508 = pneg %p301
        %s509 = sand.u32 %s291, 1
        %s510 = scalar_lea.sflag [#allocation15], %s509
        %s511 = sand.u32 %s291, 1
        %s512 = smul.addr %s511, 2
        %s513 = scalar_lea.vmem [#allocation14], %s512
        %s514 = smul.u32 2, %s37
        %s515 = smul.u32 2, %s37
        %s516 = smul.u32 2, %s37
        %s517 = smul.u32 2, %s37
        %v518 = vld [vmem:[%s440] sm:$0xff]
        %v519 = vld [vmem:[%s440 + $0x8] sm:$0xff]
        %v520 = vld [vmem:[#allocation7] sm:$0xff]
        %v521 = vld [vmem:[#allocation7 + $0x8] sm:$0xff]
        %v522 = vld [vmem:[#allocation7 + $0x10] sm:$0xff]
        %v523 = vld [vmem:[#allocation7 + $0x18] sm:$0xff]
        %v524 = vld [vmem:[%s3] sm:$0x1]
        %v526 = vlaneseq
        %v527 = vshrl.u32 %v526, 7
        %v528 = vsub.s32 0, %v527
        %v529 = vrot.slane %v524, %v528
        %vm531 = vcmask 261120
        %v533 = vsel %vm531, %v518, 0
        %v536 = vsel %vm531, %v519, 0
        %538 = vmatprep.subr.mxu0 0.0
        %539 = vmatpush1.msra.mxu0 %v520
        %540 = vmatprep.subr.mxu0 0.0
        %541 = vmatpush1.msra.mxu0 %v521
        %542 = vmatprep.subr.mxu0 0.0
        %543 = vmatpush1.msra.mxu0 %v522
        %544 = vmatprep.subr.mxu0 0.0
        %545 = vmatpush1.msra.mxu0 %v523
        %546 = vmatprep.subr.mxu0 0.0
        %547 = vmatpush1.msra.mxu0 0.0
        %548 = vmatprep.subr.mxu0 0.0
        %549 = vmatpush1.msra.mxu0 0.0
        %550 = vmatprep.subr.mxu0 0.0
        %551 = vmatpush1.msra.mxu0 0.0
        %552 = vmatprep.subr.mxu0 0.0
        %553 = vmatpush1.msra.mxu0 0.0
        %554 = vmatprep.subr.mxu0 0.0
        %555 = vmatpush1.msra.mxu0 0.0
        %556 = vmatprep.subr.mxu0 0.0
        %557 = vmatpush1.msra.mxu0 0.0
        %558 = vmatprep.subr.mxu0 0.0
        %559 = vmatpush1.msra.mxu0 0.0
        %560 = vmatprep.subr.mxu0 0.0
        %561 = vmatpush1.msra.mxu0 0.0
        %562 = vmatprep.subr.mxu0 0.0
        %563 = vmatpush1.msra.mxu0 0.0
        %564 = vmatprep.subr.mxu0 0.0
        %565 = vmatpush1.msra.mxu0 0.0
        %566 = vmatprep.subr.mxu0 0.0
        %567 = vmatpush1.msra.mxu0 0.0
        %568 = vmatprep.subr.mxu0 0.0
        %569 = vmatpush1.msra.mxu0 0.0
        %570 = vmatprep.subr.mxu0 0.0
        %571 = vmatpush1.msra.mxu0 0.0
        %572 = vmatprep.subr.mxu0 0.0
        %573 = vmatpush1.msra.mxu0 0.0
        %574 = vmatprep.subr.mxu0 0.0
        %575 = vmatpush1.msra.mxu0 0.0
        %576 = vmatprep.subr.mxu0 0.0
        %577 = vmatpush1.msra.mxu0 0.0
        %578 = vmatprep.subr.mxu0 0.0
        %579 = vmatpush1.msra.mxu0 0.0
        %580 = vmatprep.subr.mxu0 0.0
        %581 = vmatpush1.msra.mxu0 0.0
        %582 = vmatprep.subr.mxu0 0.0
        %583 = vmatpush1.msra.mxu0 0.0
        %584 = vmatprep.subr.mxu0 0.0
        %585 = vmatpush1.msra.mxu0 0.0
        %586 = vmatprep.subr.mxu0 0.0
        %587 = vmatpush1.msra.mxu0 0.0
        %588 = vmatprep.subr.mxu0 0.0
        %589 = vmatpush1.msra.mxu0 0.0
        %590 = vmatprep.subr.mxu0 0.0
        %591 = vmatpush1.msra.mxu0 0.0
        %592 = vmatprep.subr.mxu0 0.0
        %593 = vmatpush1.msra.mxu0 0.0
        %594 = vmatprep.subr.mxu0 0.0
        %595 = vmatpush1.msra.mxu0 0.0
        %596 = vmatprep.subr.mxu0 0.0
        %597 = vmatpush1.msra.mxu0 0.0
        %598 = vmatprep.subr.mxu0 0.0
        %599 = vmatpush1.msra.mxu0 0.0
        %600 = vmatprep.subr.mxu0 0.0
        %601 = vmatpush1.msra.mxu0 0.0
        %602 = vmatprep.mubr.f32.mxu0 0.0
        %603 = vmatmul.mubr.f32.gmra.mrb[0].mxu0 %v533
        %v604 = vpop.f32.mrb[0].mxu0
        %v605 = vadd.f32 %v529, %v604
        %v606 = vpop.f32.mrb[0].mxu0
        %607 = vmatprep.mubr.f32.mxu0 0.0
        %608 = vmatmul.mubr.f32.gmra.mrb[0].mxu0 %v536
        %v609 = vpop.f32.mrb[0].mxu0
        %v610 = vadd.f32 %v529, %v609
        %v611 = vpop.f32.mrb[0].mxu0
        %612 = vdwg.mxu0
        %v613 = vld [vmem:[#allocation8] sm:$0xff]
        %v614 = vld [vmem:[#allocation8 + $0x8] sm:$0xff]
        %v615 = vld [vmem:[#allocation8 + $0x10] sm:$0xff]
        %v616 = vld [vmem:[#allocation8 + $0x18] sm:$0xff]
        %v617 = vld [vmem:[%s5] sm:$0x1]
        %v619 = vlaneseq
        %v620 = vshrl.u32 %v619, 7
        %v621 = vsub.s32 0, %v620
        %v622 = vrot.slane %v617, %v621
        %624 = vmatprep.subr.mxu0 0.0
        %625 = vmatpush1.msra.mxu0 %v613
        %626 = vmatprep.subr.mxu0 0.0
        %627 = vmatpush1.msra.mxu0 %v614
        %628 = vmatprep.subr.mxu0 0.0
        %629 = vmatpush1.msra.mxu0 %v615
        %630 = vmatprep.subr.mxu0 0.0
        %631 = vmatpush1.msra.mxu0 %v616
        %632 = vmatprep.subr.mxu0 0.0
        %633 = vmatpush1.msra.mxu0 0.0
        %634 = vmatprep.subr.mxu0 0.0
        %635 = vmatpush1.msra.mxu0 0.0
        %636 = vmatprep.subr.mxu0 0.0
        %637 = vmatpush1.msra.mxu0 0.0
        %638 = vmatprep.subr.mxu0 0.0
        %639 = vmatpush1.msra.mxu0 0.0
        %640 = vmatprep.subr.mxu0 0.0
        %641 = vmatpush1.msra.mxu0 0.0
        %642 = vmatprep.subr.mxu0 0.0
        %643 = vmatpush1.msra.mxu0 0.0
        %644 = vmatprep.subr.mxu0 0.0
        %645 = vmatpush1.msra.mxu0 0.0
        %646 = vmatprep.subr.mxu0 0.0
        %647 = vmatpush1.msra.mxu0 0.0
        %648 = vmatprep.subr.mxu0 0.0
        %649 = vmatpush1.msra.mxu0 0.0
        %650 = vmatprep.subr.mxu0 0.0
        %651 = vmatpush1.msra.mxu0 0.0
        %652 = vmatprep.subr.mxu0 0.0
        %653 = vmatpush1.msra.mxu0 0.0
        %654 = vmatprep.subr.mxu0 0.0
        %655 = vmatpush1.msra.mxu0 0.0
        %656 = vmatprep.subr.mxu0 0.0
        %657 = vmatpush1.msra.mxu0 0.0
        %658 = vmatprep.subr.mxu0 0.0
        %659 = vmatpush1.msra.mxu0 0.0
        %660 = vmatprep.subr.mxu0 0.0
        %661 = vmatpush1.msra.mxu0 0.0
        %662 = vmatprep.subr.mxu0 0.0
        %663 = vmatpush1.msra.mxu0 0.0
        %664 = vmatprep.subr.mxu0 0.0
        %665 = vmatpush1.msra.mxu0 0.0
        %666 = vmatprep.subr.mxu0 0.0
        %667 = vmatpush1.msra.mxu0 0.0
        %668 = vmatprep.subr.mxu0 0.0
        %669 = vmatpush1.msra.mxu0 0.0
        %670 = vmatprep.subr.mxu0 0.0
        %671 = vmatpush1.msra.mxu0 0.0
        %672 = vmatprep.subr.mxu0 0.0
        %673 = vmatpush1.msra.mxu0 0.0
        %674 = vmatprep.subr.mxu0 0.0
        %675 = vmatpush1.msra.mxu0 0.0
        %676 = vmatprep.subr.mxu0 0.0
        %677 = vmatpush1.msra.mxu0 0.0
        %678 = vmatprep.subr.mxu0 0.0
        %679 = vmatpush1.msra.mxu0 0.0
        %680 = vmatprep.subr.mxu0 0.0
        %681 = vmatpush1.msra.mxu0 0.0
        %682 = vmatprep.subr.mxu0 0.0
        %683 = vmatpush1.msra.mxu0 0.0
        %684 = vmatprep.subr.mxu0 0.0
        %685 = vmatpush1.msra.mxu0 0.0
        %686 = vmatprep.subr.mxu0 0.0
        %687 = vmatpush1.msra.mxu0 0.0
        %688 = vmatprep.mubr.f32.mxu0 0.0
        %689 = vmatmul.mubr.f32.gmra.mrb[0].mxu0 %v533
        %v690 = vpop.f32.mrb[0].mxu0
        %v691 = vadd.f32 %v622, %v690
        %v692 = vpop.f32.mrb[0].mxu0
        %693 = vmatprep.mubr.f32.mxu0 0.0
        %694 = vmatmul.mubr.f32.gmra.mrb[0].mxu0 %v536
        %v695 = vpop.f32.mrb[0].mxu0
        %v696 = vadd.f32 %v622, %v695
        %v697 = vpop.f32.mrb[0].mxu0
        %698 = vdwg.mxu0
        %v699 = vld [vmem:[#allocation10] sm:$0xff]
        %v700 = vld [vmem:[#allocation10 + $0x8] sm:$0xff]
        %v701 = vld [vmem:[#allocation10 + $0x10] sm:$0xff]
        %v702 = vld [vmem:[#allocation10 + $0x18] sm:$0xff]
        %v705 = vrot.slane %v691, 7
        %v706 = vrot.slane %v696, 7
        %v709 = vadd.f32 %v605, %v705
        %v710 = vadd.f32 %v610, %v706
        %v712 = vsel %vm531, 0.0, 0
        %714 = vmatprep.subr.mxu0 0.0
        %715 = vmatpush1.msra.mxu0 %v699
        %716 = vmatprep.subr.mxu0 0.0
        %717 = vmatpush1.msra.mxu0 %v700
        %718 = vmatprep.subr.mxu0 0.0
        %719 = vmatpush1.msra.mxu0 %v701
        %720 = vmatprep.subr.mxu0 0.0
        %721 = vmatpush1.msra.mxu0 %v702
        %722 = vmatprep.subr.mxu0 0.0
        %723 = vmatpush1.msra.mxu0 0.0
        %724 = vmatprep.subr.mxu0 0.0
        %725 = vmatpush1.msra.mxu0 0.0
        %726 = vmatprep.subr.mxu0 0.0
        %727 = vmatpush1.msra.mxu0 0.0
        %728 = vmatprep.subr.mxu0 0.0
        %729 = vmatpush1.msra.mxu0 0.0
        %730 = vmatprep.subr.mxu0 0.0
        %731 = vmatpush1.msra.mxu0 0.0
        %732 = vmatprep.subr.mxu0 0.0
        %733 = vmatpush1.msra.mxu0 0.0
        %734 = vmatprep.subr.mxu0 0.0
        %735 = vmatpush1.msra.mxu0 0.0
        %736 = vmatprep.subr.mxu0 0.0
        %737 = vmatpush1.msra.mxu0 0.0
        %738 = vmatprep.subr.mxu0 0.0
        %739 = vmatpush1.msra.mxu0 0.0
        %740 = vmatprep.subr.mxu0 0.0
        %741 = vmatpush1.msra.mxu0 0.0
        %742 = vmatprep.subr.mxu0 0.0
        %743 = vmatpush1.msra.mxu0 0.0
        %744 = vmatprep.subr.mxu0 0.0
        %745 = vmatpush1.msra.mxu0 0.0
        %746 = vmatprep.subr.mxu0 0.0
        %747 = vmatpush1.msra.mxu0 0.0
        %748 = vmatprep.subr.mxu0 0.0
        %749 = vmatpush1.msra.mxu0 0.0
        %750 = vmatprep.subr.mxu0 0.0
        %751 = vmatpush1.msra.mxu0 0.0
        %752 = vmatprep.subr.mxu0 0.0
        %753 = vmatpush1.msra.mxu0 0.0
        %754 = vmatprep.subr.mxu0 0.0
        %755 = vmatpush1.msra.mxu0 0.0
        %756 = vmatprep.subr.mxu0 0.0
        %757 = vmatpush1.msra.mxu0 0.0
        %758 = vmatprep.subr.mxu0 0.0
        %759 = vmatpush1.msra.mxu0 0.0
        %760 = vmatprep.subr.mxu0 0.0
        %761 = vmatpush1.msra.mxu0 0.0
        %762 = vmatprep.subr.mxu0 0.0
        %763 = vmatpush1.msra.mxu0 0.0
        %764 = vmatprep.subr.mxu0 0.0
        %765 = vmatpush1.msra.mxu0 0.0
        %766 = vmatprep.subr.mxu0 0.0
        %767 = vmatpush1.msra.mxu0 0.0
        %768 = vmatprep.subr.mxu0 0.0
        %769 = vmatpush1.msra.mxu0 0.0
        %770 = vmatprep.subr.mxu0 0.0
        %771 = vmatpush1.msra.mxu0 0.0
        %772 = vmatprep.subr.mxu0 0.0
        %773 = vmatpush1.msra.mxu0 0.0
        %774 = vmatprep.subr.mxu0 0.0
        %775 = vmatpush1.msra.mxu0 0.0
        %776 = vmatprep.subr.mxu0 0.0
        %777 = vmatpush1.msra.mxu0 0.0
        %778 = vmatprep.mubr.f32.mxu0 0.0
        %779 = vmatmul.mubr.f32.gmra.mrb[0].mxu0 %v712
        %v780 = vpop.f32.mrb[0].mxu0
        %v781 = vadd.f32 0.0, %v780
        %v782 = vpop.f32.mrb[0].mxu0
        %783 = vdwg.mxu0
        %v785 = vrot.slane %v781, 1
        %v788 = vadd.f32 %v709, %v781
        %v789 = vadd.f32 %v710, %v785
        %v790 = vmul.f32 %v788, 0.5
        %v791 = vmul.f32 %v789, 0.5
        %v792 = vtanh.pop %v790
        %v793 = vtanh.pop %v791
        %v794 = vadd.f32 %v792, 1.0
        %v795 = vadd.f32 %v793, 1.0
        %v796 = vmul.f32 %v794, 0.5
        %v797 = vmul.f32 %v795, 0.5
        %v798 = vtanh.pop %v788
        %v799 = vtanh.pop %v789
        %v800 = vmul.f32 %v796, 0.0
        %v801 = vmul.f32 %v797, 0.0
        %804 = vrot.lane.b32.xlu0 %v798, 64
        %v805 = vpop.permute.xlu0 %804
        %806 = vrot.lane.b32.xlu0 %v799, 64
        %v807 = vpop.permute.xlu0 %806
        %v810 = vmul.f32 %v796, %v805
        %v811 = vmul.f32 %v797, %v807
        %814 = vrot.lane.b32.xlu0 %v810, 32
        %v815 = vpop.permute.xlu0 %814
        %816 = vrot.lane.b32.xlu0 %v811, 32
        %v817 = vpop.permute.xlu0 %816
        %v820 = vadd.f32 %v800, %v815
        %v821 = vadd.f32 %v801, %v817
        %v822 = vtanh.pop %v820
        %v823 = vtanh.pop %v821
        %826 = vrot.lane.b32.xlu0 %v822, 64
        %v827 = vpop.permute.xlu0 %826
        %828 = vrot.lane.b32.xlu0 %v823, 64
        %v829 = vpop.permute.xlu0 %828
        %v832 = vmul.f32 %v796, %v827
        %v833 = vmul.f32 %v797, %v829
        %v834 = vrot.slane %v691, 5
        %v835 = vrot.slane %v696, 5
        %v838 = vadd.f32 %v605, %v834
        %v839 = vadd.f32 %v610, %v835
        %v842 = vrot.slane %v833, 7
        %vm843 = vcmask 1041409
        %v844 = vsel %vm843, %v842, %v832
        %845 = vrot.lane.b32.xlu0 %v844, 32
        %v846 = vpop.permute.xlu0 %845
        %v847 = vsel %vm531, %v846, 0
        %849 = vmatprep.subr.mxu0 0.0
        %850 = vmatpush1.msra.mxu0 %v699
        %851 = vmatprep.subr.mxu0 0.0
        %852 = vmatpush1.msra.mxu0 %v700
        %853 = vmatprep.subr.mxu0 0.0
        %854 = vmatpush1.msra.mxu0 %v701
        %855 = vmatprep.subr.mxu0 0.0
        %856 = vmatpush1.msra.mxu0 %v702
        %857 = vmatprep.subr.mxu0 0.0
        %858 = vmatpush1.msra.mxu0 0.0
        %859 = vmatprep.subr.mxu0 0.0
        %860 = vmatpush1.msra.mxu0 0.0
        %861 = vmatprep.subr.mxu0 0.0
        %862 = vmatpush1.msra.mxu0 0.0
        %863 = vmatprep.subr.mxu0 0.0
        %864 = vmatpush1.msra.mxu0 0.0
        %865 = vmatprep.subr.mxu0 0.0
        %866 = vmatpush1.msra.mxu0 0.0
        %867 = vmatprep.subr.mxu0 0.0
        %868 = vmatpush1.msra.mxu0 0.0
        %869 = vmatprep.subr.mxu0 0.0
        %870 = vmatpush1.msra.mxu0 0.0
        %871 = vmatprep.subr.mxu0 0.0
        %872 = vmatpush1.msra.mxu0 0.0
        %873 = vmatprep.subr.mxu0 0.0
        %874 = vmatpush1.msra.mxu0 0.0
        %875 = vmatprep.subr.mxu0 0.0
        %876 = vmatpush1.msra.mxu0 0.0
        %877 = vmatprep.subr.mxu0 0.0
        %878 = vmatpush1.msra.mxu0 0.0
        %879 = vmatprep.subr.mxu0 0.0
        %880 = vmatpush1.msra.mxu0 0.0
        %881 = vmatprep.subr.mxu0 0.0
        %882 = vmatpush1.msra.mxu0 0.0
        %883 = vmatprep.subr.mxu0 0.0
        %884 = vmatpush1.msra.mxu0 0.0
        %885 = vmatprep.subr.mxu0 0.0
        %886 = vmatpush1.msra.mxu0 0.0
        %887 = vmatprep.subr.mxu0 0.0
        %888 = vmatpush1.msra.mxu0 0.0
        %889 = vmatprep.subr.mxu0 0.0
        %890 = vmatpush1.msra.mxu0 0.0
        %891 = vmatprep.subr.mxu0 0.0
        %892 = vmatpush1.msra.mxu0 0.0
        %893 = vmatprep.subr.mxu0 0.0
        %894 = vmatpush1.msra.mxu0 0.0
        %895 = vmatprep.subr.mxu0 0.0
        %896 = vmatpush1.msra.mxu0 0.0
        %897 = vmatprep.subr.mxu0 0.0
        %898 = vmatpush1.msra.mxu0 0.0
        %899 = vmatprep.subr.mxu0 0.0
        %900 = vmatpush1.msra.mxu0 0.0
        %901 = vmatprep.subr.mxu0 0.0
        %902 = vmatpush1.msra.mxu0 0.0
        %903 = vmatprep.subr.mxu0 0.0
        %904 = vmatpush1.msra.mxu0 0.0
        %905 = vmatprep.subr.mxu0 0.0
        %906 = vmatpush1.msra.mxu0 0.0
        %907 = vmatprep.subr.mxu0 0.0
        %908 = vmatpush1.msra.mxu0 0.0
        %909 = vmatprep.subr.mxu0 0.0
        %910 = vmatpush1.msra.mxu0 0.0
        %911 = vmatprep.subr.mxu0 0.0
        %912 = vmatpush1.msra.mxu0 0.0
        %913 = vmatprep.mubr.f32.mxu0 0.0
        %914 = vmatmul.mubr.f32.gmra.mrb[0].mxu0 %v847
        %v915 = vpop.f32.mrb[0].mxu0
        %v916 = vadd.f32 0.0, %v915
        %v917 = vpop.f32.mrb[0].mxu0
        %918 = vdwg.mxu0
        %v920 = vrot.slane %v916, 7
        %v923 = vadd.f32 %v838, %v920
        %v924 = vadd.f32 %v839, %v916
        %v925 = vmul.f32 %v923, 0.5
        %v926 = vmul.f32 %v924, 0.5
        %v927 = vtanh.pop %v925
        %v928 = vtanh.pop %v926
        %v929 = vadd.f32 %v927, 1.0
        %v930 = vadd.f32 %v928, 1.0
        %v931 = vmul.f32 %v929, 0.5
        %v932 = vmul.f32 %v930, 0.5
        %v933 = vtanh.pop %v923
        %v934 = vtanh.pop %v924
        %v937 = vrot.slane %v820, 7
        %v938 = vrot.slane %v821, 7
        %v941 = vmul.f32 %v931, %v937
        %v942 = vmul.f32 %v932, %v938
        %945 = vrot.lane.b32.xlu0 %v933, 64
        %v946 = vpop.permute.xlu0 %945
        %947 = vrot.lane.b32.xlu0 %v934, 64
        %v948 = vpop.permute.xlu0 %947
        %v951 = vmul.f32 %v931, %v946
        %v952 = vmul.f32 %v932, %v948
        %955 = vrot.lane.b32.xlu0 %v951, 32
        %v956 = vpop.permute.xlu0 %955
        %957 = vrot.lane.b32.xlu0 %v952, 32
        %v958 = vpop.permute.xlu0 %957
        %v961 = vadd.f32 %v941, %v956
        %v962 = vadd.f32 %v942, %v958
        %v963 = vtanh.pop %v961
        %v964 = vtanh.pop %v962
        %967 = vrot.lane.b32.xlu0 %v963, 64
        %v968 = vpop.permute.xlu0 %967
        %969 = vrot.lane.b32.xlu0 %v964, 64
        %v970 = vpop.permute.xlu0 %969
        %v973 = vmul.f32 %v931, %v968
        %v974 = vmul.f32 %v932, %v970
        %v975 = vrot.slane %v691, 3
        %v976 = vrot.slane %v696, 3
        %v979 = vadd.f32 %v605, %v975
        %v980 = vadd.f32 %v610, %v976
        %v983 = vrot.slane %v973, 1
        %v984 = vsel %vm843, %v974, %v983
        %985 = vrot.lane.b32.xlu0 %v984, 32
        %v986 = vpop.permute.xlu0 %985
        %v987 = vsel %vm531, %v986, 0
        %989 = vmatprep.subr.mxu0 0.0
        %990 = vmatpush1.msra.mxu0 %v699
        %991 = vmatprep.subr.mxu0 0.0
        %992 = vmatpush1.msra.mxu0 %v700
        %993 = vmatprep.subr.mxu0 0.0
        %994 = vmatpush1.msra.mxu0 %v701
        %995 = vmatprep.subr.mxu0 0.0
        %996 = vmatpush1.msra.mxu0 %v702
        %997 = vmatprep.subr.mxu0 0.0
        %998 = vmatpush1.msra.mxu0 0.0
        %999 = vmatprep.subr.mxu0 0.0
        %1000 = vmatpush1.msra.mxu0 0.0
        %1001 = vmatprep.subr.mxu0 0.0
        %1002 = vmatpush1.msra.mxu0 0.0
        %1003 = vmatprep.subr.mxu0 0.0
        %1004 = vmatpush1.msra.mxu0 0.0
        %1005 = vmatprep.subr.mxu0 0.0
        %1006 = vmatpush1.msra.mxu0 0.0
        %1007 = vmatprep.subr.mxu0 0.0
        %1008 = vmatpush1.msra.mxu0 0.0
        %1009 = vmatprep.subr.mxu0 0.0
        %1010 = vmatpush1.msra.mxu0 0.0
        %1011 = vmatprep.subr.mxu0 0.0
        %1012 = vmatpush1.msra.mxu0 0.0
        %1013 = vmatprep.subr.mxu0 0.0
        %1014 = vmatpush1.msra.mxu0 0.0
        %1015 = vmatprep.subr.mxu0 0.0
        %1016 = vmatpush1.msra.mxu0 0.0
        %1017 = vmatprep.subr.mxu0 0.0
        %1018 = vmatpush1.msra.mxu0 0.0
        %1019 = vmatprep.subr.mxu0 0.0
        %1020 = vmatpush1.msra.mxu0 0.0
        %1021 = vmatprep.subr.mxu0 0.0
        %1022 = vmatpush1.msra.mxu0 0.0
        %1023 = vmatprep.subr.mxu0 0.0
        %1024 = vmatpush1.msra.mxu0 0.0
        %1025 = vmatprep.subr.mxu0 0.0
        %1026 = vmatpush1.msra.mxu0 0.0
        %1027 = vmatprep.subr.mxu0 0.0
        %1028 = vmatpush1.msra.mxu0 0.0
        %1029 = vmatprep.subr.mxu0 0.0
        %1030 = vmatpush1.msra.mxu0 0.0
        %1031 = vmatprep.subr.mxu0 0.0
        %1032 = vmatpush1.msra.mxu0 0.0
        %1033 = vmatprep.subr.mxu0 0.0
        %1034 = vmatpush1.msra.mxu0 0.0
        %1035 = vmatprep.subr.mxu0 0.0
        %1036 = vmatpush1.msra.mxu0 0.0
        %1037 = vmatprep.subr.mxu0 0.0
        %1038 = vmatpush1.msra.mxu0 0.0
        %1039 = vmatprep.subr.mxu0 0.0
        %1040 = vmatpush1.msra.mxu0 0.0
        %1041 = vmatprep.subr.mxu0 0.0
        %1042 = vmatpush1.msra.mxu0 0.0
        %1043 = vmatprep.subr.mxu0 0.0
        %1044 = vmatpush1.msra.mxu0 0.0
        %1045 = vmatprep.subr.mxu0 0.0
        %1046 = vmatpush1.msra.mxu0 0.0
        %1047 = vmatprep.subr.mxu0 0.0
        %1048 = vmatpush1.msra.mxu0 0.0
        %1049 = vmatprep.subr.mxu0 0.0
        %1050 = vmatpush1.msra.mxu0 0.0
        %1051 = vmatprep.subr.mxu0 0.0
        %1052 = vmatpush1.msra.mxu0 0.0
        %1053 = vmatprep.mubr.f32.mxu0 0.0
        %1054 = vmatmul.mubr.f32.gmra.mrb[0].mxu0 %v987
        %v1055 = vpop.f32.mrb[0].mxu0
        %v1056 = vadd.f32 0.0, %v1055
        %v1057 = vpop.f32.mrb[0].mxu0
        %1058 = vdwg.mxu0
        %v1060 = vrot.slane %v1056, 6
        %v1061 = vrot.slane %v1056, 7
        %v1064 = vadd.f32 %v979, %v1060
        %v1065 = vadd.f32 %v980, %v1061
        %v1066 = vmul.f32 %v1064, 0.5
        %v1067 = vmul.f32 %v1065, 0.5
        %v1068 = vtanh.pop %v1066
        %v1069 = vtanh.pop %v1067
        %v1070 = vadd.f32 %v1068, 1.0
        %v1071 = vadd.f32 %v1069, 1.0
        %v1072 = vmul.f32 %v1070, 0.5
        %v1073 = vmul.f32 %v1071, 0.5
        %v1074 = vtanh.pop %v1064
        %v1075 = vtanh.pop %v1065
        %v1078 = vrot.slane %v961, 7
        %v1079 = vrot.slane %v962, 7
        %v1082 = vmul.f32 %v1072, %v1078
        %v1083 = vmul.f32 %v1073, %v1079
        %1086 = vrot.lane.b32.xlu0 %v1074, 64
        %v1087 = vpop.permute.xlu0 %1086
        %1088 = vrot.lane.b32.xlu0 %v1075, 64
        %v1089 = vpop.permute.xlu0 %1088
        %v1092 = vmul.f32 %v1072, %v1087
        %v1093 = vmul.f32 %v1073, %v1089
        %1096 = vrot.lane.b32.xlu0 %v1092, 32
        %v1097 = vpop.permute.xlu0 %1096
        %1098 = vrot.lane.b32.xlu0 %v1093, 32
        %v1099 = vpop.permute.xlu0 %1098
        %v1102 = vadd.f32 %v1082, %v1097
        %v1103 = vadd.f32 %v1083, %v1099
        %v1104 = vtanh.pop %v1102
        %v1105 = vtanh.pop %v1103
        %1108 = vrot.lane.b32.xlu0 %v1104, 64
        %v1109 = vpop.permute.xlu0 %1108
        %1110 = vrot.lane.b32.xlu0 %v1105, 64
        %v1111 = vpop.permute.xlu0 %1110
        %v1114 = vmul.f32 %v1072, %v1109
        %v1115 = vmul.f32 %v1073, %v1111
        %v1116 = vrot.slane %v691, 1
        %v1117 = vrot.slane %v696, 1
        %v1120 = vadd.f32 %v605, %v1116
        %v1121 = vadd.f32 %v610, %v1117
        %v1124 = vrot.slane %v1114, 2
        %v1125 = vrot.slane %v1115, 1
        %v1126 = vsel %vm843, %v1125, %v1124
        %1127 = vrot.lane.b32.xlu0 %v1126, 32
        %v1128 = vpop.permute.xlu0 %1127
        %v1129 = vsel %vm531, %v1128, 0
        %1131 = vmatprep.subr.mxu0 0.0
        %1132 = vmatpush1.msra.mxu0 %v699
        %1133 = vmatprep.subr.mxu0 0.0
        %1134 = vmatpush1.msra.mxu0 %v700
        %1135 = vmatprep.subr.mxu0 0.0
        %1136 = vmatpush1.msra.mxu0 %v701
        %1137 = vmatprep.subr.mxu0 0.0
        %1138 = vmatpush1.msra.mxu0 %v702
        %1139 = vmatprep.subr.mxu0 0.0
        %1140 = vmatpush1.msra.mxu0 0.0
        %1141 = vmatprep.subr.mxu0 0.0
        %1142 = vmatpush1.msra.mxu0 0.0
        %1143 = vmatprep.subr.mxu0 0.0
        %1144 = vmatpush1.msra.mxu0 0.0
        %1145 = vmatprep.subr.mxu0 0.0
        %1146 = vmatpush1.msra.mxu0 0.0
        %1147 = vmatprep.subr.mxu0 0.0
        %1148 = vmatpush1.msra.mxu0 0.0
        %1149 = vmatprep.subr.mxu0 0.0
        %1150 = vmatpush1.msra.mxu0 0.0
        %1151 = vmatprep.subr.mxu0 0.0
        %1152 = vmatpush1.msra.mxu0 0.0
        %1153 = vmatprep.subr.mxu0 0.0
        %1154 = vmatpush1.msra.mxu0 0.0
        %1155 = vmatprep.subr.mxu0 0.0
        %1156 = vmatpush1.msra.mxu0 0.0
        %1157 = vmatprep.subr.mxu0 0.0
        %1158 = vmatpush1.msra.mxu0 0.0
        %1159 = vmatprep.subr.mxu0 0.0
        %1160 = vmatpush1.msra.mxu0 0.0
        %1161 = vmatprep.subr.mxu0 0.0
        %1162 = vmatpush1.msra.mxu0 0.0
        %1163 = vmatprep.subr.mxu0 0.0
        %1164 = vmatpush1.msra.mxu0 0.0
        %1165 = vmatprep.subr.mxu0 0.0
        %1166 = vmatpush1.msra.mxu0 0.0
        %1167 = vmatprep.subr.mxu0 0.0
        %1168 = vmatpush1.msra.mxu0 0.0
        %1169 = vmatprep.subr.mxu0 0.0
        %1170 = vmatpush1.msra.mxu0 0.0
        %1171 = vmatprep.subr.mxu0 0.0
        %1172 = vmatpush1.msra.mxu0 0.0
        %1173 = vmatprep.subr.mxu0 0.0
        %1174 = vmatpush1.msra.mxu0 0.0
        %1175 = vmatprep.subr.mxu0 0.0
        %1176 = vmatpush1.msra.mxu0 0.0
        %1177 = vmatprep.subr.mxu0 0.0
        %1178 = vmatpush1.msra.mxu0 0.0
        %1179 = vmatprep.subr.mxu0 0.0
        %1180 = vmatpush1.msra.mxu0 0.0
        %1181 = vmatprep.subr.mxu0 0.0
        %1182 = vmatpush1.msra.mxu0 0.0
        %1183 = vmatprep.subr.mxu0 0.0
        %1184 = vmatpush1.msra.mxu0 0.0
        %1185 = vmatprep.subr.mxu0 0.0
        %1186 = vmatpush1.msra.mxu0 0.0
        %1187 = vmatprep.subr.mxu0 0.0
        %1188 = vmatpush1.msra.mxu0 0.0
        %1189 = vmatprep.subr.mxu0 0.0
        %1190 = vmatpush1.msra.mxu0 0.0
        %1191 = vmatprep.subr.mxu0 0.0
        %1192 = vmatpush1.msra.mxu0 0.0
        %1193 = vmatprep.subr.mxu0 0.0
        %1194 = vmatpush1.msra.mxu0 0.0
        %1195 = vmatprep.mubr.f32.mxu0 0.0
        %1196 = vmatmul.mubr.f32.gmra.mrb[0].mxu0 %v1129
        %v1197 = vpop.f32.mrb[0].mxu0
        %v1198 = vadd.f32 0.0, %v1197
        %v1199 = vpop.f32.mrb[0].mxu0
        %1200 = vdwg.mxu0
        %v1202 = vrot.slane %v1198, 5
        %v1203 = vrot.slane %v1198, 6
        %v1206 = vadd.f32 %v1120, %v1202
        %v1207 = vadd.f32 %v1121, %v1203
        %v1208 = vmul.f32 %v1206, 0.5
        %v1209 = vmul.f32 %v1207, 0.5
        %v1210 = vtanh.pop %v1208
        %v1211 = vtanh.pop %v1209
        %v1212 = vadd.f32 %v1210, 1.0
        %v1213 = vadd.f32 %v1211, 1.0
        %v1214 = vmul.f32 %v1212, 0.5
        %v1215 = vmul.f32 %v1213, 0.5
        %v1216 = vtanh.pop %v1206
        %v1217 = vtanh.pop %v1207
        %v1220 = vrot.slane %v1102, 7
        %v1221 = vrot.slane %v1103, 7
        %v1224 = vmul.f32 %v1214, %v1220
        %v1225 = vmul.f32 %v1215, %v1221
        %1228 = vrot.lane.b32.xlu0 %v1216, 64
        %v1229 = vpop.permute.xlu0 %1228
        %1230 = vrot.lane.b32.xlu0 %v1217, 64
        %v1231 = vpop.permute.xlu0 %1230
        %v1234 = vmul.f32 %v1214, %v1229
        %v1235 = vmul.f32 %v1215, %v1231
        %1238 = vrot.lane.b32.xlu0 %v1234, 32
        %v1239 = vpop.permute.xlu0 %1238
        %1240 = vrot.lane.b32.xlu0 %v1235, 32
        %v1241 = vpop.permute.xlu0 %1240
        %v1244 = vadd.f32 %v1224, %v1239
        %v1245 = vadd.f32 %v1225, %v1241
        %v1246 = vtanh.pop %v1244
        %v1247 = vtanh.pop %v1245
        %1250 = vrot.lane.b32.xlu0 %v1246, 64
        %v1251 = vpop.permute.xlu0 %1250
        %1252 = vrot.lane.b32.xlu0 %v1247, 64
        %v1253 = vpop.permute.xlu0 %1252
        %v1256 = vmul.f32 %v1214, %v1251
        %v1257 = vmul.f32 %v1215, %v1253
        %v1260 = vrot.slane %v1256, 3
        %v1261 = vrot.slane %v1257, 2
        %v1262 = vsel %vm843, %v1261, %v1260
        %1263 = vrot.lane.b32.xlu0 %v1262, 32
        %v1264 = vpop.permute.xlu0 %1263
        %v1265 = vsel %vm531, %v1264, 0
        %1267 = vmatprep.subr.mxu0 0.0
        %1268 = vmatpush1.msra.mxu0 %v699
        %1269 = vmatprep.subr.mxu0 0.0
        %1270 = vmatpush1.msra.mxu0 %v700
        %1271 = vmatprep.subr.mxu0 0.0
        %1272 = vmatpush1.msra.mxu0 %v701
        %1273 = vmatprep.subr.mxu0 0.0
        %1274 = vmatpush1.msra.mxu0 %v702
        %1275 = vmatprep.subr.mxu0 0.0
        %1276 = vmatpush1.msra.mxu0 0.0
        %1277 = vmatprep.subr.mxu0 0.0
        %1278 = vmatpush1.msra.mxu0 0.0
        %1279 = vmatprep.subr.mxu0 0.0
        %1280 = vmatpush1.msra.mxu0 0.0
        %1281 = vmatprep.subr.mxu0 0.0
        %1282 = vmatpush1.msra.mxu0 0.0
        %1283 = vmatprep.subr.mxu0 0.0
        %1284 = vmatpush1.msra.mxu0 0.0
        %1285 = vmatprep.subr.mxu0 0.0
        %1286 = vmatpush1.msra.mxu0 0.0
        %1287 = vmatprep.subr.mxu0 0.0
        %1288 = vmatpush1.msra.mxu0 0.0
        %1289 = vmatprep.subr.mxu0 0.0
        %1290 = vmatpush1.msra.mxu0 0.0
        %1291 = vmatprep.subr.mxu0 0.0
        %1292 = vmatpush1.msra.mxu0 0.0
        %1293 = vmatprep.subr.mxu0 0.0
        %1294 = vmatpush1.msra.mxu0 0.0
        %1295 = vmatprep.subr.mxu0 0.0
        %1296 = vmatpush1.msra.mxu0 0.0
        %1297 = vmatprep.subr.mxu0 0.0
        %1298 = vmatpush1.msra.mxu0 0.0
        %1299 = vmatprep.subr.mxu0 0.0
        %1300 = vmatpush1.msra.mxu0 0.0
        %1301 = vmatprep.subr.mxu0 0.0
        %1302 = vmatpush1.msra.mxu0 0.0
        %1303 = vmatprep.subr.mxu0 0.0
        %1304 = vmatpush1.msra.mxu0 0.0
        %1305 = vmatprep.subr.mxu0 0.0
        %1306 = vmatpush1.msra.mxu0 0.0
        %1307 = vmatprep.subr.mxu0 0.0
        %1308 = vmatpush1.msra.mxu0 0.0
        %1309 = vmatprep.subr.mxu0 0.0
        %1310 = vmatpush1.msra.mxu0 0.0
        %1311 = vmatprep.subr.mxu0 0.0
        %1312 = vmatpush1.msra.mxu0 0.0
        %1313 = vmatprep.subr.mxu0 0.0
        %1314 = vmatpush1.msra.mxu0 0.0
        %1315 = vmatprep.subr.mxu0 0.0
        %1316 = vmatpush1.msra.mxu0 0.0
        %1317 = vmatprep.subr.mxu0 0.0
        %1318 = vmatpush1.msra.mxu0 0.0
        %1319 = vmatprep.subr.mxu0 0.0
        %1320 = vmatpush1.msra.mxu0 0.0
        %1321 = vmatprep.subr.mxu0 0.0
        %1322 = vmatpush1.msra.mxu0 0.0
        %1323 = vmatprep.subr.mxu0 0.0
        %1324 = vmatpush1.msra.mxu0 0.0
        %1325 = vmatprep.subr.mxu0 0.0
        %1326 = vmatpush1.msra.mxu0 0.0
        %1327 = vmatprep.subr.mxu0 0.0
        %1328 = vmatpush1.msra.mxu0 0.0
        %1329 = vmatprep.subr.mxu0 0.0
        %1330 = vmatpush1.msra.mxu0 0.0
        %1331 = vmatprep.mubr.f32.mxu0 0.0
        %1332 = vmatmul.mubr.f32.gmra.mrb[0].mxu0 %v1265
        %v1333 = vpop.f32.mrb[0].mxu0
        %v1334 = vadd.f32 0.0, %v1333
        %v1335 = vpop.f32.mrb[0].mxu0
        %1336 = vdwg.mxu0
        %v1338 = vrot.slane %v1334, 4
        %v1339 = vrot.slane %v1334, 5
        %v1342 = vadd.f32 %v709, %v1338
        %v1343 = vadd.f32 %v710, %v1339
        %v1344 = vmul.f32 %v1342, 0.5
        %v1345 = vmul.f32 %v1343, 0.5
        %v1346 = vtanh.pop %v1344
        %v1347 = vtanh.pop %v1345
        %v1348 = vadd.f32 %v1346, 1.0
        %v1349 = vadd.f32 %v1347, 1.0
        %v1350 = vmul.f32 %v1348, 0.5
        %v1351 = vmul.f32 %v1349, 0.5
        %v1352 = vtanh.pop %v1342
        %v1353 = vtanh.pop %v1343
        %v1356 = vrot.slane %v1244, 7
        %v1357 = vrot.slane %v1245, 7
        %v1360 = vmul.f32 %v1350, %v1356
        %v1361 = vmul.f32 %v1351, %v1357
        %1364 = vrot.lane.b32.xlu0 %v1352, 64
        %v1365 = vpop.permute.xlu0 %1364
        %1366 = vrot.lane.b32.xlu0 %v1353, 64
        %v1367 = vpop.permute.xlu0 %1366
        %v1370 = vmul.f32 %v1350, %v1365
        %v1371 = vmul.f32 %v1351, %v1367
        %1374 = vrot.lane.b32.xlu0 %v1370, 32
        %v1375 = vpop.permute.xlu0 %1374
        %1376 = vrot.lane.b32.xlu0 %v1371, 32
        %v1377 = vpop.permute.xlu0 %1376
        %v1380 = vadd.f32 %v1360, %v1375
        %v1381 = vadd.f32 %v1361, %v1377
        %v1382 = vtanh.pop %v1380
        %v1383 = vtanh.pop %v1381
        %1386 = vrot.lane.b32.xlu0 %v1382, 64
        %v1387 = vpop.permute.xlu0 %1386
        %1388 = vrot.lane.b32.xlu0 %v1383, 64
        %v1389 = vpop.permute.xlu0 %1388
        %v1392 = vmul.f32 %v1350, %v1387
        %v1393 = vmul.f32 %v1351, %v1389
        %v1396 = vrot.slane %v1392, 4
        %v1397 = vrot.slane %v1393, 3
        %v1398 = vsel %vm843, %v1397, %v1396
        %1399 = vrot.lane.b32.xlu0 %v1398, 32
        %v1400 = vpop.permute.xlu0 %1399
        %v1401 = vsel %vm531, %v1400, 0
        %1403 = vmatprep.subr.mxu0 0.0
        %1404 = vmatpush1.msra.mxu0 %v699
        %1405 = vmatprep.subr.mxu0 0.0
        %1406 = vmatpush1.msra.mxu0 %v700
        %1407 = vmatprep.subr.mxu0 0.0
        %1408 = vmatpush1.msra.mxu0 %v701
        %1409 = vmatprep.subr.mxu0 0.0
        %1410 = vmatpush1.msra.mxu0 %v702
        %1411 = vmatprep.subr.mxu0 0.0
        %1412 = vmatpush1.msra.mxu0 0.0
        %1413 = vmatprep.subr.mxu0 0.0
        %1414 = vmatpush1.msra.mxu0 0.0
        %1415 = vmatprep.subr.mxu0 0.0
        %1416 = vmatpush1.msra.mxu0 0.0
        %1417 = vmatprep.subr.mxu0 0.0
        %1418 = vmatpush1.msra.mxu0 0.0
        %1419 = vmatprep.subr.mxu0 0.0
        %1420 = vmatpush1.msra.mxu0 0.0
        %1421 = vmatprep.subr.mxu0 0.0
        %1422 = vmatpush1.msra.mxu0 0.0
        %1423 = vmatprep.subr.mxu0 0.0
        %1424 = vmatpush1.msra.mxu0 0.0
        %1425 = vmatprep.subr.mxu0 0.0
        %1426 = vmatpush1.msra.mxu0 0.0
        %1427 = vmatprep.subr.mxu0 0.0
        %1428 = vmatpush1.msra.mxu0 0.0
        %1429 = vmatprep.subr.mxu0 0.0
        %1430 = vmatpush1.msra.mxu0 0.0
        %1431 = vmatprep.subr.mxu0 0.0
        %1432 = vmatpush1.msra.mxu0 0.0
        %1433 = vmatprep.subr.mxu0 0.0
        %1434 = vmatpush1.msra.mxu0 0.0
        %1435 = vmatprep.subr.mxu0 0.0
        %1436 = vmatpush1.msra.mxu0 0.0
        %1437 = vmatprep.subr.mxu0 0.0
        %1438 = vmatpush1.msra.mxu0 0.0
        %1439 = vmatprep.subr.mxu0 0.0
        %1440 = vmatpush1.msra.mxu0 0.0
        %1441 = vmatprep.subr.mxu0 0.0
        %1442 = vmatpush1.msra.mxu0 0.0
        %1443 = vmatprep.subr.mxu0 0.0
        %1444 = vmatpush1.msra.mxu0 0.0
        %1445 = vmatprep.subr.mxu0 0.0
        %1446 = vmatpush1.msra.mxu0 0.0
        %1447 = vmatprep.subr.mxu0 0.0
        %1448 = vmatpush1.msra.mxu0 0.0
        %1449 = vmatprep.subr.mxu0 0.0
        %1450 = vmatpush1.msra.mxu0 0.0
        %1451 = vmatprep.subr.mxu0 0.0
        %1452 = vmatpush1.msra.mxu0 0.0
        %1453 = vmatprep.subr.mxu0 0.0
        %1454 = vmatpush1.msra.mxu0 0.0
        %1455 = vmatprep.subr.mxu0 0.0
        %1456 = vmatpush1.msra.mxu0 0.0
        %1457 = vmatprep.subr.mxu0 0.0
        %1458 = vmatpush1.msra.mxu0 0.0
        %1459 = vmatprep.subr.mxu0 0.0
        %1460 = vmatpush1.msra.mxu0 0.0
        %1461 = vmatprep.subr.mxu0 0.0
        %1462 = vmatpush1.msra.mxu0 0.0
        %1463 = vmatprep.subr.mxu0 0.0
        %1464 = vmatpush1.msra.mxu0 0.0
        %1465 = vmatprep.subr.mxu0 0.0
        %1466 = vmatpush1.msra.mxu0 0.0
        %1467 = vmatprep.mubr.f32.mxu0 0.0
        %1468 = vmatmul.mubr.f32.gmra.mrb[0].mxu0 %v1401
        %v1469 = vpop.f32.mrb[0].mxu0
        %v1470 = vadd.f32 0.0, %v1469
        %v1471 = vpop.f32.mrb[0].mxu0
        %1472 = vdwg.mxu0
        %v1474 = vrot.slane %v1470, 3
        %v1475 = vrot.slane %v1470, 4
        %v1478 = vadd.f32 %v838, %v1474
        %v1479 = vadd.f32 %v839, %v1475
        %v1480 = vmul.f32 %v1478, 0.5
        %v1481 = vmul.f32 %v1479, 0.5
        %v1482 = vtanh.pop %v1480
        %v1483 = vtanh.pop %v1481
        %v1484 = vadd.f32 %v1482, 1.0
        %v1485 = vadd.f32 %v1483, 1.0
        %v1486 = vmul.f32 %v1484, 0.5
        %v1487 = vmul.f32 %v1485, 0.5
        %v1488 = vtanh.pop %v1478
        %v1489 = vtanh.pop %v1479
        %v1492 = vrot.slane %v1380, 7
        %v1493 = vrot.slane %v1381, 7
        %v1496 = vmul.f32 %v1486, %v1492
        %v1497 = vmul.f32 %v1487, %v1493
        %1500 = vrot.lane.b32.xlu0 %v1488, 64
        %v1501 = vpop.permute.xlu0 %1500
        %1502 = vrot.lane.b32.xlu0 %v1489, 64
        %v1503 = vpop.permute.xlu0 %1502
        %v1506 = vmul.f32 %v1486, %v1501
        %v1507 = vmul.f32 %v1487, %v1503
        %1510 = vrot.lane.b32.xlu0 %v1506, 32
        %v1511 = vpop.permute.xlu0 %1510
        %1512 = vrot.lane.b32.xlu0 %v1507, 32
        %v1513 = vpop.permute.xlu0 %1512
        %v1516 = vadd.f32 %v1496, %v1511
        %v1517 = vadd.f32 %v1497, %v1513
        %v1518 = vtanh.pop %v1516
        %v1519 = vtanh.pop %v1517
        %1522 = vrot.lane.b32.xlu0 %v1518, 64
        %v1523 = vpop.permute.xlu0 %1522
        %1524 = vrot.lane.b32.xlu0 %v1519, 64
        %v1525 = vpop.permute.xlu0 %1524
        %v1528 = vmul.f32 %v1486, %v1523
        %v1529 = vmul.f32 %v1487, %v1525
        %v1532 = vrot.slane %v1528, 5
        %v1533 = vrot.slane %v1529, 4
        %v1534 = vsel %vm843, %v1533, %v1532
        %1535 = vrot.lane.b32.xlu0 %v1534, 32
        %v1536 = vpop.permute.xlu0 %1535
        %v1537 = vsel %vm531, %v1536, 0
        %1539 = vmatprep.subr.mxu0 0.0
        %1540 = vmatpush1.msra.mxu0 %v699
        %1541 = vmatprep.subr.mxu0 0.0
        %1542 = vmatpush1.msra.mxu0 %v700
        %1543 = vmatprep.subr.mxu0 0.0
        %1544 = vmatpush1.msra.mxu0 %v701
        %1545 = vmatprep.subr.mxu0 0.0
        %1546 = vmatpush1.msra.mxu0 %v702
        %1547 = vmatprep.subr.mxu0 0.0
        %1548 = vmatpush1.msra.mxu0 0.0
        %1549 = vmatprep.subr.mxu0 0.0
        %1550 = vmatpush1.msra.mxu0 0.0
        %1551 = vmatprep.subr.mxu0 0.0
        %1552 = vmatpush1.msra.mxu0 0.0
        %1553 = vmatprep.subr.mxu0 0.0
        %1554 = vmatpush1.msra.mxu0 0.0
        %1555 = vmatprep.subr.mxu0 0.0
        %1556 = vmatpush1.msra.mxu0 0.0
        %1557 = vmatprep.subr.mxu0 0.0
        %1558 = vmatpush1.msra.mxu0 0.0
        %1559 = vmatprep.subr.mxu0 0.0
        %1560 = vmatpush1.msra.mxu0 0.0
        %1561 = vmatprep.subr.mxu0 0.0
        %1562 = vmatpush1.msra.mxu0 0.0
        %1563 = vmatprep.subr.mxu0 0.0
        %1564 = vmatpush1.msra.mxu0 0.0
        %1565 = vmatprep.subr.mxu0 0.0
        %1566 = vmatpush1.msra.mxu0 0.0
        %1567 = vmatprep.subr.mxu0 0.0
        %1568 = vmatpush1.msra.mxu0 0.0
        %1569 = vmatprep.subr.mxu0 0.0
        %1570 = vmatpush1.msra.mxu0 0.0
        %1571 = vmatprep.subr.mxu0 0.0
        %1572 = vmatpush1.msra.mxu0 0.0
        %1573 = vmatprep.subr.mxu0 0.0
        %1574 = vmatpush1.msra.mxu0 0.0
        %1575 = vmatprep.subr.mxu0 0.0
        %1576 = vmatpush1.msra.mxu0 0.0
        %1577 = vmatprep.subr.mxu0 0.0
        %1578 = vmatpush1.msra.mxu0 0.0
        %1579 = vmatprep.subr.mxu0 0.0
        %1580 = vmatpush1.msra.mxu0 0.0
        %1581 = vmatprep.subr.mxu0 0.0
        %1582 = vmatpush1.msra.mxu0 0.0
        %1583 = vmatprep.subr.mxu0 0.0
        %1584 = vmatpush1.msra.mxu0 0.0
        %1585 = vmatprep.subr.mxu0 0.0
        %1586 = vmatpush1.msra.mxu0 0.0
        %1587 = vmatprep.subr.mxu0 0.0
        %1588 = vmatpush1.msra.mxu0 0.0
        %1589 = vmatprep.subr.mxu0 0.0
        %1590 = vmatpush1.msra.mxu0 0.0
        %1591 = vmatprep.subr.mxu0 0.0
        %1592 = vmatpush1.msra.mxu0 0.0
        %1593 = vmatprep.subr.mxu0 0.0
        %1594 = vmatpush1.msra.mxu0 0.0
        %1595 = vmatprep.subr.mxu0 0.0
        %1596 = vmatpush1.msra.mxu0 0.0
        %1597 = vmatprep.subr.mxu0 0.0
        %1598 = vmatpush1.msra.mxu0 0.0
        %1599 = vmatprep.subr.mxu0 0.0
        %1600 = vmatpush1.msra.mxu0 0.0
        %1601 = vmatprep.subr.mxu0 0.0
        %1602 = vmatpush1.msra.mxu0 0.0
        %1603 = vmatprep.mubr.f32.mxu0 0.0
        %1604 = vmatmul.mubr.f32.gmra.mrb[0].mxu0 %v1537
        %v1605 = vpop.f32.mrb[0].mxu0
        %v1606 = vadd.f32 0.0, %v1605
        %v1607 = vpop.f32.mrb[0].mxu0
        %1608 = vdwg.mxu0
        %v1610 = vrot.slane %v1606, 2
        %v1611 = vrot.slane %v1606, 3
        %v1614 = vadd.f32 %v979, %v1610
        %v1615 = vadd.f32 %v980, %v1611
        %v1616 = vmul.f32 %v1614, 0.5
        %v1617 = vmul.f32 %v1615, 0.5
        %v1618 = vtanh.pop %v1616
        %v1619 = vtanh.pop %v1617
        %v1620 = vadd.f32 %v1618, 1.0
        %v1621 = vadd.f32 %v1619, 1.0
        %v1622 = vmul.f32 %v1620, 0.5
        %v1623 = vmul.f32 %v1621, 0.5
        %v1624 = vtanh.pop %v1614
        %v1625 = vtanh.pop %v1615
        %v1628 = vrot.slane %v1516, 7
        %v1629 = vrot.slane %v1517, 7
        %v1632 = vmul.f32 %v1622, %v1628
        %v1633 = vmul.f32 %v1623, %v1629
        %1636 = vrot.lane.b32.xlu0 %v1624, 64
        %v1637 = vpop.permute.xlu0 %1636
        %1638 = vrot.lane.b32.xlu0 %v1625, 64
        %v1639 = vpop.permute.xlu0 %1638
        %v1642 = vmul.f32 %v1622, %v1637
        %v1643 = vmul.f32 %v1623, %v1639
        %1646 = vrot.lane.b32.xlu0 %v1642, 32
        %v1647 = vpop.permute.xlu0 %1646
        %1648 = vrot.lane.b32.xlu0 %v1643, 32
        %v1649 = vpop.permute.xlu0 %1648
        %v1652 = vadd.f32 %v1632, %v1647
        %v1653 = vadd.f32 %v1633, %v1649
        %v1654 = vtanh.pop %v1652
        %v1655 = vtanh.pop %v1653
        %1658 = vrot.lane.b32.xlu0 %v1654, 64
        %v1659 = vpop.permute.xlu0 %1658
        %1660 = vrot.lane.b32.xlu0 %v1655, 64
        %v1661 = vpop.permute.xlu0 %1660
        %v1664 = vmul.f32 %v1622, %v1659
        %v1665 = vmul.f32 %v1623, %v1661
        %v1668 = vrot.slane %v1664, 6
        %v1669 = vrot.slane %v1665, 5
        %v1670 = vsel %vm843, %v1669, %v1668
        %1671 = vrot.lane.b32.xlu0 %v1670, 32
        %v1672 = vpop.permute.xlu0 %1671
        %v1673 = vsel %vm531, %v1672, 0
        %1675 = vmatprep.subr.mxu0 0.0
        %1676 = vmatpush1.msra.mxu0 %v699
        %1677 = vmatprep.subr.mxu0 0.0
        %1678 = vmatpush1.msra.mxu0 %v700
        %1679 = vmatprep.subr.mxu0 0.0
        %1680 = vmatpush1.msra.mxu0 %v701
        %1681 = vmatprep.subr.mxu0 0.0
        %1682 = vmatpush1.msra.mxu0 %v702
        %1683 = vmatprep.subr.mxu0 0.0
        %1684 = vmatpush1.msra.mxu0 0.0
        %1685 = vmatprep.subr.mxu0 0.0
        %1686 = vmatpush1.msra.mxu0 0.0
        %1687 = vmatprep.subr.mxu0 0.0
        %1688 = vmatpush1.msra.mxu0 0.0
        %1689 = vmatprep.subr.mxu0 0.0
        %1690 = vmatpush1.msra.mxu0 0.0
        %1691 = vmatprep.subr.mxu0 0.0
        %1692 = vmatpush1.msra.mxu0 0.0
        %1693 = vmatprep.subr.mxu0 0.0
        %1694 = vmatpush1.msra.mxu0 0.0
        %1695 = vmatprep.subr.mxu0 0.0
        %1696 = vmatpush1.msra.mxu0 0.0
        %1697 = vmatprep.subr.mxu0 0.0
        %1698 = vmatpush1.msra.mxu0 0.0
        %1699 = vmatprep.subr.mxu0 0.0
        %1700 = vmatpush1.msra.mxu0 0.0
        %1701 = vmatprep.subr.mxu0 0.0
        %1702 = vmatpush1.msra.mxu0 0.0
        %1703 = vmatprep.subr.mxu0 0.0
        %1704 = vmatpush1.msra.mxu0 0.0
        %1705 = vmatprep.subr.mxu0 0.0
        %1706 = vmatpush1.msra.mxu0 0.0
        %1707 = vmatprep.subr.mxu0 0.0
        %1708 = vmatpush1.msra.mxu0 0.0
        %1709 = vmatprep.subr.mxu0 0.0
        %1710 = vmatpush1.msra.mxu0 0.0
        %1711 = vmatprep.subr.mxu0 0.0
        %1712 = vmatpush1.msra.mxu0 0.0
        %1713 = vmatprep.subr.mxu0 0.0
        %1714 = vmatpush1.msra.mxu0 0.0
        %1715 = vmatprep.subr.mxu0 0.0
        %1716 = vmatpush1.msra.mxu0 0.0
        %1717 = vmatprep.subr.mxu0 0.0
        %1718 = vmatpush1.msra.mxu0 0.0
        %1719 = vmatprep.subr.mxu0 0.0
        %1720 = vmatpush1.msra.mxu0 0.0
        %1721 = vmatprep.subr.mxu0 0.0
        %1722 = vmatpush1.msra.mxu0 0.0
        %1723 = vmatprep.subr.mxu0 0.0
        %1724 = vmatpush1.msra.mxu0 0.0
        %1725 = vmatprep.subr.mxu0 0.0
        %1726 = vmatpush1.msra.mxu0 0.0
        %1727 = vmatprep.subr.mxu0 0.0
        %1728 = vmatpush1.msra.mxu0 0.0
        %1729 = vmatprep.subr.mxu0 0.0
        %1730 = vmatpush1.msra.mxu0 0.0
        %1731 = vmatprep.subr.mxu0 0.0
        %1732 = vmatpush1.msra.mxu0 0.0
        %1733 = vmatprep.subr.mxu0 0.0
        %1734 = vmatpush1.msra.mxu0 0.0
        %1735 = vmatprep.subr.mxu0 0.0
        %1736 = vmatpush1.msra.mxu0 0.0
        %1737 = vmatprep.subr.mxu0 0.0
        %1738 = vmatpush1.msra.mxu0 0.0
        %1739 = vmatprep.mubr.f32.mxu0 0.0
        %1740 = vmatmul.mubr.f32.gmra.mrb[0].mxu0 %v1673
        %v1741 = vpop.f32.mrb[0].mxu0
        %v1742 = vadd.f32 0.0, %v1741
        %v1743 = vpop.f32.mrb[0].mxu0
        %1744 = vdwg.mxu0
        %v1746 = vrot.slane %v1742, 1
        %v1747 = vrot.slane %v1742, 2
        %v1750 = vadd.f32 %v1120, %v1746
        %v1751 = vadd.f32 %v1121, %v1747
        %v1752 = vmul.f32 %v1750, 0.5
        %v1753 = vmul.f32 %v1751, 0.5
        %v1754 = vtanh.pop %v1752
        %v1755 = vtanh.pop %v1753
        %v1756 = vadd.f32 %v1754, 1.0
        %v1757 = vadd.f32 %v1755, 1.0
        %v1758 = vmul.f32 %v1756, 0.5
        %v1759 = vmul.f32 %v1757, 0.5
        %v1760 = vtanh.pop %v1750
        %v1761 = vtanh.pop %v1751
        %v1764 = vrot.slane %v1652, 7
        %v1765 = vrot.slane %v1653, 7
        %v1768 = vmul.f32 %v1758, %v1764
        %v1769 = vmul.f32 %v1759, %v1765
        %1772 = vrot.lane.b32.xlu0 %v1760, 64
        %v1773 = vpop.permute.xlu0 %1772
        %1774 = vrot.lane.b32.xlu0 %v1761, 64
        %v1775 = vpop.permute.xlu0 %1774
        %v1778 = vmul.f32 %v1758, %v1773
        %v1779 = vmul.f32 %v1759, %v1775
        %1782 = vrot.lane.b32.xlu0 %v1778, 32
        %v1783 = vpop.permute.xlu0 %1782
        %1784 = vrot.lane.b32.xlu0 %v1779, 32
        %v1785 = vpop.permute.xlu0 %1784
        %v1788 = vadd.f32 %v1768, %v1783
        %v1789 = vadd.f32 %v1769, %v1785
        %v1790 = vtanh.pop %v1788
        %v1791 = vtanh.pop %v1789
        %1794 = vrot.lane.b32.xlu0 %v1790, 64
        %v1795 = vpop.permute.xlu0 %1794
        %1796 = vrot.lane.b32.xlu0 %v1791, 64
        %v1797 = vpop.permute.xlu0 %1796
        %v1800 = vmul.f32 %v1758, %v1795
        %v1801 = vmul.f32 %v1759, %v1797
        %v1802 = vlaneseq
        %v1803 = vand.u32 %v1802, 127
        %vm1804 = vcmp.lt.s32.totalorder %v1803, 16
        %v1808 = vrot.slane %v1800, 7
        %v1809 = vrot.slane %v1801, 6
        %v1810 = vsel %vm843, %v1809, %v1808
        %1811 = vrot.lane.b32.xlu0 %v1810, 32
        %v1812 = vpop.permute.xlu0 %1811
        %v1814 = vsel %vm1804, %v846, %v1812
        %v1817 = vsel %vm1804, %v986, %v1672
        %v1820 = vsel %vm1804, %v1128, %v1536
        %v1823 = vsel %vm1804, %v1264, %v1400
        %v1824 = vsel %vm1804, %v1400, %v1264
        %v1825 = vsel %vm1804, %v1536, %v1128
        %v1826 = vsel %vm1804, %v1672, %v986
        %v1827 = vsel %vm1804, %v1812, %v846
        %v1830 = vunpack.c.l.s4 1966171168
        %v1831 = vunpack.c.0.s8 %v1830
        %v1832 = vlaneseq
        %v1833 = vshrl.u32 %v1832, 7
        %v1834 = vsub.s32 %v1831, %v1833
        %v1835 = vrot.slane %v1814, %v1834
        %v1836 = vcombine.high %v1835, %v1835
        %v1838 = vunpack.c.l.s4 1966171168
        %v1839 = vunpack.c.0.s8 %v1838
        %v1840 = vlaneseq
        %v1841 = vshrl.u32 %v1840, 7
        %v1842 = vsub.s32 %v1839, %v1841
        %v1843 = vrot.slane %v1835, %v1842
        %v1845 = vunpack.c.l.s4 1966171168
        %v1846 = vunpack.c.0.s8 %v1845
        %v1847 = vlaneseq
        %v1848 = vshrl.u32 %v1847, 7
        %v1849 = vsub.s32 %v1846, %v1848
        %v1850 = vrot.slane %v1836, %v1849
        %v1855 = vunpack.c.l.s4 1966171168
        %v1856 = vunpack.c.0.s8 %v1855
        %v1857 = vlaneseq
        %v1858 = vshrl.u32 %v1857, 7
        %v1859 = vsub.s32 %v1856, %v1858
        %v1860 = vrot.slane %v1817, %v1859
        %v1861 = vcombine.high %v1860, %v1860
        %v1863 = vunpack.c.l.s4 1966171168
        %v1864 = vunpack.c.0.s8 %v1863
        %v1865 = vlaneseq
        %v1866 = vshrl.u32 %v1865, 7
        %v1867 = vsub.s32 %v1864, %v1866
        %v1868 = vrot.slane %v1860, %v1867
        %v1870 = vunpack.c.l.s4 1966171168
        %v1871 = vunpack.c.0.s8 %v1870
        %v1872 = vlaneseq
        %v1873 = vshrl.u32 %v1872, 7
        %v1874 = vsub.s32 %v1871, %v1873
        %v1875 = vrot.slane %v1861, %v1874
        %v1878 = vunpack.c.l.s4 1966171168
        %v1879 = vunpack.c.0.s8 %v1878
        %v1880 = vlaneseq
        %v1881 = vshrl.u32 %v1880, 7
        %v1882 = vsub.s32 %v1879, %v1881
        %v1883 = vrot.slane %v1820, %v1882
        %v1884 = vcombine.high %v1883, %v1883
        %v1886 = vunpack.c.l.s4 1966171168
        %v1887 = vunpack.c.0.s8 %v1886
        %v1888 = vlaneseq
        %v1889 = vshrl.u32 %v1888, 7
        %v1890 = vsub.s32 %v1887, %v1889
        %v1891 = vrot.slane %v1883, %v1890
        %v1893 = vunpack.c.l.s4 1966171168
        %v1894 = vunpack.c.0.s8 %v1893
        %v1895 = vlaneseq
        %v1896 = vshrl.u32 %v1895, 7
        %v1897 = vsub.s32 %v1894, %v1896
        %v1898 = vrot.slane %v1884, %v1897
        %v1901 = vunpack.c.l.s4 1966171168
        %v1902 = vunpack.c.0.s8 %v1901
        %v1903 = vlaneseq
        %v1904 = vshrl.u32 %v1903, 7
        %v1905 = vsub.s32 %v1902, %v1904
        %v1906 = vrot.slane %v1823, %v1905
        %v1907 = vcombine.high %v1906, %v1906
        %v1909 = vunpack.c.l.s4 1966171168
        %v1910 = vunpack.c.0.s8 %v1909
        %v1911 = vlaneseq
        %v1912 = vshrl.u32 %v1911, 7
        %v1913 = vsub.s32 %v1910, %v1912
        %v1914 = vrot.slane %v1906, %v1913
        %v1916 = vunpack.c.l.s4 1966171168
        %v1917 = vunpack.c.0.s8 %v1916
        %v1918 = vlaneseq
        %v1919 = vshrl.u32 %v1918, 7
        %v1920 = vsub.s32 %v1917, %v1919
        %v1921 = vrot.slane %v1907, %v1920
        %v1924 = vunpack.c.l.s4 1966171168
        %v1925 = vunpack.c.0.s8 %v1924
        %v1926 = vlaneseq
        %v1927 = vshrl.u32 %v1926, 7
        %v1928 = vsub.s32 %v1925, %v1927
        %v1929 = vrot.slane %v1824, %v1928
        %v1930 = vcombine.high %v1929, %v1929
        %v1932 = vunpack.c.l.s4 1966171168
        %v1933 = vunpack.c.0.s8 %v1932
        %v1934 = vlaneseq
        %v1935 = vshrl.u32 %v1934, 7
        %v1936 = vsub.s32 %v1933, %v1935
        %v1937 = vrot.slane %v1929, %v1936
        %v1939 = vunpack.c.l.s4 1966171168
        %v1940 = vunpack.c.0.s8 %v1939
        %v1941 = vlaneseq
        %v1942 = vshrl.u32 %v1941, 7
        %v1943 = vsub.s32 %v1940, %v1942
        %v1944 = vrot.slane %v1930, %v1943
        %v1947 = vunpack.c.l.s4 1966171168
        %v1948 = vunpack.c.0.s8 %v1947
        %v1949 = vlaneseq
        %v1950 = vshrl.u32 %v1949, 7
        %v1951 = vsub.s32 %v1948, %v1950
        %v1952 = vrot.slane %v1825, %v1951
        %v1953 = vcombine.high %v1952, %v1952
        %v1955 = vunpack.c.l.s4 1966171168
        %v1956 = vunpack.c.0.s8 %v1955
        %v1957 = vlaneseq
        %v1958 = vshrl.u32 %v1957, 7
        %v1959 = vsub.s32 %v1956, %v1958
        %v1960 = vrot.slane %v1952, %v1959
        %v1962 = vunpack.c.l.s4 1966171168
        %v1963 = vunpack.c.0.s8 %v1962
        %v1964 = vlaneseq
        %v1965 = vshrl.u32 %v1964, 7
        %v1966 = vsub.s32 %v1963, %v1965
        %v1967 = vrot.slane %v1953, %v1966
        %v1970 = vunpack.c.l.s4 1966171168
        %v1971 = vunpack.c.0.s8 %v1970
        %v1972 = vlaneseq
        %v1973 = vshrl.u32 %v1972, 7
        %v1974 = vsub.s32 %v1971, %v1973
        %v1975 = vrot.slane %v1826, %v1974
        %v1976 = vcombine.high %v1975, %v1975
        %v1978 = vunpack.c.l.s4 1966171168
        %v1979 = vunpack.c.0.s8 %v1978
        %v1980 = vlaneseq
        %v1981 = vshrl.u32 %v1980, 7
        %v1982 = vsub.s32 %v1979, %v1981
        %v1983 = vrot.slane %v1975, %v1982
        %v1985 = vunpack.c.l.s4 1966171168
        %v1986 = vunpack.c.0.s8 %v1985
        %v1987 = vlaneseq
        %v1988 = vshrl.u32 %v1987, 7
        %v1989 = vsub.s32 %v1986, %v1988
        %v1990 = vrot.slane %v1976, %v1989
        %v1993 = vunpack.c.l.s4 1966171168
        %v1994 = vunpack.c.0.s8 %v1993
        %v1995 = vlaneseq
        %v1996 = vshrl.u32 %v1995, 7
        %v1997 = vsub.s32 %v1994, %v1996
        %v1998 = vrot.slane %v1827, %v1997
        %v1999 = vcombine.high %v1998, %v1998
        %v2001 = vunpack.c.l.s4 1966171168
        %v2002 = vunpack.c.0.s8 %v2001
        %v2003 = vlaneseq
        %v2004 = vshrl.u32 %v2003, 7
        %v2005 = vsub.s32 %v2002, %v2004
        %v2006 = vrot.slane %v1998, %v2005
        %v2008 = vunpack.c.l.s4 1966171168
        %v2009 = vunpack.c.0.s8 %v2008
        %v2010 = vlaneseq
        %v2011 = vshrl.u32 %v2010, 7
        %v2012 = vsub.s32 %v2009, %v2011
        %v2013 = vrot.slane %v1999, %v2012
        %v2014 = vlaneseq
        %v2015 = vshrl.u32 %v2014, 7
        %v2016 = vsub.s32 0, %v2015
        %v2017 = vrot.slane %v1868, %v2016
        %v2018 = vlaneseq
        %v2019 = vshrl.u32 %v2018, 7
        %v2020 = vsub.s32 0, %v2019
        %v2021 = vrot.slane %v1875, %v2020
        %v2024 = vlaneseq
        %v2025 = vshrl.u32 %v2024, 7
        %v2026 = vsub.s32 0, %v2025
        %v2027 = vrot.slane %v1891, %v2026
        %v2028 = vlaneseq
        %v2029 = vshrl.u32 %v2028, 7
        %v2030 = vsub.s32 0, %v2029
        %v2031 = vrot.slane %v1898, %v2030
        %v2034 = vlaneseq
        %v2035 = vshrl.u32 %v2034, 7
        %v2036 = vsub.s32 0, %v2035
        %v2037 = vrot.slane %v1914, %v2036
        %v2038 = vlaneseq
        %v2039 = vshrl.u32 %v2038, 7
        %v2040 = vsub.s32 0, %v2039
        %v2041 = vrot.slane %v1921, %v2040
        %v2044 = vlaneseq
        %v2045 = vshrl.u32 %v2044, 7
        %v2046 = vsub.s32 0, %v2045
        %v2047 = vrot.slane %v1937, %v2046
        %v2048 = vlaneseq
        %v2049 = vshrl.u32 %v2048, 7
        %v2050 = vsub.s32 0, %v2049
        %v2051 = vrot.slane %v1944, %v2050
        %v2054 = vlaneseq
        %v2055 = vshrl.u32 %v2054, 7
        %v2056 = vsub.s32 0, %v2055
        %v2057 = vrot.slane %v1960, %v2056
        %v2058 = vlaneseq
        %v2059 = vshrl.u32 %v2058, 7
        %v2060 = vsub.s32 0, %v2059
        %v2061 = vrot.slane %v1967, %v2060
        %v2064 = vlaneseq
        %v2065 = vshrl.u32 %v2064, 7
        %v2066 = vsub.s32 0, %v2065
        %v2067 = vrot.slane %v1983, %v2066
        %v2068 = vlaneseq
        %v2069 = vshrl.u32 %v2068, 7
        %v2070 = vsub.s32 0, %v2069
        %v2071 = vrot.slane %v1990, %v2070
        %v2074 = vlaneseq
        %v2075 = vshrl.u32 %v2074, 7
        %v2076 = vsub.s32 0, %v2075
        %v2077 = vrot.slane %v2006, %v2076
        %v2078 = vlaneseq
        %v2079 = vshrl.u32 %v2078, 7
        %v2080 = vsub.s32 0, %v2079
        %v2081 = vrot.slane %v2013, %v2080
        %vm2084 = vcmask 1040384
        %v2085 = vsel %vm2084, %v1843, %v2017
        %v2086 = vsel %vm2084, %v1850, %v2021
        %vm2087 = vcmask 1041408
        %v2088 = vsel %vm2087, %v2085, %v2027
        %v2089 = vsel %vm2087, %v2086, %v2031
        %vm2090 = vcmask 1042432
        %v2091 = vsel %vm2090, %v2088, %v2037
        %v2092 = vsel %vm2090, %v2089, %v2041
        %vm2093 = vcmask 1043456
        %v2094 = vsel %vm2093, %v2091, %v2047
        %v2095 = vsel %vm2093, %v2092, %v2051
        %vm2096 = vcmask 1044480
        %v2097 = vsel %vm2096, %v2094, %v2057
        %v2098 = vsel %vm2096, %v2095, %v2061
        %vm2099 = vcmask 1045504
        %v2100 = vsel %vm2099, %v2097, %v2067
        %v2101 = vsel %vm2099, %v2098, %v2071
        %vm2102 = vcmask 1046528
        %v2103 = vsel %vm2102, %v2100, %v2077
        %v2104 = vsel %vm2102, %v2101, %v2081
        %v2105 = vld [vmem:[#allocation11] sm:$0xff]
        %v2106 = vld [vmem:[#allocation11 + $0x8] sm:$0xff]
        %v2107 = vld [vmem:[#allocation11 + $0x10] sm:$0xff]
        %v2108 = vld [vmem:[#allocation11 + $0x18] sm:$0xff]
        %v2109 = vld [vmem:[%s8] sm:$0x1]
        %v2111 = vlaneseq
        %v2112 = vshrl.u32 %v2111, 7
        %v2113 = vsub.s32 0, %v2112
        %v2114 = vrot.slane %v2109, %v2113
        %v2117 = vsel %vm531, %v2103, 0
        %v2120 = vsel %vm531, %v2104, 0
        %2122 = vmatprep.subr.mxu0 0.0
        %2123 = vmatpush1.msra.mxu0 %v2105
        %2124 = vmatprep.subr.mxu0 0.0
        %2125 = vmatpush1.msra.mxu0 %v2106
        %2126 = vmatprep.subr.mxu0 0.0
        %2127 = vmatpush1.msra.mxu0 %v2107
        %2128 = vmatprep.subr.mxu0 0.0
        %2129 = vmatpush1.msra.mxu0 %v2108
        %2130 = vmatprep.subr.mxu0 0.0
        %2131 = vmatpush1.msra.mxu0 0.0
        %2132 = vmatprep.subr.mxu0 0.0
        %2133 = vmatpush1.msra.mxu0 0.0
        %2134 = vmatprep.subr.mxu0 0.0
        %2135 = vmatpush1.msra.mxu0 0.0
        %2136 = vmatprep.subr.mxu0 0.0
        %2137 = vmatpush1.msra.mxu0 0.0
        %2138 = vmatprep.subr.mxu0 0.0
        %2139 = vmatpush1.msra.mxu0 0.0
        %2140 = vmatprep.subr.mxu0 0.0
        %2141 = vmatpush1.msra.mxu0 0.0
        %2142 = vmatprep.subr.mxu0 0.0
        %2143 = vmatpush1.msra.mxu0 0.0
        %2144 = vmatprep.subr.mxu0 0.0
        %2145 = vmatpush1.msra.mxu0 0.0
        %2146 = vmatprep.subr.mxu0 0.0
        %2147 = vmatpush1.msra.mxu0 0.0
        %2148 = vmatprep.subr.mxu0 0.0
        %2149 = vmatpush1.msra.mxu0 0.0
        %2150 = vmatprep.subr.mxu0 0.0
        %2151 = vmatpush1.msra.mxu0 0.0
        %2152 = vmatprep.subr.mxu0 0.0
        %2153 = vmatpush1.msra.mxu0 0.0
        %2154 = vmatprep.subr.mxu0 0.0
        %2155 = vmatpush1.msra.mxu0 0.0
        %2156 = vmatprep.subr.mxu0 0.0
        %2157 = vmatpush1.msra.mxu0 0.0
        %2158 = vmatprep.subr.mxu0 0.0
        %2159 = vmatpush1.msra.mxu0 0.0
        %2160 = vmatprep.subr.mxu0 0.0
        %2161 = vmatpush1.msra.mxu0 0.0
        %2162 = vmatprep.subr.mxu0 0.0
        %2163 = vmatpush1.msra.mxu0 0.0
        %2164 = vmatprep.subr.mxu0 0.0
        %2165 = vmatpush1.msra.mxu0 0.0
        %2166 = vmatprep.subr.mxu0 0.0
        %2167 = vmatpush1.msra.mxu0 0.0
        %2168 = vmatprep.subr.mxu0 0.0
        %2169 = vmatpush1.msra.mxu0 0.0
        %2170 = vmatprep.subr.mxu0 0.0
        %2171 = vmatpush1.msra.mxu0 0.0
        %2172 = vmatprep.subr.mxu0 0.0
        %2173 = vmatpush1.msra.mxu0 0.0
        %2174 = vmatprep.subr.mxu0 0.0
        %2175 = vmatpush1.msra.mxu0 0.0
        %2176 = vmatprep.subr.mxu0 0.0
        %2177 = vmatpush1.msra.mxu0 0.0
        %2178 = vmatprep.subr.mxu0 0.0
        %2179 = vmatpush1.msra.mxu0 0.0
        %2180 = vmatprep.subr.mxu0 0.0
        %2181 = vmatpush1.msra.mxu0 0.0
        %2182 = vmatprep.subr.mxu0 0.0
        %2183 = vmatpush1.msra.mxu0 0.0
        %2184 = vmatprep.subr.mxu0 0.0
        %2185 = vmatpush1.msra.mxu0 0.0
        %2186 = vmatprep.mubr.f32.mxu0 0.0
        %2187 = vmatmul.mubr.f32.gmra.mrb[0].mxu0 %v2117
        %v2188 = vpop.f32.mrb[0].mxu0
        %v2189 = vadd.f32 %v2114, %v2188
        %v2190 = vpop.f32.mrb[0].mxu0
        %2191 = vmatprep.mubr.f32.mxu0 0.0
        %2192 = vmatmul.mubr.f32.gmra.mrb[0].mxu0 %v2120
        %v2193 = vpop.f32.mrb[0].mxu0
        %v2194 = vadd.f32 %v2114, %v2193
        %v2195 = vpop.f32.mrb[0].mxu0
        %2196 = vdwg.mxu0
        %v2197 = vtanh.pop %v2189
        %v2198 = vtanh.pop %v2194
        %v2199 = vld [vmem:[%s9] sm:$0x1]
        %v2201 = vsel %vm531, %v2199, 0
        %v2204 = vsel %vm531, %v2197, 0
        %2206 = vmatprep.subr.mxu0 0.0
        %2207 = vmatpush1.xpose.msra.mxu0 %v2204
        %2208 = vmatprep.subr.mxu0 0.0
        %2209 = vmatpush1.xpose.msra.mxu0 0.0
        %2210 = vmatprep.subr.mxu0 0.0
        %2211 = vmatpush1.xpose.msra.mxu0 0.0
        %2212 = vmatprep.subr.mxu0 0.0
        %2213 = vmatpush1.xpose.msra.mxu0 0.0
        %2214 = vmatprep.subr.mxu0 0.0
        %2215 = vmatpush1.xpose.msra.mxu0 0.0
        %2216 = vmatprep.subr.mxu0 0.0
        %2217 = vmatpush1.xpose.msra.mxu0 0.0
        %2218 = vmatprep.subr.mxu0 0.0
        %2219 = vmatpush1.xpose.msra.mxu0 0.0
        %2220 = vmatprep.subr.mxu0 0.0
        %2221 = vmatpush1.xpose.msra.mxu0 0.0
        %2222 = vmatprep.subr.mxu0 0.0
        %2223 = vmatpush1.xpose.msra.mxu0 0.0
        %2224 = vmatprep.subr.mxu0 0.0
        %2225 = vmatpush1.xpose.msra.mxu0 0.0
        %2226 = vmatprep.subr.mxu0 0.0
        %2227 = vmatpush1.xpose.msra.mxu0 0.0
        %2228 = vmatprep.subr.mxu0 0.0
        %2229 = vmatpush1.xpose.msra.mxu0 0.0
        %2230 = vmatprep.subr.mxu0 0.0
        %2231 = vmatpush1.xpose.msra.mxu0 0.0
        %2232 = vmatprep.subr.mxu0 0.0
        %2233 = vmatpush1.xpose.msra.mxu0 0.0
        %2234 = vmatprep.subr.mxu0 0.0
        %2235 = vmatpush1.xpose.msra.mxu0 0.0
        %2236 = vmatprep.subr.mxu0 0.0
        %2237 = vmatpush1.xpose.msra.mxu0 0.0
        %2238 = vmatprep.subr.mxu0 0.0
        %2239 = vmatpush1.xpose.msra.mxu0 0.0
        %2240 = vmatprep.subr.mxu0 0.0
        %2241 = vmatpush1.xpose.msra.mxu0 0.0
        %2242 = vmatprep.subr.mxu0 0.0
        %2243 = vmatpush1.xpose.msra.mxu0 0.0
        %2244 = vmatprep.subr.mxu0 0.0
        %2245 = vmatpush1.xpose.msra.mxu0 0.0
        %2246 = vmatprep.subr.mxu0 0.0
        %2247 = vmatpush1.xpose.msra.mxu0 0.0
        %2248 = vmatprep.subr.mxu0 0.0
        %2249 = vmatpush1.xpose.msra.mxu0 0.0
        %2250 = vmatprep.subr.mxu0 0.0
        %2251 = vmatpush1.xpose.msra.mxu0 0.0
        %2252 = vmatprep.subr.mxu0 0.0
        %2253 = vmatpush1.xpose.msra.mxu0 0.0
        %2254 = vmatprep.subr.mxu0 0.0
        %2255 = vmatpush1.xpose.msra.mxu0 0.0
        %2256 = vmatprep.subr.mxu0 0.0
        %2257 = vmatpush1.xpose.msra.mxu0 0.0
        %2258 = vmatprep.subr.mxu0 0.0
        %2259 = vmatpush1.xpose.msra.mxu0 0.0
        %2260 = vmatprep.subr.mxu0 0.0
        %2261 = vmatpush1.xpose.msra.mxu0 0.0
        %2262 = vmatprep.subr.mxu0 0.0
        %2263 = vmatpush1.xpose.msra.mxu0 0.0
        %2264 = vmatprep.subr.mxu0 0.0
        %2265 = vmatpush1.xpose.msra.mxu0 0.0
        %2266 = vmatprep.subr.mxu0 0.0
        %2267 = vmatpush1.xpose.msra.mxu0 0.0
        %2268 = vmatprep.subr.mxu0 0.0
        %2269 = vmatpush1.xpose.msra.mxu0 0.0
        %2270 = vmatprep.mubr.f32.mxu0 0.0
        %2271 = vmatmul.mubr.f32.gmra.mrb[0].mxu0 %v2201
        %v2272 = vpop.f32.mrb[0].mxu0
        %v2273 = vadd.f32 0.0, %v2272
        %v2274 = vpop.f32.mrb[0].mxu0
        %2275 = vdwg.mxu0
        %v2277 = vsel %vm531, %v2198, 0
        %2279 = vmatprep.subr.mxu0 0.0
        %2280 = vmatpush1.xpose.msra.mxu0 %v2277
        %2281 = vmatprep.subr.mxu0 0.0
        %2282 = vmatpush1.xpose.msra.mxu0 0.0
        %2283 = vmatprep.subr.mxu0 0.0
        %2284 = vmatpush1.xpose.msra.mxu0 0.0
        %2285 = vmatprep.subr.mxu0 0.0
        %2286 = vmatpush1.xpose.msra.mxu0 0.0
        %2287 = vmatprep.subr.mxu0 0.0
        %2288 = vmatpush1.xpose.msra.mxu0 0.0
        %2289 = vmatprep.subr.mxu0 0.0
        %2290 = vmatpush1.xpose.msra.mxu0 0.0
        %2291 = vmatprep.subr.mxu0 0.0
        %2292 = vmatpush1.xpose.msra.mxu0 0.0
        %2293 = vmatprep.subr.mxu0 0.0
        %2294 = vmatpush1.xpose.msra.mxu0 0.0
        %2295 = vmatprep.subr.mxu0 0.0
        %2296 = vmatpush1.xpose.msra.mxu0 0.0
        %2297 = vmatprep.subr.mxu0 0.0
        %2298 = vmatpush1.xpose.msra.mxu0 0.0
        %2299 = vmatprep.subr.mxu0 0.0
        %2300 = vmatpush1.xpose.msra.mxu0 0.0
        %2301 = vmatprep.subr.mxu0 0.0
        %2302 = vmatpush1.xpose.msra.mxu0 0.0
        %2303 = vmatprep.subr.mxu0 0.0
        %2304 = vmatpush1.xpose.msra.mxu0 0.0
        %2305 = vmatprep.subr.mxu0 0.0
        %2306 = vmatpush1.xpose.msra.mxu0 0.0
        %2307 = vmatprep.subr.mxu0 0.0
        %2308 = vmatpush1.xpose.msra.mxu0 0.0
        %2309 = vmatprep.subr.mxu0 0.0
        %2310 = vmatpush1.xpose.msra.mxu0 0.0
        %2311 = vmatprep.subr.mxu0 0.0
        %2312 = vmatpush1.xpose.msra.mxu0 0.0
        %2313 = vmatprep.subr.mxu0 0.0
        %2314 = vmatpush1.xpose.msra.mxu0 0.0
        %2315 = vmatprep.subr.mxu0 0.0
        %2316 = vmatpush1.xpose.msra.mxu0 0.0
        %2317 = vmatprep.subr.mxu0 0.0
        %2318 = vmatpush1.xpose.msra.mxu0 0.0
        %2319 = vmatprep.subr.mxu0 0.0
        %2320 = vmatpush1.xpose.msra.mxu0 0.0
        %2321 = vmatprep.subr.mxu0 0.0
        %2322 = vmatpush1.xpose.msra.mxu0 0.0
        %2323 = vmatprep.subr.mxu0 0.0
        %2324 = vmatpush1.xpose.msra.mxu0 0.0
        %2325 = vmatprep.subr.mxu0 0.0
        %2326 = vmatpush1.xpose.msra.mxu0 0.0
        %2327 = vmatprep.subr.mxu0 0.0
        %2328 = vmatpush1.xpose.msra.mxu0 0.0
        %2329 = vmatprep.subr.mxu0 0.0
        %2330 = vmatpush1.xpose.msra.mxu0 0.0
        %2331 = vmatprep.subr.mxu0 0.0
        %2332 = vmatpush1.xpose.msra.mxu0 0.0
        %2333 = vmatprep.subr.mxu0 0.0
        %2334 = vmatpush1.xpose.msra.mxu0 0.0
        %2335 = vmatprep.subr.mxu0 0.0
        %2336 = vmatpush1.xpose.msra.mxu0 0.0
        %2337 = vmatprep.subr.mxu0 0.0
        %2338 = vmatpush1.xpose.msra.mxu0 0.0
        %2339 = vmatprep.subr.mxu0 0.0
        %2340 = vmatpush1.xpose.msra.mxu0 0.0
        %2341 = vmatprep.subr.mxu0 0.0
        %2342 = vmatpush1.xpose.msra.mxu0 0.0
        %2343 = vmatprep.mubr.f32.mxu0 0.0
        %2344 = vmatmul.mubr.f32.gmra.mrb[0].mxu0 %v2201
        %v2345 = vpop.f32.mrb[0].mxu0
        %v2346 = vadd.f32 0.0, %v2345
        %v2347 = vpop.f32.mrb[0].mxu0
        %2348 = vdwg.mxu0
        %v2349 = vld [vmem:[%s449] sm:$0x1]
        %v2350 = vld [vmem:[%s449 + $0x1] sm:$0x1]
        %vm2351 = vcmp.ne.s32.totalorder %v2349, 0
        %vm2352 = vcmp.ne.s32.totalorder %v2350, 0
        %v2353 = vsel %vm2351, %v2273, -1e-32
        %v2354 = vsel %vm2352, %v2346, -1e-32
        %vm2355 = vcmask 57344
        %v2356 = vsel %vm2355, %v2353, -inf
        %2357 = vmax.xlane.f32.xlu0 %v2356
        %v2358 = vpop.xlane.xlu0 %2357
        %v2359 = vsel %vm2355, %v2354, -inf
        %2360 = vmax.xlane.f32.xlu0 %v2359
        %v2361 = vpop.xlane.xlu0 %2360
        %v2362 = vsub.f32 %v2353, %v2358
        %v2363 = vsub.f32 %v2354, %v2361
        %v2364 = vmul.f32 %v2362, 1.442695
        %v2365 = vpow.pop %v2364
        %v2366 = vmul.f32 %v2363, 1.442695
        %v2367 = vpow.pop %v2366
        %v2368 = vsel %vm2355, %v2365, 0.0
        %2369 = vadd.xlane.f32.xlu0 %v2368
        %v2370 = vpop.xlane.xlu0 %2369
        %v2371 = vsel %vm2355, %v2367, 0.0
        %2372 = vadd.xlane.f32.xlu0 %v2371
        %v2373 = vpop.xlane.xlu0 %2372
        %v2374 = vrcp.pop %v2370
        %v2375 = vrcp.pop %v2373
        %v2376 = vmul.f32 %v2365, %v2374
        %v2377 = vmul.f32 %v2367, %v2375
        %vm2378 = vcmask 64512
        %v2380 = vsel %vm2378, %v2376, 0
        %2382 = vmatprep.subr.mxu0 0.0
        %2383 = vmatpush1.msra.mxu0 %v2103
        %2384 = vmatprep.subr.mxu0 0.0
        %2385 = vmatpush1.msra.mxu0 0.0
        %2386 = vmatprep.subr.mxu0 0.0
        %2387 = vmatpush1.msra.mxu0 0.0
        %2388 = vmatprep.subr.mxu0 0.0
        %2389 = vmatpush1.msra.mxu0 0.0
        %2390 = vmatprep.subr.mxu0 0.0
        %2391 = vmatpush1.msra.mxu0 0.0
        %2392 = vmatprep.subr.mxu0 0.0
        %2393 = vmatpush1.msra.mxu0 0.0
        %2394 = vmatprep.subr.mxu0 0.0
        %2395 = vmatpush1.msra.mxu0 0.0
        %2396 = vmatprep.subr.mxu0 0.0
        %2397 = vmatpush1.msra.mxu0 0.0
        %2398 = vmatprep.subr.mxu0 0.0
        %2399 = vmatpush1.msra.mxu0 0.0
        %2400 = vmatprep.subr.mxu0 0.0
        %2401 = vmatpush1.msra.mxu0 0.0
        %2402 = vmatprep.subr.mxu0 0.0
        %2403 = vmatpush1.msra.mxu0 0.0
        %2404 = vmatprep.subr.mxu0 0.0
        %2405 = vmatpush1.msra.mxu0 0.0
        %2406 = vmatprep.subr.mxu0 0.0
        %2407 = vmatpush1.msra.mxu0 0.0
        %2408 = vmatprep.subr.mxu0 0.0
        %2409 = vmatpush1.msra.mxu0 0.0
        %2410 = vmatprep.subr.mxu0 0.0
        %2411 = vmatpush1.msra.mxu0 0.0
        %2412 = vmatprep.subr.mxu0 0.0
        %2413 = vmatpush1.msra.mxu0 0.0
        %2414 = vmatprep.subr.mxu0 0.0
        %2415 = vmatpush1.msra.mxu0 0.0
        %2416 = vmatprep.subr.mxu0 0.0
        %2417 = vmatpush1.msra.mxu0 0.0
        %2418 = vmatprep.subr.mxu0 0.0
        %2419 = vmatpush1.msra.mxu0 0.0
        %2420 = vmatprep.subr.mxu0 0.0
        %2421 = vmatpush1.msra.mxu0 0.0
        %2422 = vmatprep.subr.mxu0 0.0
        %2423 = vmatpush1.msra.mxu0 0.0
        %2424 = vmatprep.subr.mxu0 0.0
        %2425 = vmatpush1.msra.mxu0 0.0
        %2426 = vmatprep.subr.mxu0 0.0
        %2427 = vmatpush1.msra.mxu0 0.0
        %2428 = vmatprep.subr.mxu0 0.0
        %2429 = vmatpush1.msra.mxu0 0.0
        %2430 = vmatprep.subr.mxu0 0.0
        %2431 = vmatpush1.msra.mxu0 0.0
        %2432 = vmatprep.subr.mxu0 0.0
        %2433 = vmatpush1.msra.mxu0 0.0
        %2434 = vmatprep.subr.mxu0 0.0
        %2435 = vmatpush1.msra.mxu0 0.0
        %2436 = vmatprep.subr.mxu0 0.0
        %2437 = vmatpush1.msra.mxu0 0.0
        %2438 = vmatprep.subr.mxu0 0.0
        %2439 = vmatpush1.msra.mxu0 0.0
        %2440 = vmatprep.subr.mxu0 0.0
        %2441 = vmatpush1.msra.mxu0 0.0
        %2442 = vmatprep.subr.mxu0 0.0
        %2443 = vmatpush1.msra.mxu0 0.0
        %2444 = vmatprep.subr.mxu0 0.0
        %2445 = vmatpush1.msra.mxu0 0.0
        %2446 = vmatprep.mubr.f32.mxu0 0.0
        %2447 = vmatmul.mubr.f32.gmra.mrb[0].mxu0 %v2380
        %v2448 = vpop.f32.mrb[0].mxu0
        %v2449 = vadd.f32 0.0, %v2448
        %v2450 = vpop.f32.mrb[0].mxu0
        %2451 = vdwg.mxu0
        %v2453 = vsel %vm2378, %v2377, 0
        %2455 = vmatprep.subr.mxu0 0.0
        %2456 = vmatpush1.msra.mxu0 %v2104
        %2457 = vmatprep.subr.mxu0 0.0
        %2458 = vmatpush1.msra.mxu0 0.0
        %2459 = vmatprep.subr.mxu0 0.0
        %2460 = vmatpush1.msra.mxu0 0.0
        %2461 = vmatprep.subr.mxu0 0.0
        %2462 = vmatpush1.msra.mxu0 0.0
        %2463 = vmatprep.subr.mxu0 0.0
        %2464 = vmatpush1.msra.mxu0 0.0
        %2465 = vmatprep.subr.mxu0 0.0
        %2466 = vmatpush1.msra.mxu0 0.0
        %2467 = vmatprep.subr.mxu0 0.0
        %2468 = vmatpush1.msra.mxu0 0.0
        %2469 = vmatprep.subr.mxu0 0.0
        %2470 = vmatpush1.msra.mxu0 0.0
        %2471 = vmatprep.subr.mxu0 0.0
        %2472 = vmatpush1.msra.mxu0 0.0
        %2473 = vmatprep.subr.mxu0 0.0
        %2474 = vmatpush1.msra.mxu0 0.0
        %2475 = vmatprep.subr.mxu0 0.0
        %2476 = vmatpush1.msra.mxu0 0.0
        %2477 = vmatprep.subr.mxu0 0.0
        %2478 = vmatpush1.msra.mxu0 0.0
        %2479 = vmatprep.subr.mxu0 0.0
        %2480 = vmatpush1.msra.mxu0 0.0
        %2481 = vmatprep.subr.mxu0 0.0
        %2482 = vmatpush1.msra.mxu0 0.0
        %2483 = vmatprep.subr.mxu0 0.0
        %2484 = vmatpush1.msra.mxu0 0.0
        %2485 = vmatprep.subr.mxu0 0.0
        %2486 = vmatpush1.msra.mxu0 0.0
        %2487 = vmatprep.subr.mxu0 0.0
        %2488 = vmatpush1.msra.mxu0 0.0
        %2489 = vmatprep.subr.mxu0 0.0
        %2490 = vmatpush1.msra.mxu0 0.0
        %2491 = vmatprep.subr.mxu0 0.0
        %2492 = vmatpush1.msra.mxu0 0.0
        %2493 = vmatprep.subr.mxu0 0.0
        %2494 = vmatpush1.msra.mxu0 0.0
        %2495 = vmatprep.subr.mxu0 0.0
        %2496 = vmatpush1.msra.mxu0 0.0
        %2497 = vmatprep.subr.mxu0 0.0
        %2498 = vmatpush1.msra.mxu0 0.0
        %2499 = vmatprep.subr.mxu0 0.0
        %2500 = vmatpush1.msra.mxu0 0.0
        %2501 = vmatprep.subr.mxu0 0.0
        %2502 = vmatpush1.msra.mxu0 0.0
        %2503 = vmatprep.subr.mxu0 0.0
        %2504 = vmatpush1.msra.mxu0 0.0
        %2505 = vmatprep.subr.mxu0 0.0
        %2506 = vmatpush1.msra.mxu0 0.0
        %2507 = vmatprep.subr.mxu0 0.0
        %2508 = vmatpush1.msra.mxu0 0.0
        %2509 = vmatprep.subr.mxu0 0.0
        %2510 = vmatpush1.msra.mxu0 0.0
        %2511 = vmatprep.subr.mxu0 0.0
        %2512 = vmatpush1.msra.mxu0 0.0
        %2513 = vmatprep.subr.mxu0 0.0
        %2514 = vmatpush1.msra.mxu0 0.0
        %2515 = vmatprep.subr.mxu0 0.0
        %2516 = vmatpush1.msra.mxu0 0.0
        %2517 = vmatprep.subr.mxu0 0.0
        %2518 = vmatpush1.msra.mxu0 0.0
        %2519 = vmatprep.mubr.f32.mxu0 0.0
        %2520 = vmatmul.mubr.f32.gmra.mrb[0].mxu0 %v2453
        %v2521 = vpop.f32.mrb[0].mxu0
        %v2522 = vadd.f32 0.0, %v2521
        %v2523 = vpop.f32.mrb[0].mxu0
        %2524 = vdwg.mxu0
        %2525 = vst.msk [vmem:[%s506] sm:$0xff] %vm531, %v2103
        %2526 = vst.msk [vmem:[%s506 + $0x8] sm:$0xff] %vm531, %v2104
        %vm2527 = vcmask 253952
        %2528 = vst.msk [vmem:[%s513] sm:$0x1] %vm2527, %v2449
        %2529 = vst.msk [vmem:[%s513 + $0x1] sm:$0x1] %vm2527, %v2522
        %s2530 = sand.u32 %s265, 1
        %s2531 = scalar_lea.sflag [#allocation4], %s2530
        %s2532 = sand.u32 %s265, 1
        %s2533 = smul.addr %s2532, 16
        %s2534 = scalar_lea.vmem [#allocation13], %s2533
        %s2535 = sand.u32 %s291, 1
        %s2536 = scalar_lea.sflag [#allocation15], %s2535
        %s2537 = sand.u32 %s291, 1
        %s2538 = smul.addr %s2537, 2
        %s2539 = scalar_lea.vmem [#allocation14], %s2538
        // Predicated region
        $region85: #{tpu_custom_call.1} parent=59 // pred_check
          %p2540 = pneg %p275
        $region86: #{tpu_custom_call.1} parent=59 // pred_check_branch
          %2542 = sbr.rel (%p2540) target = $region88
        $region87: #{tpu_custom_call.1} parent=59 // pred_region
          %s2543 = smul.u32 2, %s37
          %s2545 = ssub.s32 256, 256
          %2546 = vsyncadd %s2531, %s2545
          %s2547 = smul.addr %s2543, 128
          %s2548 = scalar_lea.hbm %s10, %s2547
          %s2549 = sshll.u32 %s2534, 4
          %s2550 = int_to_ptr.vmem [resolvable:$true] %s2549
          %2555 = dma.vmem_to_hbm [thread:$0]  %s2550, 256, %s2548, %s2531, 128, 128, 8
        $region88: #{tpu_custom_call.1} parent=59 // pred_fallthru
          _
        // Predicated region
        $region89: #{tpu_custom_call.1} parent=59 // pred_check
          %p2556 = pneg %p301
        $region90: #{tpu_custom_call.1} parent=59 // pred_check_branch
          %2558 = sbr.rel (%p2556) target = $region92
        $region91: #{tpu_custom_call.1} parent=59 // pred_region
          %s2559 = smul.u32 2, %s37
          %s2561 = ssub.s32 32, 32
          %2562 = vsyncadd %s2536, %s2561
          %s2563 = smul.addr %s2559, 16
          %s2564 = scalar_lea.hbm %s11, %s2563
          %s2565 = sshll.u32 %s2539, 4
          %s2566 = int_to_ptr.vmem [resolvable:$true] %s2565
          %2571 = dma.vmem_to_hbm [thread:$0]  %s2566, 32, %s2564, %s2536, 16, 16, 1
        $region92: #{tpu_custom_call.1} parent=59 // pred_fallthru
          _
      $region60: #{tpu_custom_call.1} parent=5 // pred_fallthru
        _
      %p2572 = scmp.le.s32.totalorder 2, %s32
      // Predicated region
      $region93: #{tpu_custom_call.1} parent=5 // pred_check
        %p2573 = pneg %p2572
      $region94: #{tpu_custom_call.1} parent=5 // pred_check_branch
        %2575 = sbr.rel (%p2573) target = $region96
      $region95: #{tpu_custom_call.1} parent=5 // pred_region
        %s2576 = ssub.s32 %s32, 2
        // Predicated region
        $region97: #{tpu_custom_call.1} parent=95 // pred_check
          %p2577 = pneg %p281
        $region98: #{tpu_custom_call.1} parent=95 // pred_check_branch
          %2579 = sbr.rel (%p2577) target = $region100
        $region99: #{tpu_custom_call.1} parent=95 // pred_region
          %s2580 = sand.u32 %s266, 1
          %s2581 = scalar_lea.sflag [#allocation4], %s2580
          %s2582 = sand.u32 %s266, 1
          %s2583 = smul.addr %s2582, 16
          %s2584 = scalar_lea.vmem [#allocation13], %s2583
          %2585 = dma.done %s2581, 256
        $region100: #{tpu_custom_call.1} parent=95 // pred_fallthru
          _
        // Predicated region
        $region101: #{tpu_custom_call.1} parent=95 // pred_check
          %p2586 = pneg %p307
        $region102: #{tpu_custom_call.1} parent=95 // pred_check_branch
          %2588 = sbr.rel (%p2586) target = $region104
        $region103: #{tpu_custom_call.1} parent=95 // pred_region
          %s2589 = sand.u32 %s292, 1
          %s2590 = scalar_lea.sflag [#allocation15], %s2589
          %s2591 = sand.u32 %s292, 1
          %s2592 = smul.addr %s2591, 2
          %s2593 = scalar_lea.vmem [#allocation14], %s2592
          %2594 = dma.done %s2590, 32
        $region104: #{tpu_custom_call.1} parent=95 // pred_fallthru
          _
      $region96: #{tpu_custom_call.1} parent=5 // pred_fallthru
        _
    $region6: #{tpu_custom_call.1} parent=1 // loop_footer
      %s36 = sadd.s32 1, %s32
    $region7: #{tpu_custom_call.1} parent=1 // loop_footer_branch
      %31 = sbr.rel target = $region3
    $region8: #{tpu_custom_call.1} parent=1 // loop_exit
      _
    %2595 = vsyncpa [#allocation3], 1
    %s2596 = scalar_lea.sflag [#allocation3], 1
    %2597 = vsyncpa %s2596, 1
    %2598 = vsyncpa [#allocation6], 1
    %s2599 = scalar_lea.sflag [#allocation6], 1
    %2600 = vsyncpa %s2599, 1
    %2601 = vsyncpa [#allocation9], 1
    %2602 = vsyncpa [#allocation12], 1
    %2603 = vsyncpa [#allocation4], 1
    %s2604 = scalar_lea.sflag [#allocation4], 1
    %2605 = vsyncpa %s2604, 1
    %2606 = vsyncpa [#allocation15], 1
    %s2607 = scalar_lea.sflag [#allocation15], 1
    %2608 = vsyncpa %s2607, 1

</llo_original>
